<compile_context>
chip_gen: v6e
topology: v6e:2x2x1
jax: 0.10.0
libtpu: 0.0.40
codegen_flags: <defaults>
</compile_context>

<pallas_src>
import functools

import jax
import jax.numpy as jnp
import numpy as np
from jax.experimental import pallas as pl
from jax.experimental.pallas import tpu as pltpu


def _lovasz_kernel(pr_row_ref, pr_col_ref, tgt_row_ref, tgt_col_ref, slt_ref,
                   out_ref):
    """One grid step = one class c.

    pr_row_ref : (1, 1, P) f32  probs for class c, lane-dense row
    pr_col_ref : (1, P, 1) f32  probs for class c, sublane column
    tgt_row_ref: (1, P)    i32  labels, lane-dense row
    tgt_col_ref: (P, 1)    i32  labels, column
    slt_ref    : (P, P)    f32  strict lower-triangular mask (col < row)
    out_ref    : (1, 1, 128) f32  per-class loss (broadcast over lanes)
    """
    c = pl.program_id(0)
    P = slt_ref.shape[0]
    f32 = jnp.float32

    pc_row = pr_row_ref[0]                               # (1, P)
    pc_col = pr_col_ref[0]                               # (P, 1)
    tc_row = (tgt_row_ref[...] == c).astype(f32)         # (1, P) target_c
    tc_col = (tgt_col_ref[...] == c).astype(f32)         # (P, 1)

    err_row = jnp.abs(tc_row - pc_row)                   # (1, P) loss_c
    err_col = jnp.abs(tc_col - pc_col)                   # (P, 1) same values

    # ---- stable descending-sort ranks (no sort primitive) ------------------
    # rank[i] = #{ j : err[j] > err[i]  or  (err[j] == err[i] and j < i) }
    # rows (sublanes) index i (self), columns (lanes) index j (other).
    e_other = jnp.broadcast_to(err_row, (P, P))          # err[j] along lanes
    e_self = jnp.broadcast_to(err_col, (P, P))           # err[i] along rows
    cmp = jnp.where(e_other > e_self, 1.0,
                    jnp.where(e_other == e_self, slt_ref[...], 0.0))
    rank = jnp.sum(cmp, axis=1, keepdims=True)           # (P, 1) exact ints

    rank_b = jnp.broadcast_to(rank, (P, P))              # rank[i] along rows
    col = jax.lax.broadcasted_iota(jnp.int32, (P, P), 1).astype(f32)

    # w[r] = sorted_err[r] - sorted_err[r+1] via D[i,r] = [rank[i]==r]-[rank[i]==r+1]
    d_mat = (rank_b == col).astype(f32) - (rank_b == (col + 1.0)).astype(f32)
    w = jnp.dot(err_row, d_mat, preferred_element_type=f32)         # (1, P)

    # cum_t[r] = sum_{s<=r} sorted_tc[s] = sum_i tc[i] * [rank[i] <= r]
    le_rank = (rank_b <= col).astype(jnp.bfloat16)       # 0/1 exact in bf16
    cum_t = jnp.dot(tc_row.astype(jnp.bfloat16), le_rank,
                    preferred_element_type=f32)                      # (1, P)

    # ---- lovasz_grad + final dot (Abel-summed: no shift needed) ------------
    pos = jax.lax.broadcasted_iota(jnp.int32, (1, P), 1).astype(f32)
    cum_not_t = (pos + 1.0) - cum_t                      # cumsum(1 - sorted_tc)
    gts = jnp.sum(tc_row)
    jaccard = 1.0 - (gts - cum_t) / (gts + cum_not_t)    # (1, P)

    # loss = sum_r sorted_err[r] * lovasz_grad[r] == sum_r w[r] * jaccard[r]
    loss = jnp.sum(w * jaccard)
    out_ref[...] = jnp.full(out_ref.shape, loss, dtype=out_ref.dtype)


@functools.partial(jax.jit, static_argnames=("reduction",))
def lovasz_softmax(inputs, targets, reduction="mean"):
    """inputs: (N, C, H, W) float, targets: (N, H, W) int."""
    N, C, H, W = inputs.shape
    P = N * H * W

    # prob_flatten: NCHW -> NHWC -> (P, C); kernel consumes class-major copies
    # in both a lane-dense (C, 1, P) and a column (C, P, 1) layout.
    probs = jnp.transpose(inputs, (0, 2, 3, 1)).reshape(P, C).astype(jnp.float32)
    probs_t = jnp.transpose(probs, (1, 0))               # (C, P)
    probs_row = probs_t.reshape(C, 1, P)
    probs_col = probs_t.reshape(C, P, 1)

    tgt = targets.reshape(P).astype(jnp.int32)
    tgt_row = tgt.reshape(1, P)
    tgt_col = tgt.reshape(P, 1)

    # Constant strict-lower-triangular mask (index tie-break), built once and
    # DMA'd once (constant index_map) instead of rebuilt per class in-kernel.
    ri = jax.lax.broadcasted_iota(jnp.int32, (P, P), 0)
    ci = jax.lax.broadcasted_iota(jnp.int32, (P, P), 1)
    slt = (ci < ri).astype(jnp.float32)

    out = pl.pallas_call(
        _lovasz_kernel,
        out_shape=jax.ShapeDtypeStruct((C, 1, 128), jnp.float32),
        grid_spec=pltpu.PrefetchScalarGridSpec(
            num_scalar_prefetch=0,
            grid=(C,),
            in_specs=[
                pl.BlockSpec((1, 1, P), lambda c: (c, 0, 0)),
                pl.BlockSpec((1, P, 1), lambda c: (c, 0, 0)),
                pl.BlockSpec((1, P), lambda c: (0, 0)),
                pl.BlockSpec((P, 1), lambda c: (0, 0)),
                pl.BlockSpec((P, P), lambda c: (0, 0)),
            ],
            out_specs=pl.BlockSpec((1, 1, 128), lambda c: (c, 0, 0)),
        ),
        compiler_params=pltpu.CompilerParams(
            dimension_semantics=("parallel",),
            vmem_limit_bytes=32 * 1024 * 1024,
        ),
    )(probs_row, probs_col, tgt_row, tgt_col, slt)

    losses = out[:, 0, 0]                                # (C,)
    if reduction == "none":
        return losses
    if reduction == "sum":
        return jnp.sum(losses)
    return jnp.mean(losses)  # default 'mean'


def lovasz_softmax_ref(inputs, targets, reduction="mean"):
    """Pure-JAX reference mirroring the PyTorch module."""
    N, C, H, W = inputs.shape
    probs = jnp.transpose(inputs, (0, 2, 3, 1)).reshape(-1, C).astype(jnp.float32)
    tgt = targets.reshape(-1)
    losses = []
    for c in range(C):
        fg = (tgt == c).astype(jnp.float32)
        errs = jnp.abs(fg - probs[:, c])
        order = jnp.argsort(-errs)            # stable descending
        errs_s = errs[order]
        fg_s = fg[order]
        gts = fg_s.sum()
        inter = gts - jnp.cumsum(fg_s)
        union = gts + jnp.cumsum(1.0 - fg_s)
        jac = 1.0 - inter / union
        jac = jnp.concatenate([jac[:1], jac[1:] - jac[:-1]])
        losses.append(jnp.dot(errs_s, jac))
    losses = jnp.stack(losses)
    if reduction == "none":
        return losses
    if reduction == "sum":
        return jnp.sum(losses)
    return jnp.mean(losses)


if __name__ == "__main__":
    key = jax.random.PRNGKey(0)
    k1, k2 = jax.random.split(key)
    N, C, H, W = 2, 4, 16, 16
    # LovaszSoftmax (no parameters); probability-like inputs, integer labels.
    x = jax.nn.softmax(jax.random.normal(k1, (N, C, H, W), dtype=jnp.float32), axis=1)
    y = jax.random.randint(k2, (N, H, W), 0, C, dtype=jnp.int32)

    loss = lovasz_softmax(x, y, reduction="mean")
    loss = jax.block_until_ready(loss)

    ref = jax.block_until_ready(lovasz_softmax_ref(x, y, reduction="mean"))
    np.testing.assert_allclose(np.asarray(loss), np.asarray(ref), rtol=1e-4, atol=1e-5)

    print("KERNEL_OK")
</pallas_src>

<mosaic_0001>
module attributes {stable_mosaic.version = 11 : i64} {
  func.func @_lovasz_kernel(%arg0: i32, %arg1: memref<1x1x512xf32, #tpu.memory_space<vmem>>, %arg2: memref<1x512x1xf32, #tpu.memory_space<vmem>>, %arg3: memref<1x512xi32, #tpu.memory_space<vmem>>, %arg4: memref<512x1xi32, #tpu.memory_space<vmem>>, %arg5: memref<512x512xf32, #tpu.memory_space<vmem>>, %arg6: memref<1x1x128xf32, #tpu.memory_space<vmem>>) attributes {dimension_semantics = [#tpu.dimension_semantics<parallel>], iteration_bounds = array<i64: 4>, scalar_prefetch = 0 : i64, scratch_operands = 0 : i64, tpu.core_type = #tpu.core_type<tc>, window_params = [{transform_indices = @transform_0, window_bounds = array<i64: 1, 1, 512>}, {transform_indices = @transform_1, window_bounds = array<i64: 1, 512, 1>}, {pipeline_mode = #tpu.pipeline_mode<synchronous>, transform_indices = @transform_2, window_bounds = array<i64: 1, 512>}, {pipeline_mode = #tpu.pipeline_mode<synchronous>, transform_indices = @transform_3, window_bounds = array<i64: 512, 1>}, {pipeline_mode = #tpu.pipeline_mode<synchronous>, transform_indices = @transform_4, window_bounds = array<i64: 512, 512>}, {transform_indices = @transform_5, window_bounds = array<i64: 1, 1, 128>}]} {
    %c0 = arith.constant 0 : index
    %c0_0 = arith.constant 0 : index
    %c0_1 = arith.constant 0 : index
    %0 = vector.load %arg1[%c0, %c0_0, %c0_1] : memref<1x1x512xf32, #tpu.memory_space<vmem>>, vector<1x1x512xf32>
    %1 = vector.shape_cast %0 : vector<1x1x512xf32> to vector<1x512xf32>
    %c0_2 = arith.constant 0 : index
    %c0_3 = arith.constant 0 : index
    %c0_4 = arith.constant 0 : index
    %2 = vector.load %arg2[%c0_2, %c0_3, %c0_4] : memref<1x512x1xf32, #tpu.memory_space<vmem>>, vector<1x512x1xf32>
    %3 = vector.shape_cast %2 : vector<1x512x1xf32> to vector<512x1xf32>
    %c0_5 = arith.constant 0 : index
    %c0_6 = arith.constant 0 : index
    %4 = vector.load %arg3[%c0_5, %c0_6] : memref<1x512xi32, #tpu.memory_space<vmem>>, vector<1x512xi32>
    %5 = vector.broadcast %arg0 : i32 to vector<1x512xi32>
    %6 = arith.cmpi eq, %4, %5 : vector<1x512xi32>
    %7 = arith.extui %6 : vector<1x512xi1> to vector<1x512xi32>
    %8 = arith.sitofp %7 : vector<1x512xi32> to vector<1x512xf32>
    %c0_7 = arith.constant 0 : index
    %c0_8 = arith.constant 0 : index
    %9 = vector.load %arg4[%c0_7, %c0_8] : memref<512x1xi32, #tpu.memory_space<vmem>>, vector<512x1xi32>
    %10 = vector.broadcast %arg0 : i32 to vector<512x1xi32>
    %11 = arith.cmpi eq, %9, %10 : vector<512x1xi32>
    %12 = arith.extui %11 : vector<512x1xi1> to vector<512x1xi32>
    %13 = arith.sitofp %12 : vector<512x1xi32> to vector<512x1xf32>
    %14 = arith.subf %8, %1 : vector<1x512xf32>
    %15 = math.absf %14 : vector<1x512xf32>
    %16 = arith.subf %13, %3 : vector<512x1xf32>
    %17 = math.absf %16 : vector<512x1xf32>
    %18 = vector.shape_cast %15 : vector<1x512xf32> to vector<1x512xf32>
    %19 = vector.broadcast %18 : vector<1x512xf32> to vector<512x512xf32>
    %20 = vector.shape_cast %17 : vector<512x1xf32> to vector<512x1xf32>
    %21 = vector.broadcast %20 : vector<512x1xf32> to vector<512x512xf32>
    %22 = arith.cmpf ogt, %19, %21 : vector<512x512xf32>
    %23 = arith.cmpf oeq, %19, %21 : vector<512x512xf32>
    %c0_9 = arith.constant 0 : index
    %c0_10 = arith.constant 0 : index
    %24 = vector.load %arg5[%c0_9, %c0_10] : memref<512x512xf32, #tpu.memory_space<vmem>>, vector<512x512xf32>
    %cst = arith.constant 0.000000e+00 : f32
    %25 = vector.broadcast %cst : f32 to vector<512x512xf32>
    %26 = arith.select %23, %24, %25 : vector<512x512xi1>, vector<512x512xf32>
    %cst_11 = arith.constant 1.000000e+00 : f32
    %27 = vector.broadcast %cst_11 : f32 to vector<512x512xf32>
    %28 = arith.select %22, %27, %26 : vector<512x512xi1>, vector<512x512xf32>
    %cst_12 = arith.constant dense<0.000000e+00> : vector<512xf32>
    %29 = vector.multi_reduction <add>, %28, %cst_12 [1] : vector<512x512xf32> to vector<512xf32>
    %30 = vector.shape_cast %29 : vector<512xf32> to vector<512x1xf32>
    %31 = vector.shape_cast %30 : vector<512x1xf32> to vector<512x1xf32>
    %32 = vector.broadcast %31 : vector<512x1xf32> to vector<512x512xf32>
    %33 = tpu.iota {dimensions = array<i32: 1>} : vector<512x512xi32>
    %34 = arith.sitofp %33 : vector<512x512xi32> to vector<512x512xf32>
    %35 = arith.cmpf oeq, %32, %34 : vector<512x512xf32>
    %36 = arith.extui %35 : vector<512x512xi1> to vector<512x512xi32>
    %37 = arith.sitofp %36 : vector<512x512xi32> to vector<512x512xf32>
    %cst_13 = arith.constant 1.000000e+00 : f32
    %38 = vector.broadcast %cst_13 : f32 to vector<512x512xf32>
    %39 = arith.addf %34, %38 : vector<512x512xf32>
    %40 = arith.cmpf oeq, %32, %39 : vector<512x512xf32>
    %41 = arith.extui %40 : vector<512x512xi1> to vector<512x512xi32>
    %42 = arith.sitofp %41 : vector<512x512xi32> to vector<512x512xf32>
    %43 = arith.subf %37, %42 : vector<512x512xf32>
    %cst_14 = arith.constant dense<0.000000e+00> : vector<1x512xf32>
    %44 = tpu.matmul %15, %43, %cst_14 {dimension_numbers = #tpu.dot_dimension_numbers<[1], [0], [0], [1], [0, 0, 1, 1], [], []>} : vector<1x512xf32>, vector<512x512xf32>, vector<1x512xf32> -> vector<1x512xf32>
    %45 = arith.cmpf ole, %32, %34 : vector<512x512xf32>
    %46 = arith.extui %45 : vector<512x512xi1> to vector<512x512xi32>
    %47 = arith.sitofp %46 : vector<512x512xi32> to vector<512x512xf32>
    %48 = arith.truncf %47 : vector<512x512xf32> to vector<512x512xbf16>
    %49 = arith.truncf %8 : vector<1x512xf32> to vector<1x512xbf16>
    %cst_15 = arith.constant dense<0.000000e+00> : vector<1x512xf32>
    %50 = tpu.matmul %49, %48, %cst_15 {dimension_numbers = #tpu.dot_dimension_numbers<[1], [0], [0], [1], [0, 0, 1, 1], [], []>} : vector<1x512xbf16>, vector<512x512xbf16>, vector<1x512xf32> -> vector<1x512xf32>
    %51 = tpu.iota {dimensions = array<i32: 1>} : vector<1x512xi32>
    %52 = arith.sitofp %51 : vector<1x512xi32> to vector<1x512xf32>
    %cst_16 = arith.constant 1.000000e+00 : f32
    %53 = vector.broadcast %cst_16 : f32 to vector<1x512xf32>
    %54 = arith.addf %52, %53 : vector<1x512xf32>
    %55 = arith.subf %54, %50 : vector<1x512xf32>
    %56 = vector.shape_cast %8 : vector<1x512xf32> to vector<1x1x512xf32>
    %cst_17 = arith.constant dense<0.000000e+00> : vector<1xf32>
    %57 = vector.multi_reduction <add>, %56, %cst_17 [1, 2] : vector<1x1x512xf32> to vector<1xf32>
    %58 = vector.shape_cast %57 : vector<1xf32> to vector<1x1x1xf32>
    %59 = vector.extract %58[0, 0, 0] : f32 from vector<1x1x1xf32>
    %60 = vector.broadcast %59 : f32 to vector<1x512xf32>
    %61 = arith.subf %60, %50 : vector<1x512xf32>
    %62 = vector.broadcast %59 : f32 to vector<1x512xf32>
    %63 = arith.addf %62, %55 : vector<1x512xf32>
    %64 = arith.divf %61, %63 : vector<1x512xf32>
    %cst_18 = arith.constant 1.000000e+00 : f32
    %65 = vector.broadcast %cst_18 : f32 to vector<1x512xf32>
    %66 = arith.subf %65, %64 : vector<1x512xf32>
    %67 = arith.mulf %44, %66 : vector<1x512xf32>
    %68 = vector.shape_cast %67 : vector<1x512xf32> to vector<1x1x512xf32>
    %cst_19 = arith.constant dense<0.000000e+00> : vector<1xf32>
    %69 = vector.multi_reduction <add>, %68, %cst_19 [1, 2] : vector<1x1x512xf32> to vector<1xf32>
    %70 = vector.shape_cast %69 : vector<1xf32> to vector<1x1x1xf32>
    %71 = vector.extract %70[0, 0, 0] : f32 from vector<1x1x1xf32>
    %72 = vector.broadcast %71 : f32 to vector<1x1x128xf32>
    %c0_20 = arith.constant 0 : index
    %c0_21 = arith.constant 0 : index
    %c0_22 = arith.constant 0 : index
    %73 = vector.load %arg6[%c0_20, %c0_21, %c0_22] : memref<1x1x128xf32, #tpu.memory_space<vmem>>, vector<1x1x128xf32>
    tpu.vector_store %arg6[%c0_20, %c0_21, %c0_22], %72 {strides = array<i32>} : memref<1x1x128xf32, #tpu.memory_space<vmem>>, vector<1x1x128xf32>,
    return
  }
  func.func @transform_0(%arg0: i32) -> (i32, i32, i32) {
    %c0_i32 = arith.constant 0 : i32
    %c0_i32_0 = arith.constant 0 : i32
    %c0_i32_1 = arith.constant 0 : i32
    return %arg0, %c0_i32, %c0_i32_0 : i32, i32, i32
  }
  func.func @transform_1(%arg0: i32) -> (i32, i32, i32) {
    %c0_i32 = arith.constant 0 : i32
    %c0_i32_0 = arith.constant 0 : i32
    %c0_i32_1 = arith.constant 0 : i32
    return %arg0, %c0_i32, %c0_i32_0 : i32, i32, i32
  }
  func.func @transform_2(%arg0: i32) -> (i32, i32) {
    %c0_i32 = arith.constant 0 : i32
    %c0_i32_0 = arith.constant 0 : i32
    %c0_i32_1 = arith.constant 0 : i32
    return %c0_i32, %c0_i32_0 : i32, i32
  }
  func.func @transform_3(%arg0: i32) -> (i32, i32) {
    %c0_i32 = arith.constant 0 : i32
    %c0_i32_0 = arith.constant 0 : i32
    %c0_i32_1 = arith.constant 0 : i32
    return %c0_i32, %c0_i32_0 : i32, i32
  }
  func.func @transform_4(%arg0: i32) -> (i32, i32) {
    %c0_i32 = arith.constant 0 : i32
    %c0_i32_0 = arith.constant 0 : i32
    %c0_i32_1 = arith.constant 0 : i32
    return %c0_i32, %c0_i32_0 : i32, i32
  }
  func.func @transform_5(%arg0: i32) -> (i32, i32, i32) {
    %c0_i32 = arith.constant 0 : i32
    %c0_i32_0 = arith.constant 0 : i32
    %c0_i32_1 = arith.constant 0 : i32
    return %arg0, %c0_i32, %c0_i32_0 : i32, i32, i32
  }
}

</mosaic_0001>

<llo_original>
// kernel: lovasz_softmax.1
$region0: #{lovasz_softmax.1}
  #allocation0 [shape = 'u32[]', space=smem, size = 0x4, offset = 0x4, fixed_abs, tag = 'smem constant byte address 0x4 - core index']
  #allocation1 [shape = 'u32[144,128]{1,0:T(1,128)}', space=vmem, size = 0x12000, scoped, tag = 'internal scratch']
  %s0 = inlined_call_operand.vmem [shape: f32[4,1,512], index: 0, kind: input, shape index: {}]
  %s1 = inlined_call_operand.vmem [shape: f32[4,512,1], index: 1, kind: input, shape index: {}]
  %s2 = inlined_call_operand.vmem [shape: s32[1,512], index: 2, kind: input, shape index: {}]
  %s3 = inlined_call_operand.vmem [shape: s32[512,1], index: 3, kind: input, shape index: {}]
  %s4 = inlined_call_operand.vmem [shape: f32[512,512], index: 4, kind: input, shape index: {}]
  %s5 = inlined_call_operand.vmem [shape: f32[4,1,128], index: 5, kind: output, shape index: {}]
  %s6 = sld [smem:[#allocation0]]
  $region53: #{lovasz_softmax.1} parent=0
    _
  %s8 = ssub.s32 1, %s6
  %s9 = scalar_select 0, %s8, %s6
  loop: start=0, step=1, limit=6
  $region2: #{lovasz_softmax.1} parent=0 // loop_pre_header
    _
  $region3: #{lovasz_softmax.1} parent=0 // loop_header
    %s11 = sphi 0, %s15
    %p12 = scmp.ge.s32.totalorder %s11, 6
    %s21 = sphi 0, %s23
    %s24 = sphi 0, %s21
    %s25 = sphi 0, %s24
    %s41 = sphi 0, %s25
    %s47 = sphi 0, %s49
    %s50 = sphi 0, %s47
    %s51 = sphi 0, %s50
    %s67 = sphi 0, %s51
    %s71 = sphi 0, %s71
    %s73 = sphi 0, %s71
    %s74 = sphi 0, %s73
    %s88 = sphi 0, %s74
    %s92 = sphi 0, %s92
    %s94 = sphi 0, %s92
    %s95 = sphi 0, %s94
    %s109 = sphi 0, %s95
    %s113 = sphi 0, %s113
    %s115 = sphi 0, %s113
    %s116 = sphi 0, %s115
    %s130 = sphi 0, %s116
    %s136 = sphi 0, %s138
    %s139 = sphi 0, %s136
    %s140 = sphi 0, %s139
    %s156 = sphi 0, %s140
  $region4: #{lovasz_softmax.1} parent=0 // loop_header_branch
    %14 = sbr.rel (%p12) target = $region8
  $region5: #{lovasz_softmax.1} parent=0 // loop_body
    %s16 = ssub.s32 %s11, 1
    %s17 = ssub.s32 %s11, 2
    %s18 = sadd.s32 %s11, 1
    %s19 = ssub.s32 %s11, %s18
    %p20 = scmp.eq.s32.totalorder %s19, 0
    %s22 = sadd.s32 %s21, 1
    %s23 = scalar_select %p20, %s21, %s22
    %p26 = pneg %p20
    %p27 = scmp.eq.s32.totalorder %s11, 3
    %p28 = por %p26, %p27
    %p29 = scmp.ne.s32.totalorder %s21, %s24
    %p30 = scmp.eq.s32.totalorder %s11, 0
    %p31 = por %p29, %p30
    %p32 = scmp.ne.s32.totalorder %s21, %s24
    %p33 = scmp.eq.s32.totalorder %s16, 3
    %p34 = por %p32, %p33
    %p35 = scmp.ne.s32.totalorder %s24, %s25
    %p36 = scmp.eq.s32.totalorder %s16, 0
    %p37 = por %p35, %p36
    %p38 = scmp.ne.s32.totalorder %s24, %s25
    %p39 = scmp.eq.s32.totalorder %s17, 3
    %p40 = por %p38, %p39
    %p42 = scmp.ne.s32.totalorder %s25, %s41
    %p43 = scmp.eq.s32.totalorder %s17, 0
    %p44 = por %p42, %p43
    %s45 = ssub.s32 %s11, %s18
    %p46 = scmp.eq.s32.totalorder %s45, 0
    %s48 = sadd.s32 %s47, 1
    %s49 = scalar_select %p46, %s47, %s48
    %p52 = pneg %p46
    %p53 = scmp.eq.s32.totalorder %s11, 3
    %p54 = por %p52, %p53
    %p55 = scmp.ne.s32.totalorder %s47, %s50
    %p56 = scmp.eq.s32.totalorder %s11, 0
    %p57 = por %p55, %p56
    %p58 = scmp.ne.s32.totalorder %s47, %s50
    %p59 = scmp.eq.s32.totalorder %s16, 3
    %p60 = por %p58, %p59
    %p61 = scmp.ne.s32.totalorder %s50, %s51
    %p62 = scmp.eq.s32.totalorder %s16, 0
    %p63 = por %p61, %p62
    %p64 = scmp.ne.s32.totalorder %s50, %s51
    %p65 = scmp.eq.s32.totalorder %s17, 3
    %p66 = por %p64, %p65
    %p68 = scmp.ne.s32.totalorder %s51, %s67
    %p69 = scmp.eq.s32.totalorder %s17, 0
    %p70 = por %p68, %p69
    %s72 = sadd.s32 %s71, 1
    %p75 = scmp.eq.s32.totalorder %s11, 3
    %p76 = scmp.ne.s32.totalorder %s71, %s73
    %p77 = scmp.eq.s32.totalorder %s11, 0
    %p78 = por %p76, %p77
    %p79 = scmp.ne.s32.totalorder %s71, %s73
    %p80 = scmp.eq.s32.totalorder %s16, 3
    %p81 = por %p79, %p80
    %p82 = scmp.ne.s32.totalorder %s73, %s74
    %p83 = scmp.eq.s32.totalorder %s16, 0
    %p84 = por %p82, %p83
    %p85 = scmp.ne.s32.totalorder %s73, %s74
    %p86 = scmp.eq.s32.totalorder %s17, 3
    %p87 = por %p85, %p86
    %p89 = scmp.ne.s32.totalorder %s74, %s88
    %p90 = scmp.eq.s32.totalorder %s17, 0
    %p91 = por %p89, %p90
    %s93 = sadd.s32 %s92, 1
    %p96 = scmp.eq.s32.totalorder %s11, 3
    %p97 = scmp.ne.s32.totalorder %s92, %s94
    %p98 = scmp.eq.s32.totalorder %s11, 0
    %p99 = por %p97, %p98
    %p100 = scmp.ne.s32.totalorder %s92, %s94
    %p101 = scmp.eq.s32.totalorder %s16, 3
    %p102 = por %p100, %p101
    %p103 = scmp.ne.s32.totalorder %s94, %s95
    %p104 = scmp.eq.s32.totalorder %s16, 0
    %p105 = por %p103, %p104
    %p106 = scmp.ne.s32.totalorder %s94, %s95
    %p107 = scmp.eq.s32.totalorder %s17, 3
    %p108 = por %p106, %p107
    %p110 = scmp.ne.s32.totalorder %s95, %s109
    %p111 = scmp.eq.s32.totalorder %s17, 0
    %p112 = por %p110, %p111
    %s114 = sadd.s32 %s113, 1
    %p117 = scmp.eq.s32.totalorder %s11, 3
    %p118 = scmp.ne.s32.totalorder %s113, %s115
    %p119 = scmp.eq.s32.totalorder %s11, 0
    %p120 = por %p118, %p119
    %p121 = scmp.ne.s32.totalorder %s113, %s115
    %p122 = scmp.eq.s32.totalorder %s16, 3
    %p123 = por %p121, %p122
    %p124 = scmp.ne.s32.totalorder %s115, %s116
    %p125 = scmp.eq.s32.totalorder %s16, 0
    %p126 = por %p124, %p125
    %p127 = scmp.ne.s32.totalorder %s115, %s116
    %p128 = scmp.eq.s32.totalorder %s17, 3
    %p129 = por %p127, %p128
    %p131 = scmp.ne.s32.totalorder %s116, %s130
    %p132 = scmp.eq.s32.totalorder %s17, 0
    %p133 = por %p131, %p132
    %s134 = ssub.s32 %s11, %s18
    %p135 = scmp.eq.s32.totalorder %s134, 0
    %s137 = sadd.s32 %s136, 1
    %s138 = scalar_select %p135, %s136, %s137
    %p141 = pneg %p135
    %p142 = scmp.eq.s32.totalorder %s11, 3
    %p143 = por %p141, %p142
    %p144 = scmp.ne.s32.totalorder %s136, %s139
    %p145 = scmp.eq.s32.totalorder %s11, 0
    %p146 = por %p144, %p145
    %p147 = scmp.ne.s32.totalorder %s136, %s139
    %p148 = scmp.eq.s32.totalorder %s16, 3
    %p149 = por %p147, %p148
    %p150 = scmp.ne.s32.totalorder %s139, %s140
    %p151 = scmp.eq.s32.totalorder %s16, 0
    %p152 = por %p150, %p151
    %p153 = scmp.ne.s32.totalorder %s139, %s140
    %p154 = scmp.eq.s32.totalorder %s17, 3
    %p155 = por %p153, %p154
    %p157 = scmp.ne.s32.totalorder %s140, %s156
    %p158 = scmp.eq.s32.totalorder %s17, 0
    %p159 = por %p157, %p158
    %p160 = scmp.le.s32.totalorder 1, %s11
    %p161 = scmp.lt.s32.totalorder %s11, 5
    %p162 = pnand %p160, %p161
    %p163 = pneg %p162
    // Predicated region
    $region9: #{lovasz_softmax.1} parent=5 // pred_check
      _
    $region10: #{lovasz_softmax.1} parent=5 // pred_check_branch
      %165 = sbr.rel (%p162) target = $region12
    $region11: #{lovasz_softmax.1} parent=5 // pred_region
      %s166 = ssub.s32 %s11, 1
      // Predicated region
      $region13: #{lovasz_softmax.1} parent=11 // pred_check
        %p167 = pneg %p84
      $region14: #{lovasz_softmax.1} parent=11 // pred_check_branch
        %169 = sbr.rel (%p167) target = $region16
      $region15: #{lovasz_softmax.1} parent=11 // pred_region
        _
      $region16: #{lovasz_softmax.1} parent=11 // pred_fallthru
        _
      // Predicated region
      $region17: #{lovasz_softmax.1} parent=11 // pred_check
        %p170 = pneg %p105
      $region18: #{lovasz_softmax.1} parent=11 // pred_check_branch
        %172 = sbr.rel (%p170) target = $region20
      $region19: #{lovasz_softmax.1} parent=11 // pred_region
        _
      $region20: #{lovasz_softmax.1} parent=11 // pred_fallthru
        _
      // Predicated region
      $region21: #{lovasz_softmax.1} parent=11 // pred_check
        %p173 = pneg %p126
      $region22: #{lovasz_softmax.1} parent=11 // pred_check_branch
        %175 = sbr.rel (%p173) target = $region24
      $region23: #{lovasz_softmax.1} parent=11 // pred_region
        _
      $region24: #{lovasz_softmax.1} parent=11 // pred_fallthru
        _
    $region12: #{lovasz_softmax.1} parent=5 // pred_fallthru
      _
    %p176 = scmp.lt.s32.totalorder %s11, 4
    // Predicated region
    $region25: #{lovasz_softmax.1} parent=5 // pred_check
      %p177 = pneg %p176
    $region26: #{lovasz_softmax.1} parent=5 // pred_check_branch
      %179 = sbr.rel (%p177) target = $region28
    $region27: #{lovasz_softmax.1} parent=5 // pred_region
      // Predicated region
      $region29: #{lovasz_softmax.1} parent=27 // pred_check
        %p180 = pneg %p31
      $region30: #{lovasz_softmax.1} parent=27 // pred_check_branch
        %182 = sbr.rel (%p180) target = $region32
      $region31: #{lovasz_softmax.1} parent=27 // pred_region
        %p183 = scmp.lt.s32.totalorder %s11, 3
        %s184 = scalar_select %p183, %s11, 3
        %s185 = smul.addr %s184, 4
        %s186 = scalar_lea.vmem %s0, %s185
      $region32: #{lovasz_softmax.1} parent=27 // pred_fallthru
        _
      // Predicated region
      $region33: #{lovasz_softmax.1} parent=27 // pred_check
        %p187 = pneg %p57
      $region34: #{lovasz_softmax.1} parent=27 // pred_check_branch
        %189 = sbr.rel (%p187) target = $region36
      $region35: #{lovasz_softmax.1} parent=27 // pred_region
        %p190 = scmp.lt.s32.totalorder %s11, 3
        %s191 = scalar_select %p190, %s11, 3
        %s192 = smul.addr %s191, 64
        %s193 = smul.addr %s192, 8
        %s194 = scalar_lea.vmem %s1, %s193
      $region36: #{lovasz_softmax.1} parent=27 // pred_fallthru
        _
    $region28: #{lovasz_softmax.1} parent=5 // pred_fallthru
      _
    %p195 = scmp.le.s32.totalorder 1, %s11
    %p196 = scmp.lt.s32.totalorder %s11, 5
    %p197 = pnand %p195, %p196
    %p198 = pneg %p197
    // Predicated region
    $region37: #{lovasz_softmax.1} parent=5 // pred_check
      _
    $region38: #{lovasz_softmax.1} parent=5 // pred_check_branch
      %200 = sbr.rel (%p197) target = $region40
    $region39: #{lovasz_softmax.1} parent=5 // pred_region
      %s201 = ssub.s32 %s11, 1
      %p202 = scmp.lt.s32.totalorder %s16, 3
      %s203 = scalar_select %p202, %s16, 3
      %s204 = smul.addr %s203, 4
      %s205 = scalar_lea.vmem %s0, %s204
      %p206 = pneg %p37
      %p207 = pneg %p34
      %p208 = scmp.lt.s32.totalorder %s16, 3
      %s209 = scalar_select %p208, %s16, 3
      %s210 = smul.addr %s209, 64
      %s211 = smul.addr %s210, 8
      %s212 = scalar_lea.vmem %s1, %s211
      %p213 = pneg %p63
      %p214 = pneg %p60
      %p215 = pneg %p84
      %p216 = pneg %p81
      %p217 = pneg %p105
      %p218 = pneg %p102
      %p219 = pneg %p126
      %p220 = pneg %p123
      %p221 = pneg %p152
      %p222 = pneg %p149
      %p223 = scmp.lt.s32.totalorder %s16, 3
      %s224 = scalar_select %p223, %s16, 3
      %s225 = scalar_lea.vmem %s5, %s224
      %p226 = scmp.lt.s32.totalorder %s16, 3
      %s227 = scalar_select %p226, %s16, 3
      %s228 = smul.addr %s227, 4
      %s229 = scalar_lea.vmem %s0, %s228
      %p230 = scmp.lt.s32.totalorder %s16, 3
      %s231 = scalar_select %p230, %s16, 3
      %s232 = smul.addr %s231, 64
      %s233 = smul.addr %s232, 8
      %s234 = scalar_lea.vmem %s1, %s233
      %p235 = scmp.lt.s32.totalorder %s16, 3
      %s236 = scalar_select %p235, %s16, 3
      %s237 = scalar_lea.vmem %s5, %s236
      %v238 = vld [vmem:[%s229] sm:$0xf]
      %v239 = vld [vmem:[%s234] sm:$0xff]
      %v240 = vld [vmem:[%s234 + $0x8] sm:$0xff]
      %v241 = vld [vmem:[%s234 + $0x10] sm:$0xff]
      %v242 = vld [vmem:[%s234 + $0x18] sm:$0xff]
      %v243 = vld [vmem:[%s234 + $0x20] sm:$0xff]
      %v244 = vld [vmem:[%s234 + $0x28] sm:$0xff]
      %v245 = vld [vmem:[%s234 + $0x30] sm:$0xff]
      %v246 = vld [vmem:[%s234 + $0x38] sm:$0xff]
      %v247 = vld [vmem:[%s234 + $0x40] sm:$0xff]
      %v248 = vld [vmem:[%s234 + $0x48] sm:$0xff]
      %v249 = vld [vmem:[%s234 + $0x50] sm:$0xff]
      %v250 = vld [vmem:[%s234 + $0x58] sm:$0xff]
      %v251 = vld [vmem:[%s234 + $0x60] sm:$0xff]
      %v252 = vld [vmem:[%s234 + $0x68] sm:$0xff]
      %v253 = vld [vmem:[%s234 + $0x70] sm:$0xff]
      %v254 = vld [vmem:[%s234 + $0x78] sm:$0xff]
      %v255 = vld [vmem:[%s234 + $0x80] sm:$0xff]
      %v256 = vld [vmem:[%s234 + $0x88] sm:$0xff]
      %v257 = vld [vmem:[%s234 + $0x90] sm:$0xff]
      %v258 = vld [vmem:[%s234 + $0x98] sm:$0xff]
      %v259 = vld [vmem:[%s234 + $0xa0] sm:$0xff]
      %v260 = vld [vmem:[%s234 + $0xa8] sm:$0xff]
      %v261 = vld [vmem:[%s234 + $0xb0] sm:$0xff]
      %v262 = vld [vmem:[%s234 + $0xb8] sm:$0xff]
      %v263 = vld [vmem:[%s234 + $0xc0] sm:$0xff]
      %v264 = vld [vmem:[%s234 + $0xc8] sm:$0xff]
      %v265 = vld [vmem:[%s234 + $0xd0] sm:$0xff]
      %v266 = vld [vmem:[%s234 + $0xd8] sm:$0xff]
      %v267 = vld [vmem:[%s234 + $0xe0] sm:$0xff]
      %v268 = vld [vmem:[%s234 + $0xe8] sm:$0xff]
      %v269 = vld [vmem:[%s234 + $0xf0] sm:$0xff]
      %v270 = vld [vmem:[%s234 + $0xf8] sm:$0xff]
      %v271 = vld [vmem:[%s234 + $0x100] sm:$0xff]
      %v272 = vld [vmem:[%s234 + $0x108] sm:$0xff]
      %v273 = vld [vmem:[%s234 + $0x110] sm:$0xff]
      %v274 = vld [vmem:[%s234 + $0x118] sm:$0xff]
      %v275 = vld [vmem:[%s234 + $0x120] sm:$0xff]
      %v276 = vld [vmem:[%s234 + $0x128] sm:$0xff]
      %v277 = vld [vmem:[%s234 + $0x130] sm:$0xff]
      %v278 = vld [vmem:[%s234 + $0x138] sm:$0xff]
      %v279 = vld [vmem:[%s234 + $0x140] sm:$0xff]
      %v280 = vld [vmem:[%s234 + $0x148] sm:$0xff]
      %v281 = vld [vmem:[%s234 + $0x150] sm:$0xff]
      %v282 = vld [vmem:[%s234 + $0x158] sm:$0xff]
      %v283 = vld [vmem:[%s234 + $0x160] sm:$0xff]
      %v284 = vld [vmem:[%s234 + $0x168] sm:$0xff]
      %v285 = vld [vmem:[%s234 + $0x170] sm:$0xff]
      %v286 = vld [vmem:[%s234 + $0x178] sm:$0xff]
      %v287 = vld [vmem:[%s234 + $0x180] sm:$0xff]
      %v288 = vld [vmem:[%s234 + $0x188] sm:$0xff]
      %v289 = vld [vmem:[%s234 + $0x190] sm:$0xff]
      %v290 = vld [vmem:[%s234 + $0x198] sm:$0xff]
      %v291 = vld [vmem:[%s234 + $0x1a0] sm:$0xff]
      %v292 = vld [vmem:[%s234 + $0x1a8] sm:$0xff]
      %v293 = vld [vmem:[%s234 + $0x1b0] sm:$0xff]
      %v294 = vld [vmem:[%s234 + $0x1b8] sm:$0xff]
      %v295 = vld [vmem:[%s234 + $0x1c0] sm:$0xff]
      %v296 = vld [vmem:[%s234 + $0x1c8] sm:$0xff]
      %v297 = vld [vmem:[%s234 + $0x1d0] sm:$0xff]
      %v298 = vld [vmem:[%s234 + $0x1d8] sm:$0xff]
      %v299 = vld [vmem:[%s234 + $0x1e0] sm:$0xff]
      %v300 = vld [vmem:[%s234 + $0x1e8] sm:$0xff]
      %v301 = vld [vmem:[%s234 + $0x1f0] sm:$0xff]
      %v302 = vld [vmem:[%s234 + $0x1f8] sm:$0xff]
      %v303 = vld [vmem:[%s2] sm:$0xf]
      %v304 = vstv %s16
      %vm305 = vcmp.eq.s32.totalorder %v303, %v304
      %v306 = vsel %vm305, 1, 0
      %v307 = vcvt.s32.f32 %v306
      %v308 = vld [vmem:[%s3] sm:$0xff]
      %v309 = vld [vmem:[%s3 + $0x8] sm:$0xff]
      %v310 = vld [vmem:[%s3 + $0x10] sm:$0xff]
      %v311 = vld [vmem:[%s3 + $0x18] sm:$0xff]
      %v312 = vld [vmem:[%s3 + $0x20] sm:$0xff]
      %v313 = vld [vmem:[%s3 + $0x28] sm:$0xff]
      %v314 = vld [vmem:[%s3 + $0x30] sm:$0xff]
      %v315 = vld [vmem:[%s3 + $0x38] sm:$0xff]
      %v316 = vld [vmem:[%s3 + $0x40] sm:$0xff]
      %v317 = vld [vmem:[%s3 + $0x48] sm:$0xff]
      %v318 = vld [vmem:[%s3 + $0x50] sm:$0xff]
      %v319 = vld [vmem:[%s3 + $0x58] sm:$0xff]
      %v320 = vld [vmem:[%s3 + $0x60] sm:$0xff]
      %v321 = vld [vmem:[%s3 + $0x68] sm:$0xff]
      %v322 = vld [vmem:[%s3 + $0x70] sm:$0xff]
      %v323 = vld [vmem:[%s3 + $0x78] sm:$0xff]
      %v324 = vld [vmem:[%s3 + $0x80] sm:$0xff]
      %v325 = vld [vmem:[%s3 + $0x88] sm:$0xff]
      %v326 = vld [vmem:[%s3 + $0x90] sm:$0xff]
      %v327 = vld [vmem:[%s3 + $0x98] sm:$0xff]
      %v328 = vld [vmem:[%s3 + $0xa0] sm:$0xff]
      %v329 = vld [vmem:[%s3 + $0xa8] sm:$0xff]
      %v330 = vld [vmem:[%s3 + $0xb0] sm:$0xff]
      %v331 = vld [vmem:[%s3 + $0xb8] sm:$0xff]
      %v332 = vld [vmem:[%s3 + $0xc0] sm:$0xff]
      %v333 = vld [vmem:[%s3 + $0xc8] sm:$0xff]
      %v334 = vld [vmem:[%s3 + $0xd0] sm:$0xff]
      %v335 = vld [vmem:[%s3 + $0xd8] sm:$0xff]
      %v336 = vld [vmem:[%s3 + $0xe0] sm:$0xff]
      %v337 = vld [vmem:[%s3 + $0xe8] sm:$0xff]
      %v338 = vld [vmem:[%s3 + $0xf0] sm:$0xff]
      %v339 = vld [vmem:[%s3 + $0xf8] sm:$0xff]
      %v340 = vld [vmem:[%s3 + $0x100] sm:$0xff]
      %v341 = vld [vmem:[%s3 + $0x108] sm:$0xff]
      %v342 = vld [vmem:[%s3 + $0x110] sm:$0xff]
      %v343 = vld [vmem:[%s3 + $0x118] sm:$0xff]
      %v344 = vld [vmem:[%s3 + $0x120] sm:$0xff]
      %v345 = vld [vmem:[%s3 + $0x128] sm:$0xff]
      %v346 = vld [vmem:[%s3 + $0x130] sm:$0xff]
      %v347 = vld [vmem:[%s3 + $0x138] sm:$0xff]
      %v348 = vld [vmem:[%s3 + $0x140] sm:$0xff]
      %v349 = vld [vmem:[%s3 + $0x148] sm:$0xff]
      %v350 = vld [vmem:[%s3 + $0x150] sm:$0xff]
      %v351 = vld [vmem:[%s3 + $0x158] sm:$0xff]
      %v352 = vld [vmem:[%s3 + $0x160] sm:$0xff]
      %v353 = vld [vmem:[%s3 + $0x168] sm:$0xff]
      %v354 = vld [vmem:[%s3 + $0x170] sm:$0xff]
      %v355 = vld [vmem:[%s3 + $0x178] sm:$0xff]
      %v356 = vld [vmem:[%s3 + $0x180] sm:$0xff]
      %v357 = vld [vmem:[%s3 + $0x188] sm:$0xff]
      %v358 = vld [vmem:[%s3 + $0x190] sm:$0xff]
      %v359 = vld [vmem:[%s3 + $0x198] sm:$0xff]
      %v360 = vld [vmem:[%s3 + $0x1a0] sm:$0xff]
      %v361 = vld [vmem:[%s3 + $0x1a8] sm:$0xff]
      %v362 = vld [vmem:[%s3 + $0x1b0] sm:$0xff]
      %v363 = vld [vmem:[%s3 + $0x1b8] sm:$0xff]
      %v364 = vld [vmem:[%s3 + $0x1c0] sm:$0xff]
      %v365 = vld [vmem:[%s3 + $0x1c8] sm:$0xff]
      %v366 = vld [vmem:[%s3 + $0x1d0] sm:$0xff]
      %v367 = vld [vmem:[%s3 + $0x1d8] sm:$0xff]
      %v368 = vld [vmem:[%s3 + $0x1e0] sm:$0xff]
      %v369 = vld [vmem:[%s3 + $0x1e8] sm:$0xff]
      %v370 = vld [vmem:[%s3 + $0x1f0] sm:$0xff]
      %v371 = vld [vmem:[%s3 + $0x1f8] sm:$0xff]
      %vm372 = vcmp.eq.s32.totalorder %v308, %v304
      %vm373 = vcmp.eq.s32.totalorder %v309, %v304
      %vm374 = vcmp.eq.s32.totalorder %v310, %v304
      %vm375 = vcmp.eq.s32.totalorder %v311, %v304
      %vm376 = vcmp.eq.s32.totalorder %v312, %v304
      %vm377 = vcmp.eq.s32.totalorder %v313, %v304
      %vm378 = vcmp.eq.s32.totalorder %v314, %v304
      %vm379 = vcmp.eq.s32.totalorder %v315, %v304
      %vm380 = vcmp.eq.s32.totalorder %v316, %v304
      %vm381 = vcmp.eq.s32.totalorder %v317, %v304
      %vm382 = vcmp.eq.s32.totalorder %v318, %v304
      %vm383 = vcmp.eq.s32.totalorder %v319, %v304
      %vm384 = vcmp.eq.s32.totalorder %v320, %v304
      %vm385 = vcmp.eq.s32.totalorder %v321, %v304
      %vm386 = vcmp.eq.s32.totalorder %v322, %v304
      %vm387 = vcmp.eq.s32.totalorder %v323, %v304
      %vm388 = vcmp.eq.s32.totalorder %v324, %v304
      %vm389 = vcmp.eq.s32.totalorder %v325, %v304
      %vm390 = vcmp.eq.s32.totalorder %v326, %v304
      %vm391 = vcmp.eq.s32.totalorder %v327, %v304
      %vm392 = vcmp.eq.s32.totalorder %v328, %v304
      %vm393 = vcmp.eq.s32.totalorder %v329, %v304
      %vm394 = vcmp.eq.s32.totalorder %v330, %v304
      %vm395 = vcmp.eq.s32.totalorder %v331, %v304
      %vm396 = vcmp.eq.s32.totalorder %v332, %v304
      %vm397 = vcmp.eq.s32.totalorder %v333, %v304
      %vm398 = vcmp.eq.s32.totalorder %v334, %v304
      %vm399 = vcmp.eq.s32.totalorder %v335, %v304
      %vm400 = vcmp.eq.s32.totalorder %v336, %v304
      %vm401 = vcmp.eq.s32.totalorder %v337, %v304
      %vm402 = vcmp.eq.s32.totalorder %v338, %v304
      %vm403 = vcmp.eq.s32.totalorder %v339, %v304
      %vm404 = vcmp.eq.s32.totalorder %v340, %v304
      %vm405 = vcmp.eq.s32.totalorder %v341, %v304
      %vm406 = vcmp.eq.s32.totalorder %v342, %v304
      %vm407 = vcmp.eq.s32.totalorder %v343, %v304
      %vm408 = vcmp.eq.s32.totalorder %v344, %v304
      %vm409 = vcmp.eq.s32.totalorder %v345, %v304
      %vm410 = vcmp.eq.s32.totalorder %v346, %v304
      %vm411 = vcmp.eq.s32.totalorder %v347, %v304
      %vm412 = vcmp.eq.s32.totalorder %v348, %v304
      %vm413 = vcmp.eq.s32.totalorder %v349, %v304
      %vm414 = vcmp.eq.s32.totalorder %v350, %v304
      %vm415 = vcmp.eq.s32.totalorder %v351, %v304
      %vm416 = vcmp.eq.s32.totalorder %v352, %v304
      %vm417 = vcmp.eq.s32.totalorder %v353, %v304
      %vm418 = vcmp.eq.s32.totalorder %v354, %v304
      %vm419 = vcmp.eq.s32.totalorder %v355, %v304
      %vm420 = vcmp.eq.s32.totalorder %v356, %v304
      %vm421 = vcmp.eq.s32.totalorder %v357, %v304
      %vm422 = vcmp.eq.s32.totalorder %v358, %v304
      %vm423 = vcmp.eq.s32.totalorder %v359, %v304
      %vm424 = vcmp.eq.s32.totalorder %v360, %v304
      %vm425 = vcmp.eq.s32.totalorder %v361, %v304
      %vm426 = vcmp.eq.s32.totalorder %v362, %v304
      %vm427 = vcmp.eq.s32.totalorder %v363, %v304
      %vm428 = vcmp.eq.s32.totalorder %v364, %v304
      %vm429 = vcmp.eq.s32.totalorder %v365, %v304
      %vm430 = vcmp.eq.s32.totalorder %v366, %v304
      %vm431 = vcmp.eq.s32.totalorder %v367, %v304
      %vm432 = vcmp.eq.s32.totalorder %v368, %v304
      %vm433 = vcmp.eq.s32.totalorder %v369, %v304
      %vm434 = vcmp.eq.s32.totalorder %v370, %v304
      %vm435 = vcmp.eq.s32.totalorder %v371, %v304
      %v436 = vsel %vm372, 1, 0
      %v437 = vsel %vm373, 1, 0
      %v438 = vsel %vm374, 1, 0
      %v439 = vsel %vm375, 1, 0
      %v440 = vsel %vm376, 1, 0
      %v441 = vsel %vm377, 1, 0
      %v442 = vsel %vm378, 1, 0
      %v443 = vsel %vm379, 1, 0
      %v444 = vsel %vm380, 1, 0
      %v445 = vsel %vm381, 1, 0
      %v446 = vsel %vm382, 1, 0
      %v447 = vsel %vm383, 1, 0
      %v448 = vsel %vm384, 1, 0
      %v449 = vsel %vm385, 1, 0
      %v450 = vsel %vm386, 1, 0
      %v451 = vsel %vm387, 1, 0
      %v452 = vsel %vm388, 1, 0
      %v453 = vsel %vm389, 1, 0
      %v454 = vsel %vm390, 1, 0
      %v455 = vsel %vm391, 1, 0
      %v456 = vsel %vm392, 1, 0
      %v457 = vsel %vm393, 1, 0
      %v458 = vsel %vm394, 1, 0
      %v459 = vsel %vm395, 1, 0
      %v460 = vsel %vm396, 1, 0
      %v461 = vsel %vm397, 1, 0
      %v462 = vsel %vm398, 1, 0
      %v463 = vsel %vm399, 1, 0
      %v464 = vsel %vm400, 1, 0
      %v465 = vsel %vm401, 1, 0
      %v466 = vsel %vm402, 1, 0
      %v467 = vsel %vm403, 1, 0
      %v468 = vsel %vm404, 1, 0
      %v469 = vsel %vm405, 1, 0
      %v470 = vsel %vm406, 1, 0
      %v471 = vsel %vm407, 1, 0
      %v472 = vsel %vm408, 1, 0
      %v473 = vsel %vm409, 1, 0
      %v474 = vsel %vm410, 1, 0
      %v475 = vsel %vm411, 1, 0
      %v476 = vsel %vm412, 1, 0
      %v477 = vsel %vm413, 1, 0
      %v478 = vsel %vm414, 1, 0
      %v479 = vsel %vm415, 1, 0
      %v480 = vsel %vm416, 1, 0
      %v481 = vsel %vm417, 1, 0
      %v482 = vsel %vm418, 1, 0
      %v483 = vsel %vm419, 1, 0
      %v484 = vsel %vm420, 1, 0
      %v485 = vsel %vm421, 1, 0
      %v486 = vsel %vm422, 1, 0
      %v487 = vsel %vm423, 1, 0
      %v488 = vsel %vm424, 1, 0
      %v489 = vsel %vm425, 1, 0
      %v490 = vsel %vm426, 1, 0
      %v491 = vsel %vm427, 1, 0
      %v492 = vsel %vm428, 1, 0
      %v493 = vsel %vm429, 1, 0
      %v494 = vsel %vm430, 1, 0
      %v495 = vsel %vm431, 1, 0
      %v496 = vsel %vm432, 1, 0
      %v497 = vsel %vm433, 1, 0
      %v498 = vsel %vm434, 1, 0
      %v499 = vsel %vm435, 1, 0
      %v500 = vcvt.s32.f32 %v436
      %v501 = vcvt.s32.f32 %v437
      %v502 = vcvt.s32.f32 %v438
      %v503 = vcvt.s32.f32 %v439
      %v504 = vcvt.s32.f32 %v440
      %v505 = vcvt.s32.f32 %v441
      %v506 = vcvt.s32.f32 %v442
      %v507 = vcvt.s32.f32 %v443
      %v508 = vcvt.s32.f32 %v444
      %v509 = vcvt.s32.f32 %v445
      %v510 = vcvt.s32.f32 %v446
      %v511 = vcvt.s32.f32 %v447
      %v512 = vcvt.s32.f32 %v448
      %v513 = vcvt.s32.f32 %v449
      %v514 = vcvt.s32.f32 %v450
      %v515 = vcvt.s32.f32 %v451
      %v516 = vcvt.s32.f32 %v452
      %v517 = vcvt.s32.f32 %v453
      %v518 = vcvt.s32.f32 %v454
      %v519 = vcvt.s32.f32 %v455
      %v520 = vcvt.s32.f32 %v456
      %v521 = vcvt.s32.f32 %v457
      %v522 = vcvt.s32.f32 %v458
      %v523 = vcvt.s32.f32 %v459
      %v524 = vcvt.s32.f32 %v460
      %v525 = vcvt.s32.f32 %v461
      %v526 = vcvt.s32.f32 %v462
      %v527 = vcvt.s32.f32 %v463
      %v528 = vcvt.s32.f32 %v464
      %v529 = vcvt.s32.f32 %v465
      %v530 = vcvt.s32.f32 %v466
      %v531 = vcvt.s32.f32 %v467
      %v532 = vcvt.s32.f32 %v468
      %v533 = vcvt.s32.f32 %v469
      %v534 = vcvt.s32.f32 %v470
      %v535 = vcvt.s32.f32 %v471
      %v536 = vcvt.s32.f32 %v472
      %v537 = vcvt.s32.f32 %v473
      %v538 = vcvt.s32.f32 %v474
      %v539 = vcvt.s32.f32 %v475
      %v540 = vcvt.s32.f32 %v476
      %v541 = vcvt.s32.f32 %v477
      %v542 = vcvt.s32.f32 %v478
      %v543 = vcvt.s32.f32 %v479
      %v544 = vcvt.s32.f32 %v480
      %v545 = vcvt.s32.f32 %v481
      %v546 = vcvt.s32.f32 %v482
      %v547 = vcvt.s32.f32 %v483
      %v548 = vcvt.s32.f32 %v484
      %v549 = vcvt.s32.f32 %v485
      %v550 = vcvt.s32.f32 %v486
      %v551 = vcvt.s32.f32 %v487
      %v552 = vcvt.s32.f32 %v488
      %v553 = vcvt.s32.f32 %v489
      %v554 = vcvt.s32.f32 %v490
      %v555 = vcvt.s32.f32 %v491
      %v556 = vcvt.s32.f32 %v492
      %v557 = vcvt.s32.f32 %v493
      %v558 = vcvt.s32.f32 %v494
      %v559 = vcvt.s32.f32 %v495
      %v560 = vcvt.s32.f32 %v496
      %v561 = vcvt.s32.f32 %v497
      %v562 = vcvt.s32.f32 %v498
      %v563 = vcvt.s32.f32 %v499
      %v564 = vsub.f32 %v307, %v238
      %v565 = vand.u32 2147483647, %v564
      %v566 = vsub.f32 %v500, %v239
      %v567 = vsub.f32 %v501, %v240
      %v568 = vsub.f32 %v502, %v241
      %v569 = vsub.f32 %v503, %v242
      %v570 = vsub.f32 %v504, %v243
      %v571 = vsub.f32 %v505, %v244
      %v572 = vsub.f32 %v506, %v245
      %v573 = vsub.f32 %v507, %v246
      %v574 = vsub.f32 %v508, %v247
      %v575 = vsub.f32 %v509, %v248
      %v576 = vsub.f32 %v510, %v249
      %v577 = vsub.f32 %v511, %v250
      %v578 = vsub.f32 %v512, %v251
      %v579 = vsub.f32 %v513, %v252
      %v580 = vsub.f32 %v514, %v253
      %v581 = vsub.f32 %v515, %v254
      %v582 = vsub.f32 %v516, %v255
      %v583 = vsub.f32 %v517, %v256
      %v584 = vsub.f32 %v518, %v257
      %v585 = vsub.f32 %v519, %v258
      %v586 = vsub.f32 %v520, %v259
      %v587 = vsub.f32 %v521, %v260
      %v588 = vsub.f32 %v522, %v261
      %v589 = vsub.f32 %v523, %v262
      %v590 = vsub.f32 %v524, %v263
      %v591 = vsub.f32 %v525, %v264
      %v592 = vsub.f32 %v526, %v265
      %v593 = vsub.f32 %v527, %v266
      %v594 = vsub.f32 %v528, %v267
      %v595 = vsub.f32 %v529, %v268
      %v596 = vsub.f32 %v530, %v269
      %v597 = vsub.f32 %v531, %v270
      %v598 = vsub.f32 %v532, %v271
      %v599 = vsub.f32 %v533, %v272
      %v600 = vsub.f32 %v534, %v273
      %v601 = vsub.f32 %v535, %v274
      %v602 = vsub.f32 %v536, %v275
      %v603 = vsub.f32 %v537, %v276
      %v604 = vsub.f32 %v538, %v277
      %v605 = vsub.f32 %v539, %v278
      %v606 = vsub.f32 %v540, %v279
      %v607 = vsub.f32 %v541, %v280
      %v608 = vsub.f32 %v542, %v281
      %v609 = vsub.f32 %v543, %v282
      %v610 = vsub.f32 %v544, %v283
      %v611 = vsub.f32 %v545, %v284
      %v612 = vsub.f32 %v546, %v285
      %v613 = vsub.f32 %v547, %v286
      %v614 = vsub.f32 %v548, %v287
      %v615 = vsub.f32 %v549, %v288
      %v616 = vsub.f32 %v550, %v289
      %v617 = vsub.f32 %v551, %v290
      %v618 = vsub.f32 %v552, %v291
      %v619 = vsub.f32 %v553, %v292
      %v620 = vsub.f32 %v554, %v293
      %v621 = vsub.f32 %v555, %v294
      %v622 = vsub.f32 %v556, %v295
      %v623 = vsub.f32 %v557, %v296
      %v624 = vsub.f32 %v558, %v297
      %v625 = vsub.f32 %v559, %v298
      %v626 = vsub.f32 %v560, %v299
      %v627 = vsub.f32 %v561, %v300
      %v628 = vsub.f32 %v562, %v301
      %v629 = vsub.f32 %v563, %v302
      %v630 = vand.u32 2147483647, %v566
      %v631 = vand.u32 2147483647, %v567
      %v632 = vand.u32 2147483647, %v568
      %v633 = vand.u32 2147483647, %v569
      %v634 = vand.u32 2147483647, %v570
      %v635 = vand.u32 2147483647, %v571
      %v636 = vand.u32 2147483647, %v572
      %v637 = vand.u32 2147483647, %v573
      %v638 = vand.u32 2147483647, %v574
      %v639 = vand.u32 2147483647, %v575
      %v640 = vand.u32 2147483647, %v576
      %v641 = vand.u32 2147483647, %v577
      %v642 = vand.u32 2147483647, %v578
      %v643 = vand.u32 2147483647, %v579
      %v644 = vand.u32 2147483647, %v580
      %v645 = vand.u32 2147483647, %v581
      %v646 = vand.u32 2147483647, %v582
      %v647 = vand.u32 2147483647, %v583
      %v648 = vand.u32 2147483647, %v584
      %v649 = vand.u32 2147483647, %v585
      %v650 = vand.u32 2147483647, %v586
      %v651 = vand.u32 2147483647, %v587
      %v652 = vand.u32 2147483647, %v588
      %v653 = vand.u32 2147483647, %v589
      %v654 = vand.u32 2147483647, %v590
      %v655 = vand.u32 2147483647, %v591
      %v656 = vand.u32 2147483647, %v592
      %v657 = vand.u32 2147483647, %v593
      %v658 = vand.u32 2147483647, %v594
      %v659 = vand.u32 2147483647, %v595
      %v660 = vand.u32 2147483647, %v596
      %v661 = vand.u32 2147483647, %v597
      %v662 = vand.u32 2147483647, %v598
      %v663 = vand.u32 2147483647, %v599
      %v664 = vand.u32 2147483647, %v600
      %v665 = vand.u32 2147483647, %v601
      %v666 = vand.u32 2147483647, %v602
      %v667 = vand.u32 2147483647, %v603
      %v668 = vand.u32 2147483647, %v604
      %v669 = vand.u32 2147483647, %v605
      %v670 = vand.u32 2147483647, %v606
      %v671 = vand.u32 2147483647, %v607
      %v672 = vand.u32 2147483647, %v608
      %v673 = vand.u32 2147483647, %v609
      %v674 = vand.u32 2147483647, %v610
      %v675 = vand.u32 2147483647, %v611
      %v676 = vand.u32 2147483647, %v612
      %v677 = vand.u32 2147483647, %v613
      %v678 = vand.u32 2147483647, %v614
      %v679 = vand.u32 2147483647, %v615
      %v680 = vand.u32 2147483647, %v616
      %v681 = vand.u32 2147483647, %v617
      %v682 = vand.u32 2147483647, %v618
      %v683 = vand.u32 2147483647, %v619
      %v684 = vand.u32 2147483647, %v620
      %v685 = vand.u32 2147483647, %v621
      %v686 = vand.u32 2147483647, %v622
      %v687 = vand.u32 2147483647, %v623
      %v688 = vand.u32 2147483647, %v624
      %v689 = vand.u32 2147483647, %v625
      %v690 = vand.u32 2147483647, %v626
      %v691 = vand.u32 2147483647, %v627
      %v692 = vand.u32 2147483647, %v628
      %v693 = vand.u32 2147483647, %v629
      %v695 = vlaneseq
      %v696 = vshrl.u32 %v695, 7
      %v697 = vsub.s32 0, %v696
      %v698 = vrot.slane %v565, %v697
      %v699 = vlaneseq
      %v700 = vshrl.u32 %v699, 7
      %v701 = vsub.s32 1, %v700
      %v702 = vrot.slane %v565, %v701
      %v703 = vlaneseq
      %v704 = vshrl.u32 %v703, 7
      %v705 = vsub.s32 2, %v704
      %v706 = vrot.slane %v565, %v705
      %v707 = vlaneseq
      %v708 = vshrl.u32 %v707, 7
      %v709 = vsub.s32 3, %v708
      %v710 = vrot.slane %v565, %v709
      %716 = vset.pattern.permute.xlu0 0
      %717 = vperm.xlu0 %716, %v630
      %v718 = vpop.permute.xlu0 %717
      %721 = vset.pattern.permute.xlu0 0
      %722 = vperm.xlu0 %721, %v631
      %v723 = vpop.permute.xlu0 %722
      %726 = vset.pattern.permute.xlu0 0
      %727 = vperm.xlu0 %726, %v632
      %v728 = vpop.permute.xlu0 %727
      %731 = vset.pattern.permute.xlu0 0
      %732 = vperm.xlu0 %731, %v633
      %v733 = vpop.permute.xlu0 %732
      %736 = vset.pattern.permute.xlu0 0
      %737 = vperm.xlu0 %736, %v634
      %v738 = vpop.permute.xlu0 %737
      %741 = vset.pattern.permute.xlu0 0
      %742 = vperm.xlu0 %741, %v635
      %v743 = vpop.permute.xlu0 %742
      %746 = vset.pattern.permute.xlu0 0
      %747 = vperm.xlu0 %746, %v636
      %v748 = vpop.permute.xlu0 %747
      %751 = vset.pattern.permute.xlu0 0
      %752 = vperm.xlu0 %751, %v637
      %v753 = vpop.permute.xlu0 %752
      %756 = vset.pattern.permute.xlu0 0
      %757 = vperm.xlu0 %756, %v638
      %v758 = vpop.permute.xlu0 %757
      %761 = vset.pattern.permute.xlu0 0
      %762 = vperm.xlu0 %761, %v639
      %v763 = vpop.permute.xlu0 %762
      %766 = vset.pattern.permute.xlu0 0
      %767 = vperm.xlu0 %766, %v640
      %v768 = vpop.permute.xlu0 %767
      %771 = vset.pattern.permute.xlu0 0
      %772 = vperm.xlu0 %771, %v641
      %v773 = vpop.permute.xlu0 %772
      %776 = vset.pattern.permute.xlu0 0
      %777 = vperm.xlu0 %776, %v642
      %v778 = vpop.permute.xlu0 %777
      %781 = vset.pattern.permute.xlu0 0
      %782 = vperm.xlu0 %781, %v643
      %v783 = vpop.permute.xlu0 %782
      %786 = vset.pattern.permute.xlu0 0
      %787 = vperm.xlu0 %786, %v644
      %v788 = vpop.permute.xlu0 %787
      %791 = vset.pattern.permute.xlu0 0
      %792 = vperm.xlu0 %791, %v645
      %v793 = vpop.permute.xlu0 %792
      %796 = vset.pattern.permute.xlu0 0
      %797 = vperm.xlu0 %796, %v646
      %v798 = vpop.permute.xlu0 %797
      %801 = vset.pattern.permute.xlu0 0
      %802 = vperm.xlu0 %801, %v647
      %v803 = vpop.permute.xlu0 %802
      %806 = vset.pattern.permute.xlu0 0
      %807 = vperm.xlu0 %806, %v648
      %v808 = vpop.permute.xlu0 %807
      %811 = vset.pattern.permute.xlu0 0
      %812 = vperm.xlu0 %811, %v649
      %v813 = vpop.permute.xlu0 %812
      %816 = vset.pattern.permute.xlu0 0
      %817 = vperm.xlu0 %816, %v650
      %v818 = vpop.permute.xlu0 %817
      %821 = vset.pattern.permute.xlu0 0
      %822 = vperm.xlu0 %821, %v651
      %v823 = vpop.permute.xlu0 %822
      %826 = vset.pattern.permute.xlu0 0
      %827 = vperm.xlu0 %826, %v652
      %v828 = vpop.permute.xlu0 %827
      %831 = vset.pattern.permute.xlu0 0
      %832 = vperm.xlu0 %831, %v653
      %v833 = vpop.permute.xlu0 %832
      %836 = vset.pattern.permute.xlu0 0
      %837 = vperm.xlu0 %836, %v654
      %v838 = vpop.permute.xlu0 %837
      %841 = vset.pattern.permute.xlu0 0
      %842 = vperm.xlu0 %841, %v655
      %v843 = vpop.permute.xlu0 %842
      %846 = vset.pattern.permute.xlu0 0
      %847 = vperm.xlu0 %846, %v656
      %v848 = vpop.permute.xlu0 %847
      %851 = vset.pattern.permute.xlu0 0
      %852 = vperm.xlu0 %851, %v657
      %v853 = vpop.permute.xlu0 %852
      %856 = vset.pattern.permute.xlu0 0
      %857 = vperm.xlu0 %856, %v658
      %v858 = vpop.permute.xlu0 %857
      %861 = vset.pattern.permute.xlu0 0
      %862 = vperm.xlu0 %861, %v659
      %v863 = vpop.permute.xlu0 %862
      %866 = vset.pattern.permute.xlu0 0
      %867 = vperm.xlu0 %866, %v660
      %v868 = vpop.permute.xlu0 %867
      %871 = vset.pattern.permute.xlu0 0
      %872 = vperm.xlu0 %871, %v661
      %v873 = vpop.permute.xlu0 %872
      %876 = vset.pattern.permute.xlu0 0
      %877 = vperm.xlu0 %876, %v662
      %v878 = vpop.permute.xlu0 %877
      %881 = vset.pattern.permute.xlu0 0
      %882 = vperm.xlu0 %881, %v663
      %v883 = vpop.permute.xlu0 %882
      %886 = vset.pattern.permute.xlu0 0
      %887 = vperm.xlu0 %886, %v664
      %v888 = vpop.permute.xlu0 %887
      %891 = vset.pattern.permute.xlu0 0
      %892 = vperm.xlu0 %891, %v665
      %v893 = vpop.permute.xlu0 %892
      %896 = vset.pattern.permute.xlu0 0
      %897 = vperm.xlu0 %896, %v666
      %v898 = vpop.permute.xlu0 %897
      %901 = vset.pattern.permute.xlu0 0
      %902 = vperm.xlu0 %901, %v667
      %v903 = vpop.permute.xlu0 %902
      %906 = vset.pattern.permute.xlu0 0
      %907 = vperm.xlu0 %906, %v668
      %v908 = vpop.permute.xlu0 %907
      %911 = vset.pattern.permute.xlu0 0
      %912 = vperm.xlu0 %911, %v669
      %v913 = vpop.permute.xlu0 %912
      %916 = vset.pattern.permute.xlu0 0
      %917 = vperm.xlu0 %916, %v670
      %v918 = vpop.permute.xlu0 %917
      %921 = vset.pattern.permute.xlu0 0
      %922 = vperm.xlu0 %921, %v671
      %v923 = vpop.permute.xlu0 %922
      %926 = vset.pattern.permute.xlu0 0
      %927 = vperm.xlu0 %926, %v672
      %v928 = vpop.permute.xlu0 %927
      %931 = vset.pattern.permute.xlu0 0
      %932 = vperm.xlu0 %931, %v673
      %v933 = vpop.permute.xlu0 %932
      %936 = vset.pattern.permute.xlu0 0
      %937 = vperm.xlu0 %936, %v674
      %v938 = vpop.permute.xlu0 %937
      %941 = vset.pattern.permute.xlu0 0
      %942 = vperm.xlu0 %941, %v675
      %v943 = vpop.permute.xlu0 %942
      %946 = vset.pattern.permute.xlu0 0
      %947 = vperm.xlu0 %946, %v676
      %v948 = vpop.permute.xlu0 %947
      %951 = vset.pattern.permute.xlu0 0
      %952 = vperm.xlu0 %951, %v677
      %v953 = vpop.permute.xlu0 %952
      %956 = vset.pattern.permute.xlu0 0
      %957 = vperm.xlu0 %956, %v678
      %v958 = vpop.permute.xlu0 %957
      %961 = vset.pattern.permute.xlu0 0
      %962 = vperm.xlu0 %961, %v679
      %v963 = vpop.permute.xlu0 %962
      %966 = vset.pattern.permute.xlu0 0
      %967 = vperm.xlu0 %966, %v680
      %v968 = vpop.permute.xlu0 %967
      %971 = vset.pattern.permute.xlu0 0
      %972 = vperm.xlu0 %971, %v681
      %v973 = vpop.permute.xlu0 %972
      %976 = vset.pattern.permute.xlu0 0
      %977 = vperm.xlu0 %976, %v682
      %v978 = vpop.permute.xlu0 %977
      %981 = vset.pattern.permute.xlu0 0
      %982 = vperm.xlu0 %981, %v683
      %v983 = vpop.permute.xlu0 %982
      %986 = vset.pattern.permute.xlu0 0
      %987 = vperm.xlu0 %986, %v684
      %v988 = vpop.permute.xlu0 %987
      %991 = vset.pattern.permute.xlu0 0
      %992 = vperm.xlu0 %991, %v685
      %v993 = vpop.permute.xlu0 %992
      %996 = vset.pattern.permute.xlu0 0
      %997 = vperm.xlu0 %996, %v686
      %v998 = vpop.permute.xlu0 %997
      %1001 = vset.pattern.permute.xlu0 0
      %1002 = vperm.xlu0 %1001, %v687
      %v1003 = vpop.permute.xlu0 %1002
      %1006 = vset.pattern.permute.xlu0 0
      %1007 = vperm.xlu0 %1006, %v688
      %v1008 = vpop.permute.xlu0 %1007
      %1011 = vset.pattern.permute.xlu0 0
      %1012 = vperm.xlu0 %1011, %v689
      %v1013 = vpop.permute.xlu0 %1012
      %1016 = vset.pattern.permute.xlu0 0
      %1017 = vperm.xlu0 %1016, %v690
      %v1018 = vpop.permute.xlu0 %1017
      %1021 = vset.pattern.permute.xlu0 0
      %1022 = vperm.xlu0 %1021, %v691
      %v1023 = vpop.permute.xlu0 %1022
      %1026 = vset.pattern.permute.xlu0 0
      %1027 = vperm.xlu0 %1026, %v692
      %v1028 = vpop.permute.xlu0 %1027
      %1031 = vset.pattern.permute.xlu0 0
      %1032 = vperm.xlu0 %1031, %v693
      %v1033 = vpop.permute.xlu0 %1032
      %vm1035 = vcmp.gt.f32.partialorder %v698, %v718
      %vm1036 = vcmp.gt.f32.partialorder %v702, %v718
      %vm1037 = vcmp.gt.f32.partialorder %v706, %v718
      %vm1038 = vcmp.gt.f32.partialorder %v710, %v718
      %vm1039 = vcmp.gt.f32.partialorder %v698, %v723
      %vm1040 = vcmp.gt.f32.partialorder %v702, %v723
      %vm1041 = vcmp.gt.f32.partialorder %v706, %v723
      %vm1042 = vcmp.gt.f32.partialorder %v710, %v723
      %vm1043 = vcmp.gt.f32.partialorder %v698, %v728
      %vm1044 = vcmp.gt.f32.partialorder %v702, %v728
      %vm1045 = vcmp.gt.f32.partialorder %v706, %v728
      %vm1046 = vcmp.gt.f32.partialorder %v710, %v728
      %vm1047 = vcmp.gt.f32.partialorder %v698, %v733
      %vm1048 = vcmp.gt.f32.partialorder %v702, %v733
      %vm1049 = vcmp.gt.f32.partialorder %v706, %v733
      %vm1050 = vcmp.gt.f32.partialorder %v710, %v733
      %vm1051 = vcmp.gt.f32.partialorder %v698, %v738
      %vm1052 = vcmp.gt.f32.partialorder %v702, %v738
      %vm1053 = vcmp.gt.f32.partialorder %v706, %v738
      %vm1054 = vcmp.gt.f32.partialorder %v710, %v738
      %vm1055 = vcmp.gt.f32.partialorder %v698, %v743
      %vm1056 = vcmp.gt.f32.partialorder %v702, %v743
      %vm1057 = vcmp.gt.f32.partialorder %v706, %v743
      %vm1058 = vcmp.gt.f32.partialorder %v710, %v743
      %vm1059 = vcmp.gt.f32.partialorder %v698, %v748
      %vm1060 = vcmp.gt.f32.partialorder %v702, %v748
      %vm1061 = vcmp.gt.f32.partialorder %v706, %v748
      %vm1062 = vcmp.gt.f32.partialorder %v710, %v748
      %vm1063 = vcmp.gt.f32.partialorder %v698, %v753
      %vm1064 = vcmp.gt.f32.partialorder %v702, %v753
      %vm1065 = vcmp.gt.f32.partialorder %v706, %v753
      %vm1066 = vcmp.gt.f32.partialorder %v710, %v753
      %vm1067 = vcmp.gt.f32.partialorder %v698, %v758
      %vm1068 = vcmp.gt.f32.partialorder %v702, %v758
      %vm1069 = vcmp.gt.f32.partialorder %v706, %v758
      %vm1070 = vcmp.gt.f32.partialorder %v710, %v758
      %vm1071 = vcmp.gt.f32.partialorder %v698, %v763
      %vm1072 = vcmp.gt.f32.partialorder %v702, %v763
      %vm1073 = vcmp.gt.f32.partialorder %v706, %v763
      %vm1074 = vcmp.gt.f32.partialorder %v710, %v763
      %vm1075 = vcmp.gt.f32.partialorder %v698, %v768
      %vm1076 = vcmp.gt.f32.partialorder %v702, %v768
      %vm1077 = vcmp.gt.f32.partialorder %v706, %v768
      %vm1078 = vcmp.gt.f32.partialorder %v710, %v768
      %vm1079 = vcmp.gt.f32.partialorder %v698, %v773
      %vm1080 = vcmp.gt.f32.partialorder %v702, %v773
      %vm1081 = vcmp.gt.f32.partialorder %v706, %v773
      %vm1082 = vcmp.gt.f32.partialorder %v710, %v773
      %vm1083 = vcmp.gt.f32.partialorder %v698, %v778
      %vm1084 = vcmp.gt.f32.partialorder %v702, %v778
      %vm1085 = vcmp.gt.f32.partialorder %v706, %v778
      %vm1086 = vcmp.gt.f32.partialorder %v710, %v778
      %vm1087 = vcmp.gt.f32.partialorder %v698, %v783
      %vm1088 = vcmp.gt.f32.partialorder %v702, %v783
      %vm1089 = vcmp.gt.f32.partialorder %v706, %v783
      %vm1090 = vcmp.gt.f32.partialorder %v710, %v783
      %vm1091 = vcmp.gt.f32.partialorder %v698, %v788
      %vm1092 = vcmp.gt.f32.partialorder %v702, %v788
      %vm1093 = vcmp.gt.f32.partialorder %v706, %v788
      %vm1094 = vcmp.gt.f32.partialorder %v710, %v788
      %vm1095 = vcmp.gt.f32.partialorder %v698, %v793
      %vm1096 = vcmp.gt.f32.partialorder %v702, %v793
      %vm1097 = vcmp.gt.f32.partialorder %v706, %v793
      %vm1098 = vcmp.gt.f32.partialorder %v710, %v793
      %vm1099 = vcmp.gt.f32.partialorder %v698, %v798
      %vm1100 = vcmp.gt.f32.partialorder %v702, %v798
      %vm1101 = vcmp.gt.f32.partialorder %v706, %v798
      %vm1102 = vcmp.gt.f32.partialorder %v710, %v798
      %vm1103 = vcmp.gt.f32.partialorder %v698, %v803
      %vm1104 = vcmp.gt.f32.partialorder %v702, %v803
      %vm1105 = vcmp.gt.f32.partialorder %v706, %v803
      %vm1106 = vcmp.gt.f32.partialorder %v710, %v803
      %vm1107 = vcmp.gt.f32.partialorder %v698, %v808
      %vm1108 = vcmp.gt.f32.partialorder %v702, %v808
      %vm1109 = vcmp.gt.f32.partialorder %v706, %v808
      %vm1110 = vcmp.gt.f32.partialorder %v710, %v808
      %vm1111 = vcmp.gt.f32.partialorder %v698, %v813
      %vm1112 = vcmp.gt.f32.partialorder %v702, %v813
      %vm1113 = vcmp.gt.f32.partialorder %v706, %v813
      %vm1114 = vcmp.gt.f32.partialorder %v710, %v813
      %vm1115 = vcmp.gt.f32.partialorder %v698, %v818
      %vm1116 = vcmp.gt.f32.partialorder %v702, %v818
      %vm1117 = vcmp.gt.f32.partialorder %v706, %v818
      %vm1118 = vcmp.gt.f32.partialorder %v710, %v818
      %vm1119 = vcmp.gt.f32.partialorder %v698, %v823
      %vm1120 = vcmp.gt.f32.partialorder %v702, %v823
      %vm1121 = vcmp.gt.f32.partialorder %v706, %v823
      %vm1122 = vcmp.gt.f32.partialorder %v710, %v823
      %vm1123 = vcmp.gt.f32.partialorder %v698, %v828
      %vm1124 = vcmp.gt.f32.partialorder %v702, %v828
      %vm1125 = vcmp.gt.f32.partialorder %v706, %v828
      %vm1126 = vcmp.gt.f32.partialorder %v710, %v828
      %vm1127 = vcmp.gt.f32.partialorder %v698, %v833
      %vm1128 = vcmp.gt.f32.partialorder %v702, %v833
      %vm1129 = vcmp.gt.f32.partialorder %v706, %v833
      %vm1130 = vcmp.gt.f32.partialorder %v710, %v833
      %vm1131 = vcmp.gt.f32.partialorder %v698, %v838
      %vm1132 = vcmp.gt.f32.partialorder %v702, %v838
      %vm1133 = vcmp.gt.f32.partialorder %v706, %v838
      %vm1134 = vcmp.gt.f32.partialorder %v710, %v838
      %vm1135 = vcmp.gt.f32.partialorder %v698, %v843
      %vm1136 = vcmp.gt.f32.partialorder %v702, %v843
      %vm1137 = vcmp.gt.f32.partialorder %v706, %v843
      %vm1138 = vcmp.gt.f32.partialorder %v710, %v843
      %vm1139 = vcmp.gt.f32.partialorder %v698, %v848
      %vm1140 = vcmp.gt.f32.partialorder %v702, %v848
      %vm1141 = vcmp.gt.f32.partialorder %v706, %v848
      %vm1142 = vcmp.gt.f32.partialorder %v710, %v848
      %vm1143 = vcmp.gt.f32.partialorder %v698, %v853
      %vm1144 = vcmp.gt.f32.partialorder %v702, %v853
      %vm1145 = vcmp.gt.f32.partialorder %v706, %v853
      %vm1146 = vcmp.gt.f32.partialorder %v710, %v853
      %vm1147 = vcmp.gt.f32.partialorder %v698, %v858
      %vm1148 = vcmp.gt.f32.partialorder %v702, %v858
      %vm1149 = vcmp.gt.f32.partialorder %v706, %v858
      %vm1150 = vcmp.gt.f32.partialorder %v710, %v858
      %vm1151 = vcmp.gt.f32.partialorder %v698, %v863
      %vm1152 = vcmp.gt.f32.partialorder %v702, %v863
      %vm1153 = vcmp.gt.f32.partialorder %v706, %v863
      %vm1154 = vcmp.gt.f32.partialorder %v710, %v863
      %vm1155 = vcmp.gt.f32.partialorder %v698, %v868
      %vm1156 = vcmp.gt.f32.partialorder %v702, %v868
      %vm1157 = vcmp.gt.f32.partialorder %v706, %v868
      %vm1158 = vcmp.gt.f32.partialorder %v710, %v868
      %vm1159 = vcmp.gt.f32.partialorder %v698, %v873
      %vm1160 = vcmp.gt.f32.partialorder %v702, %v873
      %vm1161 = vcmp.gt.f32.partialorder %v706, %v873
      %vm1162 = vcmp.gt.f32.partialorder %v710, %v873
      %vm1163 = vcmp.gt.f32.partialorder %v698, %v878
      %vm1164 = vcmp.gt.f32.partialorder %v702, %v878
      %vm1165 = vcmp.gt.f32.partialorder %v706, %v878
      %vm1166 = vcmp.gt.f32.partialorder %v710, %v878
      %vm1167 = vcmp.gt.f32.partialorder %v698, %v883
      %vm1168 = vcmp.gt.f32.partialorder %v702, %v883
      %vm1169 = vcmp.gt.f32.partialorder %v706, %v883
      %vm1170 = vcmp.gt.f32.partialorder %v710, %v883
      %vm1171 = vcmp.gt.f32.partialorder %v698, %v888
      %vm1172 = vcmp.gt.f32.partialorder %v702, %v888
      %vm1173 = vcmp.gt.f32.partialorder %v706, %v888
      %vm1174 = vcmp.gt.f32.partialorder %v710, %v888
      %vm1175 = vcmp.gt.f32.partialorder %v698, %v893
      %vm1176 = vcmp.gt.f32.partialorder %v702, %v893
      %vm1177 = vcmp.gt.f32.partialorder %v706, %v893
      %vm1178 = vcmp.gt.f32.partialorder %v710, %v893
      %vm1179 = vcmp.gt.f32.partialorder %v698, %v898
      %vm1180 = vcmp.gt.f32.partialorder %v702, %v898
      %vm1181 = vcmp.gt.f32.partialorder %v706, %v898
      %vm1182 = vcmp.gt.f32.partialorder %v710, %v898
      %vm1183 = vcmp.gt.f32.partialorder %v698, %v903
      %vm1184 = vcmp.gt.f32.partialorder %v702, %v903
      %vm1185 = vcmp.gt.f32.partialorder %v706, %v903
      %vm1186 = vcmp.gt.f32.partialorder %v710, %v903
      %vm1187 = vcmp.gt.f32.partialorder %v698, %v908
      %vm1188 = vcmp.gt.f32.partialorder %v702, %v908
      %vm1189 = vcmp.gt.f32.partialorder %v706, %v908
      %vm1190 = vcmp.gt.f32.partialorder %v710, %v908
      %vm1191 = vcmp.gt.f32.partialorder %v698, %v913
      %vm1192 = vcmp.gt.f32.partialorder %v702, %v913
      %vm1193 = vcmp.gt.f32.partialorder %v706, %v913
      %vm1194 = vcmp.gt.f32.partialorder %v710, %v913
      %vm1195 = vcmp.gt.f32.partialorder %v698, %v918
      %vm1196 = vcmp.gt.f32.partialorder %v702, %v918
      %vm1197 = vcmp.gt.f32.partialorder %v706, %v918
      %vm1198 = vcmp.gt.f32.partialorder %v710, %v918
      %vm1199 = vcmp.gt.f32.partialorder %v698, %v923
      %vm1200 = vcmp.gt.f32.partialorder %v702, %v923
      %vm1201 = vcmp.gt.f32.partialorder %v706, %v923
      %vm1202 = vcmp.gt.f32.partialorder %v710, %v923
      %vm1203 = vcmp.gt.f32.partialorder %v698, %v928
      %vm1204 = vcmp.gt.f32.partialorder %v702, %v928
      %vm1205 = vcmp.gt.f32.partialorder %v706, %v928
      %vm1206 = vcmp.gt.f32.partialorder %v710, %v928
      %vm1207 = vcmp.gt.f32.partialorder %v698, %v933
      %vm1208 = vcmp.gt.f32.partialorder %v702, %v933
      %vm1209 = vcmp.gt.f32.partialorder %v706, %v933
      %vm1210 = vcmp.gt.f32.partialorder %v710, %v933
      %vm1211 = vcmp.gt.f32.partialorder %v698, %v938
      %vm1212 = vcmp.gt.f32.partialorder %v702, %v938
      %vm1213 = vcmp.gt.f32.partialorder %v706, %v938
      %vm1214 = vcmp.gt.f32.partialorder %v710, %v938
      %vm1215 = vcmp.gt.f32.partialorder %v698, %v943
      %vm1216 = vcmp.gt.f32.partialorder %v702, %v943
      %vm1217 = vcmp.gt.f32.partialorder %v706, %v943
      %vm1218 = vcmp.gt.f32.partialorder %v710, %v943
      %vm1219 = vcmp.gt.f32.partialorder %v698, %v948
      %vm1220 = vcmp.gt.f32.partialorder %v702, %v948
      %vm1221 = vcmp.gt.f32.partialorder %v706, %v948
      %vm1222 = vcmp.gt.f32.partialorder %v710, %v948
      %vm1223 = vcmp.gt.f32.partialorder %v698, %v953
      %vm1224 = vcmp.gt.f32.partialorder %v702, %v953
      %vm1225 = vcmp.gt.f32.partialorder %v706, %v953
      %vm1226 = vcmp.gt.f32.partialorder %v710, %v953
      %vm1227 = vcmp.gt.f32.partialorder %v698, %v958
      %vm1228 = vcmp.gt.f32.partialorder %v702, %v958
      %vm1229 = vcmp.gt.f32.partialorder %v706, %v958
      %vm1230 = vcmp.gt.f32.partialorder %v710, %v958
      %vm1231 = vcmp.gt.f32.partialorder %v698, %v963
      %vm1232 = vcmp.gt.f32.partialorder %v702, %v963
      %vm1233 = vcmp.gt.f32.partialorder %v706, %v963
      %vm1234 = vcmp.gt.f32.partialorder %v710, %v963
      %vm1235 = vcmp.gt.f32.partialorder %v698, %v968
      %vm1236 = vcmp.gt.f32.partialorder %v702, %v968
      %vm1237 = vcmp.gt.f32.partialorder %v706, %v968
      %vm1238 = vcmp.gt.f32.partialorder %v710, %v968
      %vm1239 = vcmp.gt.f32.partialorder %v698, %v973
      %vm1240 = vcmp.gt.f32.partialorder %v702, %v973
      %vm1241 = vcmp.gt.f32.partialorder %v706, %v973
      %vm1242 = vcmp.gt.f32.partialorder %v710, %v973
      %vm1243 = vcmp.gt.f32.partialorder %v698, %v978
      %vm1244 = vcmp.gt.f32.partialorder %v702, %v978
      %vm1245 = vcmp.gt.f32.partialorder %v706, %v978
      %vm1246 = vcmp.gt.f32.partialorder %v710, %v978
      %vm1247 = vcmp.gt.f32.partialorder %v698, %v983
      %vm1248 = vcmp.gt.f32.partialorder %v702, %v983
      %vm1249 = vcmp.gt.f32.partialorder %v706, %v983
      %vm1250 = vcmp.gt.f32.partialorder %v710, %v983
      %vm1251 = vcmp.gt.f32.partialorder %v698, %v988
      %vm1252 = vcmp.gt.f32.partialorder %v702, %v988
      %vm1253 = vcmp.gt.f32.partialorder %v706, %v988
      %vm1254 = vcmp.gt.f32.partialorder %v710, %v988
      %vm1255 = vcmp.gt.f32.partialorder %v698, %v993
      %vm1256 = vcmp.gt.f32.partialorder %v702, %v993
      %vm1257 = vcmp.gt.f32.partialorder %v706, %v993
      %vm1258 = vcmp.gt.f32.partialorder %v710, %v993
      %vm1259 = vcmp.gt.f32.partialorder %v698, %v998
      %vm1260 = vcmp.gt.f32.partialorder %v702, %v998
      %vm1261 = vcmp.gt.f32.partialorder %v706, %v998
      %vm1262 = vcmp.gt.f32.partialorder %v710, %v998
      %vm1263 = vcmp.gt.f32.partialorder %v698, %v1003
      %vm1264 = vcmp.gt.f32.partialorder %v702, %v1003
      %vm1265 = vcmp.gt.f32.partialorder %v706, %v1003
      %vm1266 = vcmp.gt.f32.partialorder %v710, %v1003
      %vm1267 = vcmp.gt.f32.partialorder %v698, %v1008
      %vm1268 = vcmp.gt.f32.partialorder %v702, %v1008
      %vm1269 = vcmp.gt.f32.partialorder %v706, %v1008
      %vm1270 = vcmp.gt.f32.partialorder %v710, %v1008
      %vm1271 = vcmp.gt.f32.partialorder %v698, %v1013
      %vm1272 = vcmp.gt.f32.partialorder %v702, %v1013
      %vm1273 = vcmp.gt.f32.partialorder %v706, %v1013
      %vm1274 = vcmp.gt.f32.partialorder %v710, %v1013
      %vm1275 = vcmp.gt.f32.partialorder %v698, %v1018
      %vm1276 = vcmp.gt.f32.partialorder %v702, %v1018
      %vm1277 = vcmp.gt.f32.partialorder %v706, %v1018
      %vm1278 = vcmp.gt.f32.partialorder %v710, %v1018
      %vm1279 = vcmp.gt.f32.partialorder %v698, %v1023
      %vm1280 = vcmp.gt.f32.partialorder %v702, %v1023
      %vm1281 = vcmp.gt.f32.partialorder %v706, %v1023
      %vm1282 = vcmp.gt.f32.partialorder %v710, %v1023
      %vm1283 = vcmp.gt.f32.partialorder %v698, %v1028
      %vm1284 = vcmp.gt.f32.partialorder %v702, %v1028
      %vm1285 = vcmp.gt.f32.partialorder %v706, %v1028
      %vm1286 = vcmp.gt.f32.partialorder %v710, %v1028
      %vm1287 = vcmp.gt.f32.partialorder %v698, %v1033
      %vm1288 = vcmp.gt.f32.partialorder %v702, %v1033
      %vm1289 = vcmp.gt.f32.partialorder %v706, %v1033
      %vm1290 = vcmp.gt.f32.partialorder %v710, %v1033
      %vm1291 = vcmp.eq.f32.partialorder %v698, %v718
      %vm1292 = vcmp.eq.f32.partialorder %v702, %v718
      %vm1293 = vcmp.eq.f32.partialorder %v706, %v718
      %vm1294 = vcmp.eq.f32.partialorder %v710, %v718
      %vm1295 = vcmp.eq.f32.partialorder %v698, %v723
      %vm1296 = vcmp.eq.f32.partialorder %v702, %v723
      %vm1297 = vcmp.eq.f32.partialorder %v706, %v723
      %vm1298 = vcmp.eq.f32.partialorder %v710, %v723
      %vm1299 = vcmp.eq.f32.partialorder %v698, %v728
      %vm1300 = vcmp.eq.f32.partialorder %v702, %v728
      %vm1301 = vcmp.eq.f32.partialorder %v706, %v728
      %vm1302 = vcmp.eq.f32.partialorder %v710, %v728
      %vm1303 = vcmp.eq.f32.partialorder %v698, %v733
      %vm1304 = vcmp.eq.f32.partialorder %v702, %v733
      %vm1305 = vcmp.eq.f32.partialorder %v706, %v733
      %vm1306 = vcmp.eq.f32.partialorder %v710, %v733
      %vm1307 = vcmp.eq.f32.partialorder %v698, %v738
      %vm1308 = vcmp.eq.f32.partialorder %v702, %v738
      %vm1309 = vcmp.eq.f32.partialorder %v706, %v738
      %vm1310 = vcmp.eq.f32.partialorder %v710, %v738
      %vm1311 = vcmp.eq.f32.partialorder %v698, %v743
      %vm1312 = vcmp.eq.f32.partialorder %v702, %v743
      %vm1313 = vcmp.eq.f32.partialorder %v706, %v743
      %vm1314 = vcmp.eq.f32.partialorder %v710, %v743
      %vm1315 = vcmp.eq.f32.partialorder %v698, %v748
      %vm1316 = vcmp.eq.f32.partialorder %v702, %v748
      %vm1317 = vcmp.eq.f32.partialorder %v706, %v748
      %vm1318 = vcmp.eq.f32.partialorder %v710, %v748
      %vm1319 = vcmp.eq.f32.partialorder %v698, %v753
      %vm1320 = vcmp.eq.f32.partialorder %v702, %v753
      %vm1321 = vcmp.eq.f32.partialorder %v706, %v753
      %vm1322 = vcmp.eq.f32.partialorder %v710, %v753
      %vm1323 = vcmp.eq.f32.partialorder %v698, %v758
      %vm1324 = vcmp.eq.f32.partialorder %v702, %v758
      %vm1325 = vcmp.eq.f32.partialorder %v706, %v758
      %vm1326 = vcmp.eq.f32.partialorder %v710, %v758
      %vm1327 = vcmp.eq.f32.partialorder %v698, %v763
      %vm1328 = vcmp.eq.f32.partialorder %v702, %v763
      %vm1329 = vcmp.eq.f32.partialorder %v706, %v763
      %vm1330 = vcmp.eq.f32.partialorder %v710, %v763
      %vm1331 = vcmp.eq.f32.partialorder %v698, %v768
      %vm1332 = vcmp.eq.f32.partialorder %v702, %v768
      %vm1333 = vcmp.eq.f32.partialorder %v706, %v768
      %vm1334 = vcmp.eq.f32.partialorder %v710, %v768
      %vm1335 = vcmp.eq.f32.partialorder %v698, %v773
      %vm1336 = vcmp.eq.f32.partialorder %v702, %v773
      %vm1337 = vcmp.eq.f32.partialorder %v706, %v773
      %vm1338 = vcmp.eq.f32.partialorder %v710, %v773
      %vm1339 = vcmp.eq.f32.partialorder %v698, %v778
      %vm1340 = vcmp.eq.f32.partialorder %v702, %v778
      %vm1341 = vcmp.eq.f32.partialorder %v706, %v778
      %vm1342 = vcmp.eq.f32.partialorder %v710, %v778
      %vm1343 = vcmp.eq.f32.partialorder %v698, %v783
      %vm1344 = vcmp.eq.f32.partialorder %v702, %v783
      %vm1345 = vcmp.eq.f32.partialorder %v706, %v783
      %vm1346 = vcmp.eq.f32.partialorder %v710, %v783
      %vm1347 = vcmp.eq.f32.partialorder %v698, %v788
      %vm1348 = vcmp.eq.f32.partialorder %v702, %v788
      %vm1349 = vcmp.eq.f32.partialorder %v706, %v788
      %vm1350 = vcmp.eq.f32.partialorder %v710, %v788
      %vm1351 = vcmp.eq.f32.partialorder %v698, %v793
      %vm1352 = vcmp.eq.f32.partialorder %v702, %v793
      %vm1353 = vcmp.eq.f32.partialorder %v706, %v793
      %vm1354 = vcmp.eq.f32.partialorder %v710, %v793
      %vm1355 = vcmp.eq.f32.partialorder %v698, %v798
      %vm1356 = vcmp.eq.f32.partialorder %v702, %v798
      %vm1357 = vcmp.eq.f32.partialorder %v706, %v798
      %vm1358 = vcmp.eq.f32.partialorder %v710, %v798
      %vm1359 = vcmp.eq.f32.partialorder %v698, %v803
      %vm1360 = vcmp.eq.f32.partialorder %v702, %v803
      %vm1361 = vcmp.eq.f32.partialorder %v706, %v803
      %vm1362 = vcmp.eq.f32.partialorder %v710, %v803
      %vm1363 = vcmp.eq.f32.partialorder %v698, %v808
      %vm1364 = vcmp.eq.f32.partialorder %v702, %v808
      %vm1365 = vcmp.eq.f32.partialorder %v706, %v808
      %vm1366 = vcmp.eq.f32.partialorder %v710, %v808
      %vm1367 = vcmp.eq.f32.partialorder %v698, %v813
      %vm1368 = vcmp.eq.f32.partialorder %v702, %v813
      %vm1369 = vcmp.eq.f32.partialorder %v706, %v813
      %vm1370 = vcmp.eq.f32.partialorder %v710, %v813
      %vm1371 = vcmp.eq.f32.partialorder %v698, %v818
      %vm1372 = vcmp.eq.f32.partialorder %v702, %v818
      %vm1373 = vcmp.eq.f32.partialorder %v706, %v818
      %vm1374 = vcmp.eq.f32.partialorder %v710, %v818
      %vm1375 = vcmp.eq.f32.partialorder %v698, %v823
      %vm1376 = vcmp.eq.f32.partialorder %v702, %v823
      %vm1377 = vcmp.eq.f32.partialorder %v706, %v823
      %vm1378 = vcmp.eq.f32.partialorder %v710, %v823
      %vm1379 = vcmp.eq.f32.partialorder %v698, %v828
      %vm1380 = vcmp.eq.f32.partialorder %v702, %v828
      %vm1381 = vcmp.eq.f32.partialorder %v706, %v828
      %vm1382 = vcmp.eq.f32.partialorder %v710, %v828
      %vm1383 = vcmp.eq.f32.partialorder %v698, %v833
      %vm1384 = vcmp.eq.f32.partialorder %v702, %v833
      %vm1385 = vcmp.eq.f32.partialorder %v706, %v833
      %vm1386 = vcmp.eq.f32.partialorder %v710, %v833
      %vm1387 = vcmp.eq.f32.partialorder %v698, %v838
      %vm1388 = vcmp.eq.f32.partialorder %v702, %v838
      %vm1389 = vcmp.eq.f32.partialorder %v706, %v838
      %vm1390 = vcmp.eq.f32.partialorder %v710, %v838
      %vm1391 = vcmp.eq.f32.partialorder %v698, %v843
      %vm1392 = vcmp.eq.f32.partialorder %v702, %v843
      %vm1393 = vcmp.eq.f32.partialorder %v706, %v843
      %vm1394 = vcmp.eq.f32.partialorder %v710, %v843
      %vm1395 = vcmp.eq.f32.partialorder %v698, %v848
      %vm1396 = vcmp.eq.f32.partialorder %v702, %v848
      %vm1397 = vcmp.eq.f32.partialorder %v706, %v848
      %vm1398 = vcmp.eq.f32.partialorder %v710, %v848
      %vm1399 = vcmp.eq.f32.partialorder %v698, %v853
      %vm1400 = vcmp.eq.f32.partialorder %v702, %v853
      %vm1401 = vcmp.eq.f32.partialorder %v706, %v853
      %vm1402 = vcmp.eq.f32.partialorder %v710, %v853
      %vm1403 = vcmp.eq.f32.partialorder %v698, %v858
      %vm1404 = vcmp.eq.f32.partialorder %v702, %v858
      %vm1405 = vcmp.eq.f32.partialorder %v706, %v858
      %vm1406 = vcmp.eq.f32.partialorder %v710, %v858
      %vm1407 = vcmp.eq.f32.partialorder %v698, %v863
      %vm1408 = vcmp.eq.f32.partialorder %v702, %v863
      %vm1409 = vcmp.eq.f32.partialorder %v706, %v863
      %vm1410 = vcmp.eq.f32.partialorder %v710, %v863
      %vm1411 = vcmp.eq.f32.partialorder %v698, %v868
      %vm1412 = vcmp.eq.f32.partialorder %v702, %v868
      %vm1413 = vcmp.eq.f32.partialorder %v706, %v868
      %vm1414 = vcmp.eq.f32.partialorder %v710, %v868
      %vm1415 = vcmp.eq.f32.partialorder %v698, %v873
      %vm1416 = vcmp.eq.f32.partialorder %v702, %v873
      %vm1417 = vcmp.eq.f32.partialorder %v706, %v873
      %vm1418 = vcmp.eq.f32.partialorder %v710, %v873
      %vm1419 = vcmp.eq.f32.partialorder %v698, %v878
      %vm1420 = vcmp.eq.f32.partialorder %v702, %v878
      %vm1421 = vcmp.eq.f32.partialorder %v706, %v878
      %vm1422 = vcmp.eq.f32.partialorder %v710, %v878
      %vm1423 = vcmp.eq.f32.partialorder %v698, %v883
      %vm1424 = vcmp.eq.f32.partialorder %v702, %v883
      %vm1425 = vcmp.eq.f32.partialorder %v706, %v883
      %vm1426 = vcmp.eq.f32.partialorder %v710, %v883
      %vm1427 = vcmp.eq.f32.partialorder %v698, %v888
      %vm1428 = vcmp.eq.f32.partialorder %v702, %v888
      %vm1429 = vcmp.eq.f32.partialorder %v706, %v888
      %vm1430 = vcmp.eq.f32.partialorder %v710, %v888
      %vm1431 = vcmp.eq.f32.partialorder %v698, %v893
      %vm1432 = vcmp.eq.f32.partialorder %v702, %v893
      %vm1433 = vcmp.eq.f32.partialorder %v706, %v893
      %vm1434 = vcmp.eq.f32.partialorder %v710, %v893
      %vm1435 = vcmp.eq.f32.partialorder %v698, %v898
      %vm1436 = vcmp.eq.f32.partialorder %v702, %v898
      %vm1437 = vcmp.eq.f32.partialorder %v706, %v898
      %vm1438 = vcmp.eq.f32.partialorder %v710, %v898
      %vm1439 = vcmp.eq.f32.partialorder %v698, %v903
      %vm1440 = vcmp.eq.f32.partialorder %v702, %v903
      %vm1441 = vcmp.eq.f32.partialorder %v706, %v903
      %vm1442 = vcmp.eq.f32.partialorder %v710, %v903
      %vm1443 = vcmp.eq.f32.partialorder %v698, %v908
      %vm1444 = vcmp.eq.f32.partialorder %v702, %v908
      %vm1445 = vcmp.eq.f32.partialorder %v706, %v908
      %vm1446 = vcmp.eq.f32.partialorder %v710, %v908
      %vm1447 = vcmp.eq.f32.partialorder %v698, %v913
      %vm1448 = vcmp.eq.f32.partialorder %v702, %v913
      %vm1449 = vcmp.eq.f32.partialorder %v706, %v913
      %vm1450 = vcmp.eq.f32.partialorder %v710, %v913
      %vm1451 = vcmp.eq.f32.partialorder %v698, %v918
      %vm1452 = vcmp.eq.f32.partialorder %v702, %v918
      %vm1453 = vcmp.eq.f32.partialorder %v706, %v918
      %vm1454 = vcmp.eq.f32.partialorder %v710, %v918
      %vm1455 = vcmp.eq.f32.partialorder %v698, %v923
      %vm1456 = vcmp.eq.f32.partialorder %v702, %v923
      %vm1457 = vcmp.eq.f32.partialorder %v706, %v923
      %vm1458 = vcmp.eq.f32.partialorder %v710, %v923
      %vm1459 = vcmp.eq.f32.partialorder %v698, %v928
      %vm1460 = vcmp.eq.f32.partialorder %v702, %v928
      %vm1461 = vcmp.eq.f32.partialorder %v706, %v928
      %vm1462 = vcmp.eq.f32.partialorder %v710, %v928
      %vm1463 = vcmp.eq.f32.partialorder %v698, %v933
      %vm1464 = vcmp.eq.f32.partialorder %v702, %v933
      %vm1465 = vcmp.eq.f32.partialorder %v706, %v933
      %vm1466 = vcmp.eq.f32.partialorder %v710, %v933
      %vm1467 = vcmp.eq.f32.partialorder %v698, %v938
      %vm1468 = vcmp.eq.f32.partialorder %v702, %v938
      %vm1469 = vcmp.eq.f32.partialorder %v706, %v938
      %vm1470 = vcmp.eq.f32.partialorder %v710, %v938
      %vm1471 = vcmp.eq.f32.partialorder %v698, %v943
      %vm1472 = vcmp.eq.f32.partialorder %v702, %v943
      %vm1473 = vcmp.eq.f32.partialorder %v706, %v943
      %vm1474 = vcmp.eq.f32.partialorder %v710, %v943
      %vm1475 = vcmp.eq.f32.partialorder %v698, %v948
      %vm1476 = vcmp.eq.f32.partialorder %v702, %v948
      %vm1477 = vcmp.eq.f32.partialorder %v706, %v948
      %vm1478 = vcmp.eq.f32.partialorder %v710, %v948
      %vm1479 = vcmp.eq.f32.partialorder %v698, %v953
      %vm1480 = vcmp.eq.f32.partialorder %v702, %v953
      %vm1481 = vcmp.eq.f32.partialorder %v706, %v953
      %vm1482 = vcmp.eq.f32.partialorder %v710, %v953
      %vm1483 = vcmp.eq.f32.partialorder %v698, %v958
      %vm1484 = vcmp.eq.f32.partialorder %v702, %v958
      %vm1485 = vcmp.eq.f32.partialorder %v706, %v958
      %vm1486 = vcmp.eq.f32.partialorder %v710, %v958
      %vm1487 = vcmp.eq.f32.partialorder %v698, %v963
      %vm1488 = vcmp.eq.f32.partialorder %v702, %v963
      %vm1489 = vcmp.eq.f32.partialorder %v706, %v963
      %vm1490 = vcmp.eq.f32.partialorder %v710, %v963
      %vm1491 = vcmp.eq.f32.partialorder %v698, %v968
      %vm1492 = vcmp.eq.f32.partialorder %v702, %v968
      %vm1493 = vcmp.eq.f32.partialorder %v706, %v968
      %vm1494 = vcmp.eq.f32.partialorder %v710, %v968
      %vm1495 = vcmp.eq.f32.partialorder %v698, %v973
      %vm1496 = vcmp.eq.f32.partialorder %v702, %v973
      %vm1497 = vcmp.eq.f32.partialorder %v706, %v973
      %vm1498 = vcmp.eq.f32.partialorder %v710, %v973
      %vm1499 = vcmp.eq.f32.partialorder %v698, %v978
      %vm1500 = vcmp.eq.f32.partialorder %v702, %v978
      %vm1501 = vcmp.eq.f32.partialorder %v706, %v978
      %vm1502 = vcmp.eq.f32.partialorder %v710, %v978
      %vm1503 = vcmp.eq.f32.partialorder %v698, %v983
      %vm1504 = vcmp.eq.f32.partialorder %v702, %v983
      %vm1505 = vcmp.eq.f32.partialorder %v706, %v983
      %vm1506 = vcmp.eq.f32.partialorder %v710, %v983
      %vm1507 = vcmp.eq.f32.partialorder %v698, %v988
      %vm1508 = vcmp.eq.f32.partialorder %v702, %v988
      %vm1509 = vcmp.eq.f32.partialorder %v706, %v988
      %vm1510 = vcmp.eq.f32.partialorder %v710, %v988
      %vm1511 = vcmp.eq.f32.partialorder %v698, %v993
      %vm1512 = vcmp.eq.f32.partialorder %v702, %v993
      %vm1513 = vcmp.eq.f32.partialorder %v706, %v993
      %vm1514 = vcmp.eq.f32.partialorder %v710, %v993
      %vm1515 = vcmp.eq.f32.partialorder %v698, %v998
      %vm1516 = vcmp.eq.f32.partialorder %v702, %v998
      %vm1517 = vcmp.eq.f32.partialorder %v706, %v998
      %vm1518 = vcmp.eq.f32.partialorder %v710, %v998
      %vm1519 = vcmp.eq.f32.partialorder %v698, %v1003
      %vm1520 = vcmp.eq.f32.partialorder %v702, %v1003
      %vm1521 = vcmp.eq.f32.partialorder %v706, %v1003
      %vm1522 = vcmp.eq.f32.partialorder %v710, %v1003
      %vm1523 = vcmp.eq.f32.partialorder %v698, %v1008
      %vm1524 = vcmp.eq.f32.partialorder %v702, %v1008
      %vm1525 = vcmp.eq.f32.partialorder %v706, %v1008
      %vm1526 = vcmp.eq.f32.partialorder %v710, %v1008
      %vm1527 = vcmp.eq.f32.partialorder %v698, %v1013
      %vm1528 = vcmp.eq.f32.partialorder %v702, %v1013
      %vm1529 = vcmp.eq.f32.partialorder %v706, %v1013
      %vm1530 = vcmp.eq.f32.partialorder %v710, %v1013
      %vm1531 = vcmp.eq.f32.partialorder %v698, %v1018
      %vm1532 = vcmp.eq.f32.partialorder %v702, %v1018
      %vm1533 = vcmp.eq.f32.partialorder %v706, %v1018
      %vm1534 = vcmp.eq.f32.partialorder %v710, %v1018
      %vm1535 = vcmp.eq.f32.partialorder %v698, %v1023
      %vm1536 = vcmp.eq.f32.partialorder %v702, %v1023
      %vm1537 = vcmp.eq.f32.partialorder %v706, %v1023
      %vm1538 = vcmp.eq.f32.partialorder %v710, %v1023
      %vm1539 = vcmp.eq.f32.partialorder %v698, %v1028
      %vm1540 = vcmp.eq.f32.partialorder %v702, %v1028
      %vm1541 = vcmp.eq.f32.partialorder %v706, %v1028
      %vm1542 = vcmp.eq.f32.partialorder %v710, %v1028
      %vm1543 = vcmp.eq.f32.partialorder %v698, %v1033
      %vm1544 = vcmp.eq.f32.partialorder %v702, %v1033
      %vm1545 = vcmp.eq.f32.partialorder %v706, %v1033
      %vm1546 = vcmp.eq.f32.partialorder %v710, %v1033
      %v1547 = vld [vmem:[%s4] sm:$0xff]
      %v1548 = vld [vmem:[%s4 + $0x8] sm:$0xff]
      %v1549 = vld [vmem:[%s4 + $0x10] sm:$0xff]
      %v1550 = vld [vmem:[%s4 + $0x18] sm:$0xff]
      %v1551 = vld [vmem:[%s4 + $0x20] sm:$0xff]
      %v1552 = vld [vmem:[%s4 + $0x28] sm:$0xff]
      %v1553 = vld [vmem:[%s4 + $0x30] sm:$0xff]
      %v1554 = vld [vmem:[%s4 + $0x38] sm:$0xff]
      %v1555 = vld [vmem:[%s4 + $0x40] sm:$0xff]
      %v1556 = vld [vmem:[%s4 + $0x48] sm:$0xff]
      %v1557 = vld [vmem:[%s4 + $0x50] sm:$0xff]
      %v1558 = vld [vmem:[%s4 + $0x58] sm:$0xff]
      %v1559 = vld [vmem:[%s4 + $0x60] sm:$0xff]
      %v1560 = vld [vmem:[%s4 + $0x68] sm:$0xff]
      %v1561 = vld [vmem:[%s4 + $0x70] sm:$0xff]
      %v1562 = vld [vmem:[%s4 + $0x78] sm:$0xff]
      %v1563 = vld [vmem:[%s4 + $0x80] sm:$0xff]
      %v1564 = vld [vmem:[%s4 + $0x88] sm:$0xff]
      %v1565 = vld [vmem:[%s4 + $0x90] sm:$0xff]
      %v1566 = vld [vmem:[%s4 + $0x98] sm:$0xff]
      %v1567 = vld [vmem:[%s4 + $0xa0] sm:$0xff]
      %v1568 = vld [vmem:[%s4 + $0xa8] sm:$0xff]
      %v1569 = vld [vmem:[%s4 + $0xb0] sm:$0xff]
      %v1570 = vld [vmem:[%s4 + $0xb8] sm:$0xff]
      %v1571 = vld [vmem:[%s4 + $0xc0] sm:$0xff]
      %v1572 = vld [vmem:[%s4 + $0xc8] sm:$0xff]
      %v1573 = vld [vmem:[%s4 + $0xd0] sm:$0xff]
      %v1574 = vld [vmem:[%s4 + $0xd8] sm:$0xff]
      %v1575 = vld [vmem:[%s4 + $0xe0] sm:$0xff]
      %v1576 = vld [vmem:[%s4 + $0xe8] sm:$0xff]
      %v1577 = vld [vmem:[%s4 + $0xf0] sm:$0xff]
      %v1578 = vld [vmem:[%s4 + $0xf8] sm:$0xff]
      %v1579 = vld [vmem:[%s4 + $0x100] sm:$0xff]
      %v1580 = vld [vmem:[%s4 + $0x108] sm:$0xff]
      %v1581 = vld [vmem:[%s4 + $0x110] sm:$0xff]
      %v1582 = vld [vmem:[%s4 + $0x118] sm:$0xff]
      %v1583 = vld [vmem:[%s4 + $0x120] sm:$0xff]
      %v1584 = vld [vmem:[%s4 + $0x128] sm:$0xff]
      %v1585 = vld [vmem:[%s4 + $0x130] sm:$0xff]
      %v1586 = vld [vmem:[%s4 + $0x138] sm:$0xff]
      %v1587 = vld [vmem:[%s4 + $0x140] sm:$0xff]
      %v1588 = vld [vmem:[%s4 + $0x148] sm:$0xff]
      %v1589 = vld [vmem:[%s4 + $0x150] sm:$0xff]
      %v1590 = vld [vmem:[%s4 + $0x158] sm:$0xff]
      %v1591 = vld [vmem:[%s4 + $0x160] sm:$0xff]
      %v1592 = vld [vmem:[%s4 + $0x168] sm:$0xff]
      %v1593 = vld [vmem:[%s4 + $0x170] sm:$0xff]
      %v1594 = vld [vmem:[%s4 + $0x178] sm:$0xff]
      %v1595 = vld [vmem:[%s4 + $0x180] sm:$0xff]
      %v1596 = vld [vmem:[%s4 + $0x188] sm:$0xff]
      %v1597 = vld [vmem:[%s4 + $0x190] sm:$0xff]
      %v1598 = vld [vmem:[%s4 + $0x198] sm:$0xff]
      %v1599 = vld [vmem:[%s4 + $0x1a0] sm:$0xff]
      %v1600 = vld [vmem:[%s4 + $0x1a8] sm:$0xff]
      %v1601 = vld [vmem:[%s4 + $0x1b0] sm:$0xff]
      %v1602 = vld [vmem:[%s4 + $0x1b8] sm:$0xff]
      %v1603 = vld [vmem:[%s4 + $0x1c0] sm:$0xff]
      %v1604 = vld [vmem:[%s4 + $0x1c8] sm:$0xff]
      %v1605 = vld [vmem:[%s4 + $0x1d0] sm:$0xff]
      %v1606 = vld [vmem:[%s4 + $0x1d8] sm:$0xff]
      %v1607 = vld [vmem:[%s4 + $0x1e0] sm:$0xff]
      %v1608 = vld [vmem:[%s4 + $0x1e8] sm:$0xff]
      %v1609 = vld [vmem:[%s4 + $0x1f0] sm:$0xff]
      %v1610 = vld [vmem:[%s4 + $0x1f8] sm:$0xff]
      %v1611 = vld [vmem:[%s4 + $0x200] sm:$0xff]
      %v1612 = vld [vmem:[%s4 + $0x208] sm:$0xff]
      %v1613 = vld [vmem:[%s4 + $0x210] sm:$0xff]
      %v1614 = vld [vmem:[%s4 + $0x218] sm:$0xff]
      %v1615 = vld [vmem:[%s4 + $0x220] sm:$0xff]
      %v1616 = vld [vmem:[%s4 + $0x228] sm:$0xff]
      %v1617 = vld [vmem:[%s4 + $0x230] sm:$0xff]
      %v1618 = vld [vmem:[%s4 + $0x238] sm:$0xff]
      %v1619 = vld [vmem:[%s4 + $0x240] sm:$0xff]
      %v1620 = vld [vmem:[%s4 + $0x248] sm:$0xff]
      %v1621 = vld [vmem:[%s4 + $0x250] sm:$0xff]
      %v1622 = vld [vmem:[%s4 + $0x258] sm:$0xff]
      %v1623 = vld [vmem:[%s4 + $0x260] sm:$0xff]
      %v1624 = vld [vmem:[%s4 + $0x268] sm:$0xff]
      %v1625 = vld [vmem:[%s4 + $0x270] sm:$0xff]
      %v1626 = vld [vmem:[%s4 + $0x278] sm:$0xff]
      %v1627 = vld [vmem:[%s4 + $0x280] sm:$0xff]
      %v1628 = vld [vmem:[%s4 + $0x288] sm:$0xff]
      %v1629 = vld [vmem:[%s4 + $0x290] sm:$0xff]
      %v1630 = vld [vmem:[%s4 + $0x298] sm:$0xff]
      %v1631 = vld [vmem:[%s4 + $0x2a0] sm:$0xff]
      %v1632 = vld [vmem:[%s4 + $0x2a8] sm:$0xff]
      %v1633 = vld [vmem:[%s4 + $0x2b0] sm:$0xff]
      %v1634 = vld [vmem:[%s4 + $0x2b8] sm:$0xff]
      %v1635 = vld [vmem:[%s4 + $0x2c0] sm:$0xff]
      %v1636 = vld [vmem:[%s4 + $0x2c8] sm:$0xff]
      %v1637 = vld [vmem:[%s4 + $0x2d0] sm:$0xff]
      %v1638 = vld [vmem:[%s4 + $0x2d8] sm:$0xff]
      %v1639 = vld [vmem:[%s4 + $0x2e0] sm:$0xff]
      %v1640 = vld [vmem:[%s4 + $0x2e8] sm:$0xff]
      %v1641 = vld [vmem:[%s4 + $0x2f0] sm:$0xff]
      %v1642 = vld [vmem:[%s4 + $0x2f8] sm:$0xff]
      %v1643 = vld [vmem:[%s4 + $0x300] sm:$0xff]
      %v1644 = vld [vmem:[%s4 + $0x308] sm:$0xff]
      %v1645 = vld [vmem:[%s4 + $0x310] sm:$0xff]
      %v1646 = vld [vmem:[%s4 + $0x318] sm:$0xff]
      %v1647 = vld [vmem:[%s4 + $0x320] sm:$0xff]
      %v1648 = vld [vmem:[%s4 + $0x328] sm:$0xff]
      %v1649 = vld [vmem:[%s4 + $0x330] sm:$0xff]
      %v1650 = vld [vmem:[%s4 + $0x338] sm:$0xff]
      %v1651 = vld [vmem:[%s4 + $0x340] sm:$0xff]
      %v1652 = vld [vmem:[%s4 + $0x348] sm:$0xff]
      %v1653 = vld [vmem:[%s4 + $0x350] sm:$0xff]
      %v1654 = vld [vmem:[%s4 + $0x358] sm:$0xff]
      %v1655 = vld [vmem:[%s4 + $0x360] sm:$0xff]
      %v1656 = vld [vmem:[%s4 + $0x368] sm:$0xff]
      %v1657 = vld [vmem:[%s4 + $0x370] sm:$0xff]
      %v1658 = vld [vmem:[%s4 + $0x378] sm:$0xff]
      %v1659 = vld [vmem:[%s4 + $0x380] sm:$0xff]
      %v1660 = vld [vmem:[%s4 + $0x388] sm:$0xff]
      %v1661 = vld [vmem:[%s4 + $0x390] sm:$0xff]
      %v1662 = vld [vmem:[%s4 + $0x398] sm:$0xff]
      %v1663 = vld [vmem:[%s4 + $0x3a0] sm:$0xff]
      %v1664 = vld [vmem:[%s4 + $0x3a8] sm:$0xff]
      %v1665 = vld [vmem:[%s4 + $0x3b0] sm:$0xff]
      %v1666 = vld [vmem:[%s4 + $0x3b8] sm:$0xff]
      %v1667 = vld [vmem:[%s4 + $0x3c0] sm:$0xff]
      %v1668 = vld [vmem:[%s4 + $0x3c8] sm:$0xff]
      %v1669 = vld [vmem:[%s4 + $0x3d0] sm:$0xff]
      %v1670 = vld [vmem:[%s4 + $0x3d8] sm:$0xff]
      %v1671 = vld [vmem:[%s4 + $0x3e0] sm:$0xff]
      %v1672 = vld [vmem:[%s4 + $0x3e8] sm:$0xff]
      %v1673 = vld [vmem:[%s4 + $0x3f0] sm:$0xff]
      %v1674 = vld [vmem:[%s4 + $0x3f8] sm:$0xff]
      %v1675 = vld [vmem:[%s4 + $0x400] sm:$0xff]
      %v1676 = vld [vmem:[%s4 + $0x408] sm:$0xff]
      %v1677 = vld [vmem:[%s4 + $0x410] sm:$0xff]
      %v1678 = vld [vmem:[%s4 + $0x418] sm:$0xff]
      %v1679 = vld [vmem:[%s4 + $0x420] sm:$0xff]
      %v1680 = vld [vmem:[%s4 + $0x428] sm:$0xff]
      %v1681 = vld [vmem:[%s4 + $0x430] sm:$0xff]
      %v1682 = vld [vmem:[%s4 + $0x438] sm:$0xff]
      %v1683 = vld [vmem:[%s4 + $0x440] sm:$0xff]
      %v1684 = vld [vmem:[%s4 + $0x448] sm:$0xff]
      %v1685 = vld [vmem:[%s4 + $0x450] sm:$0xff]
      %v1686 = vld [vmem:[%s4 + $0x458] sm:$0xff]
      %v1687 = vld [vmem:[%s4 + $0x460] sm:$0xff]
      %v1688 = vld [vmem:[%s4 + $0x468] sm:$0xff]
      %v1689 = vld [vmem:[%s4 + $0x470] sm:$0xff]
      %v1690 = vld [vmem:[%s4 + $0x478] sm:$0xff]
      %v1691 = vld [vmem:[%s4 + $0x480] sm:$0xff]
      %v1692 = vld [vmem:[%s4 + $0x488] sm:$0xff]
      %v1693 = vld [vmem:[%s4 + $0x490] sm:$0xff]
      %v1694 = vld [vmem:[%s4 + $0x498] sm:$0xff]
      %v1695 = vld [vmem:[%s4 + $0x4a0] sm:$0xff]
      %v1696 = vld [vmem:[%s4 + $0x4a8] sm:$0xff]
      %v1697 = vld [vmem:[%s4 + $0x4b0] sm:$0xff]
      %v1698 = vld [vmem:[%s4 + $0x4b8] sm:$0xff]
      %v1699 = vld [vmem:[%s4 + $0x4c0] sm:$0xff]
      %v1700 = vld [vmem:[%s4 + $0x4c8] sm:$0xff]
      %v1701 = vld [vmem:[%s4 + $0x4d0] sm:$0xff]
      %v1702 = vld [vmem:[%s4 + $0x4d8] sm:$0xff]
      %v1703 = vld [vmem:[%s4 + $0x4e0] sm:$0xff]
      %v1704 = vld [vmem:[%s4 + $0x4e8] sm:$0xff]
      %v1705 = vld [vmem:[%s4 + $0x4f0] sm:$0xff]
      %v1706 = vld [vmem:[%s4 + $0x4f8] sm:$0xff]
      %v1707 = vld [vmem:[%s4 + $0x500] sm:$0xff]
      %v1708 = vld [vmem:[%s4 + $0x508] sm:$0xff]
      %v1709 = vld [vmem:[%s4 + $0x510] sm:$0xff]
      %v1710 = vld [vmem:[%s4 + $0x518] sm:$0xff]
      %v1711 = vld [vmem:[%s4 + $0x520] sm:$0xff]
      %v1712 = vld [vmem:[%s4 + $0x528] sm:$0xff]
      %v1713 = vld [vmem:[%s4 + $0x530] sm:$0xff]
      %v1714 = vld [vmem:[%s4 + $0x538] sm:$0xff]
      %v1715 = vld [vmem:[%s4 + $0x540] sm:$0xff]
      %v1716 = vld [vmem:[%s4 + $0x548] sm:$0xff]
      %v1717 = vld [vmem:[%s4 + $0x550] sm:$0xff]
      %v1718 = vld [vmem:[%s4 + $0x558] sm:$0xff]
      %v1719 = vld [vmem:[%s4 + $0x560] sm:$0xff]
      %v1720 = vld [vmem:[%s4 + $0x568] sm:$0xff]
      %v1721 = vld [vmem:[%s4 + $0x570] sm:$0xff]
      %v1722 = vld [vmem:[%s4 + $0x578] sm:$0xff]
      %v1723 = vld [vmem:[%s4 + $0x580] sm:$0xff]
      %v1724 = vld [vmem:[%s4 + $0x588] sm:$0xff]
      %v1725 = vld [vmem:[%s4 + $0x590] sm:$0xff]
      %v1726 = vld [vmem:[%s4 + $0x598] sm:$0xff]
      %v1727 = vld [vmem:[%s4 + $0x5a0] sm:$0xff]
      %v1728 = vld [vmem:[%s4 + $0x5a8] sm:$0xff]
      %v1729 = vld [vmem:[%s4 + $0x5b0] sm:$0xff]
      %v1730 = vld [vmem:[%s4 + $0x5b8] sm:$0xff]
      %v1731 = vld [vmem:[%s4 + $0x5c0] sm:$0xff]
      %v1732 = vld [vmem:[%s4 + $0x5c8] sm:$0xff]
      %v1733 = vld [vmem:[%s4 + $0x5d0] sm:$0xff]
      %v1734 = vld [vmem:[%s4 + $0x5d8] sm:$0xff]
      %v1735 = vld [vmem:[%s4 + $0x5e0] sm:$0xff]
      %v1736 = vld [vmem:[%s4 + $0x5e8] sm:$0xff]
      %v1737 = vld [vmem:[%s4 + $0x5f0] sm:$0xff]
      %v1738 = vld [vmem:[%s4 + $0x5f8] sm:$0xff]
      %v1739 = vld [vmem:[%s4 + $0x600] sm:$0xff]
      %v1740 = vld [vmem:[%s4 + $0x608] sm:$0xff]
      %v1741 = vld [vmem:[%s4 + $0x610] sm:$0xff]
      %v1742 = vld [vmem:[%s4 + $0x618] sm:$0xff]
      %v1743 = vld [vmem:[%s4 + $0x620] sm:$0xff]
      %v1744 = vld [vmem:[%s4 + $0x628] sm:$0xff]
      %v1745 = vld [vmem:[%s4 + $0x630] sm:$0xff]
      %v1746 = vld [vmem:[%s4 + $0x638] sm:$0xff]
      %v1747 = vld [vmem:[%s4 + $0x640] sm:$0xff]
      %v1748 = vld [vmem:[%s4 + $0x648] sm:$0xff]
      %v1749 = vld [vmem:[%s4 + $0x650] sm:$0xff]
      %v1750 = vld [vmem:[%s4 + $0x658] sm:$0xff]
      %v1751 = vld [vmem:[%s4 + $0x660] sm:$0xff]
      %v1752 = vld [vmem:[%s4 + $0x668] sm:$0xff]
      %v1753 = vld [vmem:[%s4 + $0x670] sm:$0xff]
      %v1754 = vld [vmem:[%s4 + $0x678] sm:$0xff]
      %v1755 = vld [vmem:[%s4 + $0x680] sm:$0xff]
      %v1756 = vld [vmem:[%s4 + $0x688] sm:$0xff]
      %v1757 = vld [vmem:[%s4 + $0x690] sm:$0xff]
      %v1758 = vld [vmem:[%s4 + $0x698] sm:$0xff]
      %v1759 = vld [vmem:[%s4 + $0x6a0] sm:$0xff]
      %v1760 = vld [vmem:[%s4 + $0x6a8] sm:$0xff]
      %v1761 = vld [vmem:[%s4 + $0x6b0] sm:$0xff]
      %v1762 = vld [vmem:[%s4 + $0x6b8] sm:$0xff]
      %v1763 = vld [vmem:[%s4 + $0x6c0] sm:$0xff]
      %v1764 = vld [vmem:[%s4 + $0x6c8] sm:$0xff]
      %v1765 = vld [vmem:[%s4 + $0x6d0] sm:$0xff]
      %v1766 = vld [vmem:[%s4 + $0x6d8] sm:$0xff]
      %v1767 = vld [vmem:[%s4 + $0x6e0] sm:$0xff]
      %v1768 = vld [vmem:[%s4 + $0x6e8] sm:$0xff]
      %v1769 = vld [vmem:[%s4 + $0x6f0] sm:$0xff]
      %v1770 = vld [vmem:[%s4 + $0x6f8] sm:$0xff]
      %v1771 = vld [vmem:[%s4 + $0x700] sm:$0xff]
      %v1772 = vld [vmem:[%s4 + $0x708] sm:$0xff]
      %v1773 = vld [vmem:[%s4 + $0x710] sm:$0xff]
      %v1774 = vld [vmem:[%s4 + $0x718] sm:$0xff]
      %v1775 = vld [vmem:[%s4 + $0x720] sm:$0xff]
      %v1776 = vld [vmem:[%s4 + $0x728] sm:$0xff]
      %v1777 = vld [vmem:[%s4 + $0x730] sm:$0xff]
      %v1778 = vld [vmem:[%s4 + $0x738] sm:$0xff]
      %v1779 = vld [vmem:[%s4 + $0x740] sm:$0xff]
      %v1780 = vld [vmem:[%s4 + $0x748] sm:$0xff]
      %v1781 = vld [vmem:[%s4 + $0x750] sm:$0xff]
      %v1782 = vld [vmem:[%s4 + $0x758] sm:$0xff]
      %v1783 = vld [vmem:[%s4 + $0x760] sm:$0xff]
      %v1784 = vld [vmem:[%s4 + $0x768] sm:$0xff]
      %v1785 = vld [vmem:[%s4 + $0x770] sm:$0xff]
      %v1786 = vld [vmem:[%s4 + $0x778] sm:$0xff]
      %v1787 = vld [vmem:[%s4 + $0x780] sm:$0xff]
      %v1788 = vld [vmem:[%s4 + $0x788] sm:$0xff]
      %v1789 = vld [vmem:[%s4 + $0x790] sm:$0xff]
      %v1790 = vld [vmem:[%s4 + $0x798] sm:$0xff]
      %v1791 = vld [vmem:[%s4 + $0x7a0] sm:$0xff]
      %v1792 = vld [vmem:[%s4 + $0x7a8] sm:$0xff]
      %v1793 = vld [vmem:[%s4 + $0x7b0] sm:$0xff]
      %v1794 = vld [vmem:[%s4 + $0x7b8] sm:$0xff]
      %v1795 = vld [vmem:[%s4 + $0x7c0] sm:$0xff]
      %v1796 = vld [vmem:[%s4 + $0x7c8] sm:$0xff]
      %v1797 = vld [vmem:[%s4 + $0x7d0] sm:$0xff]
      %v1798 = vld [vmem:[%s4 + $0x7d8] sm:$0xff]
      %v1799 = vld [vmem:[%s4 + $0x7e0] sm:$0xff]
      %v1800 = vld [vmem:[%s4 + $0x7e8] sm:$0xff]
      %v1801 = vld [vmem:[%s4 + $0x7f0] sm:$0xff]
      %v1802 = vld [vmem:[%s4 + $0x7f8] sm:$0xff]
      %v1803 = vsel %vm1291, %v1547, 0.0
      %v1804 = vsel %vm1292, %v1548, 0.0
      %v1805 = vsel %vm1293, %v1549, 0.0
      %v1806 = vsel %vm1294, %v1550, 0.0
      %v1807 = vsel %vm1295, %v1551, 0.0
      %v1808 = vsel %vm1296, %v1552, 0.0
      %v1809 = vsel %vm1297, %v1553, 0.0
      %v1810 = vsel %vm1298, %v1554, 0.0
      %v1811 = vsel %vm1299, %v1555, 0.0
      %v1812 = vsel %vm1300, %v1556, 0.0
      %v1813 = vsel %vm1301, %v1557, 0.0
      %v1814 = vsel %vm1302, %v1558, 0.0
      %v1815 = vsel %vm1303, %v1559, 0.0
      %v1816 = vsel %vm1304, %v1560, 0.0
      %v1817 = vsel %vm1305, %v1561, 0.0
      %v1818 = vsel %vm1306, %v1562, 0.0
      %v1819 = vsel %vm1307, %v1563, 0.0
      %v1820 = vsel %vm1308, %v1564, 0.0
      %v1821 = vsel %vm1309, %v1565, 0.0
      %v1822 = vsel %vm1310, %v1566, 0.0
      %v1823 = vsel %vm1311, %v1567, 0.0
      %v1824 = vsel %vm1312, %v1568, 0.0
      %v1825 = vsel %vm1313, %v1569, 0.0
      %v1826 = vsel %vm1314, %v1570, 0.0
      %v1827 = vsel %vm1315, %v1571, 0.0
      %v1828 = vsel %vm1316, %v1572, 0.0
      %v1829 = vsel %vm1317, %v1573, 0.0
      %v1830 = vsel %vm1318, %v1574, 0.0
      %v1831 = vsel %vm1319, %v1575, 0.0
      %v1832 = vsel %vm1320, %v1576, 0.0
      %v1833 = vsel %vm1321, %v1577, 0.0
      %v1834 = vsel %vm1322, %v1578, 0.0
      %v1835 = vsel %vm1323, %v1579, 0.0
      %v1836 = vsel %vm1324, %v1580, 0.0
      %v1837 = vsel %vm1325, %v1581, 0.0
      %v1838 = vsel %vm1326, %v1582, 0.0
      %v1839 = vsel %vm1327, %v1583, 0.0
      %v1840 = vsel %vm1328, %v1584, 0.0
      %v1841 = vsel %vm1329, %v1585, 0.0
      %v1842 = vsel %vm1330, %v1586, 0.0
      %v1843 = vsel %vm1331, %v1587, 0.0
      %v1844 = vsel %vm1332, %v1588, 0.0
      %v1845 = vsel %vm1333, %v1589, 0.0
      %v1846 = vsel %vm1334, %v1590, 0.0
      %v1847 = vsel %vm1335, %v1591, 0.0
      %v1848 = vsel %vm1336, %v1592, 0.0
      %v1849 = vsel %vm1337, %v1593, 0.0
      %v1850 = vsel %vm1338, %v1594, 0.0
      %v1851 = vsel %vm1339, %v1595, 0.0
      %v1852 = vsel %vm1340, %v1596, 0.0
      %v1853 = vsel %vm1341, %v1597, 0.0
      %v1854 = vsel %vm1342, %v1598, 0.0
      %v1855 = vsel %vm1343, %v1599, 0.0
      %v1856 = vsel %vm1344, %v1600, 0.0
      %v1857 = vsel %vm1345, %v1601, 0.0
      %v1858 = vsel %vm1346, %v1602, 0.0
      %v1859 = vsel %vm1347, %v1603, 0.0
      %v1860 = vsel %vm1348, %v1604, 0.0
      %v1861 = vsel %vm1349, %v1605, 0.0
      %v1862 = vsel %vm1350, %v1606, 0.0
      %v1863 = vsel %vm1351, %v1607, 0.0
      %v1864 = vsel %vm1352, %v1608, 0.0
      %v1865 = vsel %vm1353, %v1609, 0.0
      %v1866 = vsel %vm1354, %v1610, 0.0
      %v1867 = vsel %vm1355, %v1611, 0.0
      %v1868 = vsel %vm1356, %v1612, 0.0
      %v1869 = vsel %vm1357, %v1613, 0.0
      %v1870 = vsel %vm1358, %v1614, 0.0
      %v1871 = vsel %vm1359, %v1615, 0.0
      %v1872 = vsel %vm1360, %v1616, 0.0
      %v1873 = vsel %vm1361, %v1617, 0.0
      %v1874 = vsel %vm1362, %v1618, 0.0
      %v1875 = vsel %vm1363, %v1619, 0.0
      %v1876 = vsel %vm1364, %v1620, 0.0
      %v1877 = vsel %vm1365, %v1621, 0.0
      %v1878 = vsel %vm1366, %v1622, 0.0
      %v1879 = vsel %vm1367, %v1623, 0.0
      %v1880 = vsel %vm1368, %v1624, 0.0
      %v1881 = vsel %vm1369, %v1625, 0.0
      %v1882 = vsel %vm1370, %v1626, 0.0
      %v1883 = vsel %vm1371, %v1627, 0.0
      %v1884 = vsel %vm1372, %v1628, 0.0
      %v1885 = vsel %vm1373, %v1629, 0.0
      %v1886 = vsel %vm1374, %v1630, 0.0
      %v1887 = vsel %vm1375, %v1631, 0.0
      %v1888 = vsel %vm1376, %v1632, 0.0
      %v1889 = vsel %vm1377, %v1633, 0.0
      %v1890 = vsel %vm1378, %v1634, 0.0
      %v1891 = vsel %vm1379, %v1635, 0.0
      %v1892 = vsel %vm1380, %v1636, 0.0
      %v1893 = vsel %vm1381, %v1637, 0.0
      %v1894 = vsel %vm1382, %v1638, 0.0
      %v1895 = vsel %vm1383, %v1639, 0.0
      %v1896 = vsel %vm1384, %v1640, 0.0
      %v1897 = vsel %vm1385, %v1641, 0.0
      %v1898 = vsel %vm1386, %v1642, 0.0
      %v1899 = vsel %vm1387, %v1643, 0.0
      %v1900 = vsel %vm1388, %v1644, 0.0
      %v1901 = vsel %vm1389, %v1645, 0.0
      %v1902 = vsel %vm1390, %v1646, 0.0
      %v1903 = vsel %vm1391, %v1647, 0.0
      %v1904 = vsel %vm1392, %v1648, 0.0
      %v1905 = vsel %vm1393, %v1649, 0.0
      %v1906 = vsel %vm1394, %v1650, 0.0
      %v1907 = vsel %vm1395, %v1651, 0.0
      %v1908 = vsel %vm1396, %v1652, 0.0
      %v1909 = vsel %vm1397, %v1653, 0.0
      %v1910 = vsel %vm1398, %v1654, 0.0
      %v1911 = vsel %vm1399, %v1655, 0.0
      %v1912 = vsel %vm1400, %v1656, 0.0
      %v1913 = vsel %vm1401, %v1657, 0.0
      %v1914 = vsel %vm1402, %v1658, 0.0
      %v1915 = vsel %vm1403, %v1659, 0.0
      %v1916 = vsel %vm1404, %v1660, 0.0
      %v1917 = vsel %vm1405, %v1661, 0.0
      %v1918 = vsel %vm1406, %v1662, 0.0
      %v1919 = vsel %vm1407, %v1663, 0.0
      %v1920 = vsel %vm1408, %v1664, 0.0
      %v1921 = vsel %vm1409, %v1665, 0.0
      %v1922 = vsel %vm1410, %v1666, 0.0
      %v1923 = vsel %vm1411, %v1667, 0.0
      %v1924 = vsel %vm1412, %v1668, 0.0
      %v1925 = vsel %vm1413, %v1669, 0.0
      %v1926 = vsel %vm1414, %v1670, 0.0
      %v1927 = vsel %vm1415, %v1671, 0.0
      %v1928 = vsel %vm1416, %v1672, 0.0
      %v1929 = vsel %vm1417, %v1673, 0.0
      %v1930 = vsel %vm1418, %v1674, 0.0
      %v1931 = vsel %vm1419, %v1675, 0.0
      %v1932 = vsel %vm1420, %v1676, 0.0
      %v1933 = vsel %vm1421, %v1677, 0.0
      %v1934 = vsel %vm1422, %v1678, 0.0
      %v1935 = vsel %vm1423, %v1679, 0.0
      %v1936 = vsel %vm1424, %v1680, 0.0
      %v1937 = vsel %vm1425, %v1681, 0.0
      %v1938 = vsel %vm1426, %v1682, 0.0
      %v1939 = vsel %vm1427, %v1683, 0.0
      %v1940 = vsel %vm1428, %v1684, 0.0
      %v1941 = vsel %vm1429, %v1685, 0.0
      %v1942 = vsel %vm1430, %v1686, 0.0
      %v1943 = vsel %vm1431, %v1687, 0.0
      %v1944 = vsel %vm1432, %v1688, 0.0
      %v1945 = vsel %vm1433, %v1689, 0.0
      %v1946 = vsel %vm1434, %v1690, 0.0
      %v1947 = vsel %vm1435, %v1691, 0.0
      %v1948 = vsel %vm1436, %v1692, 0.0
      %v1949 = vsel %vm1437, %v1693, 0.0
      %v1950 = vsel %vm1438, %v1694, 0.0
      %v1951 = vsel %vm1439, %v1695, 0.0
      %v1952 = vsel %vm1440, %v1696, 0.0
      %v1953 = vsel %vm1441, %v1697, 0.0
      %v1954 = vsel %vm1442, %v1698, 0.0
      %v1955 = vsel %vm1443, %v1699, 0.0
      %v1956 = vsel %vm1444, %v1700, 0.0
      %v1957 = vsel %vm1445, %v1701, 0.0
      %v1958 = vsel %vm1446, %v1702, 0.0
      %v1959 = vsel %vm1447, %v1703, 0.0
      %v1960 = vsel %vm1448, %v1704, 0.0
      %v1961 = vsel %vm1449, %v1705, 0.0
      %v1962 = vsel %vm1450, %v1706, 0.0
      %v1963 = vsel %vm1451, %v1707, 0.0
      %v1964 = vsel %vm1452, %v1708, 0.0
      %v1965 = vsel %vm1453, %v1709, 0.0
      %v1966 = vsel %vm1454, %v1710, 0.0
      %v1967 = vsel %vm1455, %v1711, 0.0
      %v1968 = vsel %vm1456, %v1712, 0.0
      %v1969 = vsel %vm1457, %v1713, 0.0
      %v1970 = vsel %vm1458, %v1714, 0.0
      %v1971 = vsel %vm1459, %v1715, 0.0
      %v1972 = vsel %vm1460, %v1716, 0.0
      %v1973 = vsel %vm1461, %v1717, 0.0
      %v1974 = vsel %vm1462, %v1718, 0.0
      %v1975 = vsel %vm1463, %v1719, 0.0
      %v1976 = vsel %vm1464, %v1720, 0.0
      %v1977 = vsel %vm1465, %v1721, 0.0
      %v1978 = vsel %vm1466, %v1722, 0.0
      %v1979 = vsel %vm1467, %v1723, 0.0
      %v1980 = vsel %vm1468, %v1724, 0.0
      %v1981 = vsel %vm1469, %v1725, 0.0
      %v1982 = vsel %vm1470, %v1726, 0.0
      %v1983 = vsel %vm1471, %v1727, 0.0
      %v1984 = vsel %vm1472, %v1728, 0.0
      %v1985 = vsel %vm1473, %v1729, 0.0
      %v1986 = vsel %vm1474, %v1730, 0.0
      %v1987 = vsel %vm1475, %v1731, 0.0
      %v1988 = vsel %vm1476, %v1732, 0.0
      %v1989 = vsel %vm1477, %v1733, 0.0
      %v1990 = vsel %vm1478, %v1734, 0.0
      %v1991 = vsel %vm1479, %v1735, 0.0
      %v1992 = vsel %vm1480, %v1736, 0.0
      %v1993 = vsel %vm1481, %v1737, 0.0
      %v1994 = vsel %vm1482, %v1738, 0.0
      %v1995 = vsel %vm1483, %v1739, 0.0
      %v1996 = vsel %vm1484, %v1740, 0.0
      %v1997 = vsel %vm1485, %v1741, 0.0
      %v1998 = vsel %vm1486, %v1742, 0.0
      %v1999 = vsel %vm1487, %v1743, 0.0
      %v2000 = vsel %vm1488, %v1744, 0.0
      %v2001 = vsel %vm1489, %v1745, 0.0
      %v2002 = vsel %vm1490, %v1746, 0.0
      %v2003 = vsel %vm1491, %v1747, 0.0
      %v2004 = vsel %vm1492, %v1748, 0.0
      %v2005 = vsel %vm1493, %v1749, 0.0
      %v2006 = vsel %vm1494, %v1750, 0.0
      %v2007 = vsel %vm1495, %v1751, 0.0
      %v2008 = vsel %vm1496, %v1752, 0.0
      %v2009 = vsel %vm1497, %v1753, 0.0
      %v2010 = vsel %vm1498, %v1754, 0.0
      %v2011 = vsel %vm1499, %v1755, 0.0
      %v2012 = vsel %vm1500, %v1756, 0.0
      %v2013 = vsel %vm1501, %v1757, 0.0
      %v2014 = vsel %vm1502, %v1758, 0.0
      %v2015 = vsel %vm1503, %v1759, 0.0
      %v2016 = vsel %vm1504, %v1760, 0.0
      %v2017 = vsel %vm1505, %v1761, 0.0
      %v2018 = vsel %vm1506, %v1762, 0.0
      %v2019 = vsel %vm1507, %v1763, 0.0
      %v2020 = vsel %vm1508, %v1764, 0.0
      %v2021 = vsel %vm1509, %v1765, 0.0
      %v2022 = vsel %vm1510, %v1766, 0.0
      %v2023 = vsel %vm1511, %v1767, 0.0
      %v2024 = vsel %vm1512, %v1768, 0.0
      %v2025 = vsel %vm1513, %v1769, 0.0
      %v2026 = vsel %vm1514, %v1770, 0.0
      %v2027 = vsel %vm1515, %v1771, 0.0
      %v2028 = vsel %vm1516, %v1772, 0.0
      %v2029 = vsel %vm1517, %v1773, 0.0
      %v2030 = vsel %vm1518, %v1774, 0.0
      %v2031 = vsel %vm1519, %v1775, 0.0
      %v2032 = vsel %vm1520, %v1776, 0.0
      %v2033 = vsel %vm1521, %v1777, 0.0
      %v2034 = vsel %vm1522, %v1778, 0.0
      %v2035 = vsel %vm1523, %v1779, 0.0
      %v2036 = vsel %vm1524, %v1780, 0.0
      %v2037 = vsel %vm1525, %v1781, 0.0
      %v2038 = vsel %vm1526, %v1782, 0.0
      %v2039 = vsel %vm1527, %v1783, 0.0
      %v2040 = vsel %vm1528, %v1784, 0.0
      %v2041 = vsel %vm1529, %v1785, 0.0
      %v2042 = vsel %vm1530, %v1786, 0.0
      %v2043 = vsel %vm1531, %v1787, 0.0
      %v2044 = vsel %vm1532, %v1788, 0.0
      %v2045 = vsel %vm1533, %v1789, 0.0
      %v2046 = vsel %vm1534, %v1790, 0.0
      %v2047 = vsel %vm1535, %v1791, 0.0
      %v2048 = vsel %vm1536, %v1792, 0.0
      %v2049 = vsel %vm1537, %v1793, 0.0
      %v2050 = vsel %vm1538, %v1794, 0.0
      %v2051 = vsel %vm1539, %v1795, 0.0
      %v2052 = vsel %vm1540, %v1796, 0.0
      %v2053 = vsel %vm1541, %v1797, 0.0
      %v2054 = vsel %vm1542, %v1798, 0.0
      %v2055 = vsel %vm1543, %v1799, 0.0
      %v2056 = vsel %vm1544, %v1800, 0.0
      %v2057 = vsel %vm1545, %v1801, 0.0
      %v2058 = vsel %vm1546, %v1802, 0.0
      %v2059 = vsel %vm1035, 1.0, %v1803
      %v2060 = vsel %vm1036, 1.0, %v1804
      %v2061 = vsel %vm1037, 1.0, %v1805
      %v2062 = vsel %vm1038, 1.0, %v1806
      %v2063 = vsel %vm1039, 1.0, %v1807
      %v2064 = vsel %vm1040, 1.0, %v1808
      %v2065 = vsel %vm1041, 1.0, %v1809
      %v2066 = vsel %vm1042, 1.0, %v1810
      %v2067 = vsel %vm1043, 1.0, %v1811
      %v2068 = vsel %vm1044, 1.0, %v1812
      %v2069 = vsel %vm1045, 1.0, %v1813
      %v2070 = vsel %vm1046, 1.0, %v1814
      %v2071 = vsel %vm1047, 1.0, %v1815
      %v2072 = vsel %vm1048, 1.0, %v1816
      %v2073 = vsel %vm1049, 1.0, %v1817
      %v2074 = vsel %vm1050, 1.0, %v1818
      %v2075 = vsel %vm1051, 1.0, %v1819
      %v2076 = vsel %vm1052, 1.0, %v1820
      %v2077 = vsel %vm1053, 1.0, %v1821
      %v2078 = vsel %vm1054, 1.0, %v1822
      %v2079 = vsel %vm1055, 1.0, %v1823
      %v2080 = vsel %vm1056, 1.0, %v1824
      %v2081 = vsel %vm1057, 1.0, %v1825
      %v2082 = vsel %vm1058, 1.0, %v1826
      %v2083 = vsel %vm1059, 1.0, %v1827
      %v2084 = vsel %vm1060, 1.0, %v1828
      %v2085 = vsel %vm1061, 1.0, %v1829
      %v2086 = vsel %vm1062, 1.0, %v1830
      %v2087 = vsel %vm1063, 1.0, %v1831
      %v2088 = vsel %vm1064, 1.0, %v1832
      %v2089 = vsel %vm1065, 1.0, %v1833
      %v2090 = vsel %vm1066, 1.0, %v1834
      %v2091 = vsel %vm1067, 1.0, %v1835
      %v2092 = vsel %vm1068, 1.0, %v1836
      %v2093 = vsel %vm1069, 1.0, %v1837
      %v2094 = vsel %vm1070, 1.0, %v1838
      %v2095 = vsel %vm1071, 1.0, %v1839
      %v2096 = vsel %vm1072, 1.0, %v1840
      %v2097 = vsel %vm1073, 1.0, %v1841
      %v2098 = vsel %vm1074, 1.0, %v1842
      %v2099 = vsel %vm1075, 1.0, %v1843
      %v2100 = vsel %vm1076, 1.0, %v1844
      %v2101 = vsel %vm1077, 1.0, %v1845
      %v2102 = vsel %vm1078, 1.0, %v1846
      %v2103 = vsel %vm1079, 1.0, %v1847
      %v2104 = vsel %vm1080, 1.0, %v1848
      %v2105 = vsel %vm1081, 1.0, %v1849
      %v2106 = vsel %vm1082, 1.0, %v1850
      %v2107 = vsel %vm1083, 1.0, %v1851
      %v2108 = vsel %vm1084, 1.0, %v1852
      %v2109 = vsel %vm1085, 1.0, %v1853
      %v2110 = vsel %vm1086, 1.0, %v1854
      %v2111 = vsel %vm1087, 1.0, %v1855
      %v2112 = vsel %vm1088, 1.0, %v1856
      %v2113 = vsel %vm1089, 1.0, %v1857
      %v2114 = vsel %vm1090, 1.0, %v1858
      %v2115 = vsel %vm1091, 1.0, %v1859
      %v2116 = vsel %vm1092, 1.0, %v1860
      %v2117 = vsel %vm1093, 1.0, %v1861
      %v2118 = vsel %vm1094, 1.0, %v1862
      %v2119 = vsel %vm1095, 1.0, %v1863
      %v2120 = vsel %vm1096, 1.0, %v1864
      %v2121 = vsel %vm1097, 1.0, %v1865
      %v2122 = vsel %vm1098, 1.0, %v1866
      %v2123 = vsel %vm1099, 1.0, %v1867
      %v2124 = vsel %vm1100, 1.0, %v1868
      %v2125 = vsel %vm1101, 1.0, %v1869
      %v2126 = vsel %vm1102, 1.0, %v1870
      %v2127 = vsel %vm1103, 1.0, %v1871
      %v2128 = vsel %vm1104, 1.0, %v1872
      %v2129 = vsel %vm1105, 1.0, %v1873
      %v2130 = vsel %vm1106, 1.0, %v1874
      %v2131 = vsel %vm1107, 1.0, %v1875
      %v2132 = vsel %vm1108, 1.0, %v1876
      %v2133 = vsel %vm1109, 1.0, %v1877
      %v2134 = vsel %vm1110, 1.0, %v1878
      %v2135 = vsel %vm1111, 1.0, %v1879
      %v2136 = vsel %vm1112, 1.0, %v1880
      %v2137 = vsel %vm1113, 1.0, %v1881
      %v2138 = vsel %vm1114, 1.0, %v1882
      %v2139 = vsel %vm1115, 1.0, %v1883
      %v2140 = vsel %vm1116, 1.0, %v1884
      %v2141 = vsel %vm1117, 1.0, %v1885
      %v2142 = vsel %vm1118, 1.0, %v1886
      %v2143 = vsel %vm1119, 1.0, %v1887
      %v2144 = vsel %vm1120, 1.0, %v1888
      %v2145 = vsel %vm1121, 1.0, %v1889
      %v2146 = vsel %vm1122, 1.0, %v1890
      %v2147 = vsel %vm1123, 1.0, %v1891
      %v2148 = vsel %vm1124, 1.0, %v1892
      %v2149 = vsel %vm1125, 1.0, %v1893
      %v2150 = vsel %vm1126, 1.0, %v1894
      %v2151 = vsel %vm1127, 1.0, %v1895
      %v2152 = vsel %vm1128, 1.0, %v1896
      %v2153 = vsel %vm1129, 1.0, %v1897
      %v2154 = vsel %vm1130, 1.0, %v1898
      %v2155 = vsel %vm1131, 1.0, %v1899
      %v2156 = vsel %vm1132, 1.0, %v1900
      %v2157 = vsel %vm1133, 1.0, %v1901
      %v2158 = vsel %vm1134, 1.0, %v1902
      %v2159 = vsel %vm1135, 1.0, %v1903
      %v2160 = vsel %vm1136, 1.0, %v1904
      %v2161 = vsel %vm1137, 1.0, %v1905
      %v2162 = vsel %vm1138, 1.0, %v1906
      %v2163 = vsel %vm1139, 1.0, %v1907
      %v2164 = vsel %vm1140, 1.0, %v1908
      %v2165 = vsel %vm1141, 1.0, %v1909
      %v2166 = vsel %vm1142, 1.0, %v1910
      %v2167 = vsel %vm1143, 1.0, %v1911
      %v2168 = vsel %vm1144, 1.0, %v1912
      %v2169 = vsel %vm1145, 1.0, %v1913
      %v2170 = vsel %vm1146, 1.0, %v1914
      %v2171 = vsel %vm1147, 1.0, %v1915
      %v2172 = vsel %vm1148, 1.0, %v1916
      %v2173 = vsel %vm1149, 1.0, %v1917
      %v2174 = vsel %vm1150, 1.0, %v1918
      %v2175 = vsel %vm1151, 1.0, %v1919
      %v2176 = vsel %vm1152, 1.0, %v1920
      %v2177 = vsel %vm1153, 1.0, %v1921
      %v2178 = vsel %vm1154, 1.0, %v1922
      %v2179 = vsel %vm1155, 1.0, %v1923
      %v2180 = vsel %vm1156, 1.0, %v1924
      %v2181 = vsel %vm1157, 1.0, %v1925
      %v2182 = vsel %vm1158, 1.0, %v1926
      %v2183 = vsel %vm1159, 1.0, %v1927
      %v2184 = vsel %vm1160, 1.0, %v1928
      %v2185 = vsel %vm1161, 1.0, %v1929
      %v2186 = vsel %vm1162, 1.0, %v1930
      %v2187 = vsel %vm1163, 1.0, %v1931
      %v2188 = vsel %vm1164, 1.0, %v1932
      %v2189 = vsel %vm1165, 1.0, %v1933
      %v2190 = vsel %vm1166, 1.0, %v1934
      %v2191 = vsel %vm1167, 1.0, %v1935
      %v2192 = vsel %vm1168, 1.0, %v1936
      %v2193 = vsel %vm1169, 1.0, %v1937
      %v2194 = vsel %vm1170, 1.0, %v1938
      %v2195 = vsel %vm1171, 1.0, %v1939
      %v2196 = vsel %vm1172, 1.0, %v1940
      %v2197 = vsel %vm1173, 1.0, %v1941
      %v2198 = vsel %vm1174, 1.0, %v1942
      %v2199 = vsel %vm1175, 1.0, %v1943
      %v2200 = vsel %vm1176, 1.0, %v1944
      %v2201 = vsel %vm1177, 1.0, %v1945
      %v2202 = vsel %vm1178, 1.0, %v1946
      %v2203 = vsel %vm1179, 1.0, %v1947
      %v2204 = vsel %vm1180, 1.0, %v1948
      %v2205 = vsel %vm1181, 1.0, %v1949
      %v2206 = vsel %vm1182, 1.0, %v1950
      %v2207 = vsel %vm1183, 1.0, %v1951
      %v2208 = vsel %vm1184, 1.0, %v1952
      %v2209 = vsel %vm1185, 1.0, %v1953
      %v2210 = vsel %vm1186, 1.0, %v1954
      %v2211 = vsel %vm1187, 1.0, %v1955
      %v2212 = vsel %vm1188, 1.0, %v1956
      %v2213 = vsel %vm1189, 1.0, %v1957
      %v2214 = vsel %vm1190, 1.0, %v1958
      %v2215 = vsel %vm1191, 1.0, %v1959
      %v2216 = vsel %vm1192, 1.0, %v1960
      %v2217 = vsel %vm1193, 1.0, %v1961
      %v2218 = vsel %vm1194, 1.0, %v1962
      %v2219 = vsel %vm1195, 1.0, %v1963
      %v2220 = vsel %vm1196, 1.0, %v1964
      %v2221 = vsel %vm1197, 1.0, %v1965
      %v2222 = vsel %vm1198, 1.0, %v1966
      %v2223 = vsel %vm1199, 1.0, %v1967
      %v2224 = vsel %vm1200, 1.0, %v1968
      %v2225 = vsel %vm1201, 1.0, %v1969
      %v2226 = vsel %vm1202, 1.0, %v1970
      %v2227 = vsel %vm1203, 1.0, %v1971
      %v2228 = vsel %vm1204, 1.0, %v1972
      %v2229 = vsel %vm1205, 1.0, %v1973
      %v2230 = vsel %vm1206, 1.0, %v1974
      %v2231 = vsel %vm1207, 1.0, %v1975
      %v2232 = vsel %vm1208, 1.0, %v1976
      %v2233 = vsel %vm1209, 1.0, %v1977
      %v2234 = vsel %vm1210, 1.0, %v1978
      %v2235 = vsel %vm1211, 1.0, %v1979
      %v2236 = vsel %vm1212, 1.0, %v1980
      %v2237 = vsel %vm1213, 1.0, %v1981
      %v2238 = vsel %vm1214, 1.0, %v1982
      %v2239 = vsel %vm1215, 1.0, %v1983
      %v2240 = vsel %vm1216, 1.0, %v1984
      %v2241 = vsel %vm1217, 1.0, %v1985
      %v2242 = vsel %vm1218, 1.0, %v1986
      %v2243 = vsel %vm1219, 1.0, %v1987
      %v2244 = vsel %vm1220, 1.0, %v1988
      %v2245 = vsel %vm1221, 1.0, %v1989
      %v2246 = vsel %vm1222, 1.0, %v1990
      %v2247 = vsel %vm1223, 1.0, %v1991
      %v2248 = vsel %vm1224, 1.0, %v1992
      %v2249 = vsel %vm1225, 1.0, %v1993
      %v2250 = vsel %vm1226, 1.0, %v1994
      %v2251 = vsel %vm1227, 1.0, %v1995
      %v2252 = vsel %vm1228, 1.0, %v1996
      %v2253 = vsel %vm1229, 1.0, %v1997
      %v2254 = vsel %vm1230, 1.0, %v1998
      %v2255 = vsel %vm1231, 1.0, %v1999
      %v2256 = vsel %vm1232, 1.0, %v2000
      %v2257 = vsel %vm1233, 1.0, %v2001
      %v2258 = vsel %vm1234, 1.0, %v2002
      %v2259 = vsel %vm1235, 1.0, %v2003
      %v2260 = vsel %vm1236, 1.0, %v2004
      %v2261 = vsel %vm1237, 1.0, %v2005
      %v2262 = vsel %vm1238, 1.0, %v2006
      %v2263 = vsel %vm1239, 1.0, %v2007
      %v2264 = vsel %vm1240, 1.0, %v2008
      %v2265 = vsel %vm1241, 1.0, %v2009
      %v2266 = vsel %vm1242, 1.0, %v2010
      %v2267 = vsel %vm1243, 1.0, %v2011
      %v2268 = vsel %vm1244, 1.0, %v2012
      %v2269 = vsel %vm1245, 1.0, %v2013
      %v2270 = vsel %vm1246, 1.0, %v2014
      %v2271 = vsel %vm1247, 1.0, %v2015
      %v2272 = vsel %vm1248, 1.0, %v2016
      %v2273 = vsel %vm1249, 1.0, %v2017
      %v2274 = vsel %vm1250, 1.0, %v2018
      %v2275 = vsel %vm1251, 1.0, %v2019
      %v2276 = vsel %vm1252, 1.0, %v2020
      %v2277 = vsel %vm1253, 1.0, %v2021
      %v2278 = vsel %vm1254, 1.0, %v2022
      %v2279 = vsel %vm1255, 1.0, %v2023
      %v2280 = vsel %vm1256, 1.0, %v2024
      %v2281 = vsel %vm1257, 1.0, %v2025
      %v2282 = vsel %vm1258, 1.0, %v2026
      %v2283 = vsel %vm1259, 1.0, %v2027
      %v2284 = vsel %vm1260, 1.0, %v2028
      %v2285 = vsel %vm1261, 1.0, %v2029
      %v2286 = vsel %vm1262, 1.0, %v2030
      %v2287 = vsel %vm1263, 1.0, %v2031
      %v2288 = vsel %vm1264, 1.0, %v2032
      %v2289 = vsel %vm1265, 1.0, %v2033
      %v2290 = vsel %vm1266, 1.0, %v2034
      %v2291 = vsel %vm1267, 1.0, %v2035
      %v2292 = vsel %vm1268, 1.0, %v2036
      %v2293 = vsel %vm1269, 1.0, %v2037
      %v2294 = vsel %vm1270, 1.0, %v2038
      %v2295 = vsel %vm1271, 1.0, %v2039
      %v2296 = vsel %vm1272, 1.0, %v2040
      %v2297 = vsel %vm1273, 1.0, %v2041
      %v2298 = vsel %vm1274, 1.0, %v2042
      %v2299 = vsel %vm1275, 1.0, %v2043
      %v2300 = vsel %vm1276, 1.0, %v2044
      %v2301 = vsel %vm1277, 1.0, %v2045
      %v2302 = vsel %vm1278, 1.0, %v2046
      %v2303 = vsel %vm1279, 1.0, %v2047
      %v2304 = vsel %vm1280, 1.0, %v2048
      %v2305 = vsel %vm1281, 1.0, %v2049
      %v2306 = vsel %vm1282, 1.0, %v2050
      %v2307 = vsel %vm1283, 1.0, %v2051
      %v2308 = vsel %vm1284, 1.0, %v2052
      %v2309 = vsel %vm1285, 1.0, %v2053
      %v2310 = vsel %vm1286, 1.0, %v2054
      %v2311 = vsel %vm1287, 1.0, %v2055
      %v2312 = vsel %vm1288, 1.0, %v2056
      %v2313 = vsel %vm1289, 1.0, %v2057
      %v2314 = vsel %vm1290, 1.0, %v2058
      %v2315 = vadd.f32 %v2059, %v2060
      %v2316 = vadd.f32 %v2315, %v2061
      %v2317 = vadd.f32 %v2316, %v2062
      %2318 = vadd.xlane.f32.xlu0 %v2317
      %v2319 = vpop.xlane.xlu0 %2318
      %v2320 = vadd.f32 %v2063, %v2064
      %v2321 = vadd.f32 %v2320, %v2065
      %v2322 = vadd.f32 %v2321, %v2066
      %2323 = vadd.xlane.f32.xlu0 %v2322
      %v2324 = vpop.xlane.xlu0 %2323
      %v2325 = vadd.f32 %v2067, %v2068
      %v2326 = vadd.f32 %v2325, %v2069
      %v2327 = vadd.f32 %v2326, %v2070
      %2328 = vadd.xlane.f32.xlu0 %v2327
      %v2329 = vpop.xlane.xlu0 %2328
      %v2330 = vadd.f32 %v2071, %v2072
      %v2331 = vadd.f32 %v2330, %v2073
      %v2332 = vadd.f32 %v2331, %v2074
      %2333 = vadd.xlane.f32.xlu0 %v2332
      %v2334 = vpop.xlane.xlu0 %2333
      %v2335 = vadd.f32 %v2075, %v2076
      %v2336 = vadd.f32 %v2335, %v2077
      %v2337 = vadd.f32 %v2336, %v2078
      %2338 = vadd.xlane.f32.xlu0 %v2337
      %v2339 = vpop.xlane.xlu0 %2338
      %v2340 = vadd.f32 %v2079, %v2080
      %v2341 = vadd.f32 %v2340, %v2081
      %v2342 = vadd.f32 %v2341, %v2082
      %2343 = vadd.xlane.f32.xlu0 %v2342
      %v2344 = vpop.xlane.xlu0 %2343
      %v2345 = vadd.f32 %v2083, %v2084
      %v2346 = vadd.f32 %v2345, %v2085
      %v2347 = vadd.f32 %v2346, %v2086
      %2348 = vadd.xlane.f32.xlu0 %v2347
      %v2349 = vpop.xlane.xlu0 %2348
      %v2350 = vadd.f32 %v2087, %v2088
      %v2351 = vadd.f32 %v2350, %v2089
      %v2352 = vadd.f32 %v2351, %v2090
      %2353 = vadd.xlane.f32.xlu0 %v2352
      %v2354 = vpop.xlane.xlu0 %2353
      %v2355 = vadd.f32 %v2091, %v2092
      %v2356 = vadd.f32 %v2355, %v2093
      %v2357 = vadd.f32 %v2356, %v2094
      %2358 = vadd.xlane.f32.xlu0 %v2357
      %v2359 = vpop.xlane.xlu0 %2358
      %v2360 = vadd.f32 %v2095, %v2096
      %v2361 = vadd.f32 %v2360, %v2097
      %v2362 = vadd.f32 %v2361, %v2098
      %2363 = vadd.xlane.f32.xlu0 %v2362
      %v2364 = vpop.xlane.xlu0 %2363
      %v2365 = vadd.f32 %v2099, %v2100
      %v2366 = vadd.f32 %v2365, %v2101
      %v2367 = vadd.f32 %v2366, %v2102
      %2368 = vadd.xlane.f32.xlu0 %v2367
      %v2369 = vpop.xlane.xlu0 %2368
      %v2370 = vadd.f32 %v2103, %v2104
      %v2371 = vadd.f32 %v2370, %v2105
      %v2372 = vadd.f32 %v2371, %v2106
      %2373 = vadd.xlane.f32.xlu0 %v2372
      %v2374 = vpop.xlane.xlu0 %2373
      %v2375 = vadd.f32 %v2107, %v2108
      %v2376 = vadd.f32 %v2375, %v2109
      %v2377 = vadd.f32 %v2376, %v2110
      %2378 = vadd.xlane.f32.xlu0 %v2377
      %v2379 = vpop.xlane.xlu0 %2378
      %v2380 = vadd.f32 %v2111, %v2112
      %v2381 = vadd.f32 %v2380, %v2113
      %v2382 = vadd.f32 %v2381, %v2114
      %2383 = vadd.xlane.f32.xlu0 %v2382
      %v2384 = vpop.xlane.xlu0 %2383
      %v2385 = vadd.f32 %v2115, %v2116
      %v2386 = vadd.f32 %v2385, %v2117
      %v2387 = vadd.f32 %v2386, %v2118
      %2388 = vadd.xlane.f32.xlu0 %v2387
      %v2389 = vpop.xlane.xlu0 %2388
      %v2390 = vadd.f32 %v2119, %v2120
      %v2391 = vadd.f32 %v2390, %v2121
      %v2392 = vadd.f32 %v2391, %v2122
      %2393 = vadd.xlane.f32.xlu0 %v2392
      %v2394 = vpop.xlane.xlu0 %2393
      %v2395 = vadd.f32 %v2123, %v2124
      %v2396 = vadd.f32 %v2395, %v2125
      %v2397 = vadd.f32 %v2396, %v2126
      %2398 = vadd.xlane.f32.xlu0 %v2397
      %v2399 = vpop.xlane.xlu0 %2398
      %v2400 = vadd.f32 %v2127, %v2128
      %v2401 = vadd.f32 %v2400, %v2129
      %v2402 = vadd.f32 %v2401, %v2130
      %2403 = vadd.xlane.f32.xlu0 %v2402
      %v2404 = vpop.xlane.xlu0 %2403
      %v2405 = vadd.f32 %v2131, %v2132
      %v2406 = vadd.f32 %v2405, %v2133
      %v2407 = vadd.f32 %v2406, %v2134
      %2408 = vadd.xlane.f32.xlu0 %v2407
      %v2409 = vpop.xlane.xlu0 %2408
      %v2410 = vadd.f32 %v2135, %v2136
      %v2411 = vadd.f32 %v2410, %v2137
      %v2412 = vadd.f32 %v2411, %v2138
      %2413 = vadd.xlane.f32.xlu0 %v2412
      %v2414 = vpop.xlane.xlu0 %2413
      %v2415 = vadd.f32 %v2139, %v2140
      %v2416 = vadd.f32 %v2415, %v2141
      %v2417 = vadd.f32 %v2416, %v2142
      %2418 = vadd.xlane.f32.xlu0 %v2417
      %v2419 = vpop.xlane.xlu0 %2418
      %v2420 = vadd.f32 %v2143, %v2144
      %v2421 = vadd.f32 %v2420, %v2145
      %v2422 = vadd.f32 %v2421, %v2146
      %2423 = vadd.xlane.f32.xlu0 %v2422
      %v2424 = vpop.xlane.xlu0 %2423
      %v2425 = vadd.f32 %v2147, %v2148
      %v2426 = vadd.f32 %v2425, %v2149
      %v2427 = vadd.f32 %v2426, %v2150
      %2428 = vadd.xlane.f32.xlu0 %v2427
      %v2429 = vpop.xlane.xlu0 %2428
      %v2430 = vadd.f32 %v2151, %v2152
      %v2431 = vadd.f32 %v2430, %v2153
      %v2432 = vadd.f32 %v2431, %v2154
      %2433 = vadd.xlane.f32.xlu0 %v2432
      %v2434 = vpop.xlane.xlu0 %2433
      %v2435 = vadd.f32 %v2155, %v2156
      %v2436 = vadd.f32 %v2435, %v2157
      %v2437 = vadd.f32 %v2436, %v2158
      %2438 = vadd.xlane.f32.xlu0 %v2437
      %v2439 = vpop.xlane.xlu0 %2438
      %v2440 = vadd.f32 %v2159, %v2160
      %v2441 = vadd.f32 %v2440, %v2161
      %v2442 = vadd.f32 %v2441, %v2162
      %2443 = vadd.xlane.f32.xlu0 %v2442
      %v2444 = vpop.xlane.xlu0 %2443
      %v2445 = vadd.f32 %v2163, %v2164
      %v2446 = vadd.f32 %v2445, %v2165
      %v2447 = vadd.f32 %v2446, %v2166
      %2448 = vadd.xlane.f32.xlu0 %v2447
      %v2449 = vpop.xlane.xlu0 %2448
      %v2450 = vadd.f32 %v2167, %v2168
      %v2451 = vadd.f32 %v2450, %v2169
      %v2452 = vadd.f32 %v2451, %v2170
      %2453 = vadd.xlane.f32.xlu0 %v2452
      %v2454 = vpop.xlane.xlu0 %2453
      %v2455 = vadd.f32 %v2171, %v2172
      %v2456 = vadd.f32 %v2455, %v2173
      %v2457 = vadd.f32 %v2456, %v2174
      %2458 = vadd.xlane.f32.xlu0 %v2457
      %v2459 = vpop.xlane.xlu0 %2458
      %v2460 = vadd.f32 %v2175, %v2176
      %v2461 = vadd.f32 %v2460, %v2177
      %v2462 = vadd.f32 %v2461, %v2178
      %2463 = vadd.xlane.f32.xlu0 %v2462
      %v2464 = vpop.xlane.xlu0 %2463
      %v2465 = vadd.f32 %v2179, %v2180
      %v2466 = vadd.f32 %v2465, %v2181
      %v2467 = vadd.f32 %v2466, %v2182
      %2468 = vadd.xlane.f32.xlu0 %v2467
      %v2469 = vpop.xlane.xlu0 %2468
      %v2470 = vadd.f32 %v2183, %v2184
      %v2471 = vadd.f32 %v2470, %v2185
      %v2472 = vadd.f32 %v2471, %v2186
      %2473 = vadd.xlane.f32.xlu0 %v2472
      %v2474 = vpop.xlane.xlu0 %2473
      %v2475 = vadd.f32 %v2187, %v2188
      %v2476 = vadd.f32 %v2475, %v2189
      %v2477 = vadd.f32 %v2476, %v2190
      %2478 = vadd.xlane.f32.xlu0 %v2477
      %v2479 = vpop.xlane.xlu0 %2478
      %v2480 = vadd.f32 %v2191, %v2192
      %v2481 = vadd.f32 %v2480, %v2193
      %v2482 = vadd.f32 %v2481, %v2194
      %2483 = vadd.xlane.f32.xlu0 %v2482
      %v2484 = vpop.xlane.xlu0 %2483
      %v2485 = vadd.f32 %v2195, %v2196
      %v2486 = vadd.f32 %v2485, %v2197
      %v2487 = vadd.f32 %v2486, %v2198
      %2488 = vadd.xlane.f32.xlu0 %v2487
      %v2489 = vpop.xlane.xlu0 %2488
      %v2490 = vadd.f32 %v2199, %v2200
      %v2491 = vadd.f32 %v2490, %v2201
      %v2492 = vadd.f32 %v2491, %v2202
      %2493 = vadd.xlane.f32.xlu0 %v2492
      %v2494 = vpop.xlane.xlu0 %2493
      %v2495 = vadd.f32 %v2203, %v2204
      %v2496 = vadd.f32 %v2495, %v2205
      %v2497 = vadd.f32 %v2496, %v2206
      %2498 = vadd.xlane.f32.xlu0 %v2497
      %v2499 = vpop.xlane.xlu0 %2498
      %v2500 = vadd.f32 %v2207, %v2208
      %v2501 = vadd.f32 %v2500, %v2209
      %v2502 = vadd.f32 %v2501, %v2210
      %2503 = vadd.xlane.f32.xlu0 %v2502
      %v2504 = vpop.xlane.xlu0 %2503
      %v2505 = vadd.f32 %v2211, %v2212
      %v2506 = vadd.f32 %v2505, %v2213
      %v2507 = vadd.f32 %v2506, %v2214
      %2508 = vadd.xlane.f32.xlu0 %v2507
      %v2509 = vpop.xlane.xlu0 %2508
      %v2510 = vadd.f32 %v2215, %v2216
      %v2511 = vadd.f32 %v2510, %v2217
      %v2512 = vadd.f32 %v2511, %v2218
      %2513 = vadd.xlane.f32.xlu0 %v2512
      %v2514 = vpop.xlane.xlu0 %2513
      %v2515 = vadd.f32 %v2219, %v2220
      %v2516 = vadd.f32 %v2515, %v2221
      %v2517 = vadd.f32 %v2516, %v2222
      %2518 = vadd.xlane.f32.xlu0 %v2517
      %v2519 = vpop.xlane.xlu0 %2518
      %v2520 = vadd.f32 %v2223, %v2224
      %v2521 = vadd.f32 %v2520, %v2225
      %v2522 = vadd.f32 %v2521, %v2226
      %2523 = vadd.xlane.f32.xlu0 %v2522
      %v2524 = vpop.xlane.xlu0 %2523
      %v2525 = vadd.f32 %v2227, %v2228
      %v2526 = vadd.f32 %v2525, %v2229
      %v2527 = vadd.f32 %v2526, %v2230
      %2528 = vadd.xlane.f32.xlu0 %v2527
      %v2529 = vpop.xlane.xlu0 %2528
      %v2530 = vadd.f32 %v2231, %v2232
      %v2531 = vadd.f32 %v2530, %v2233
      %v2532 = vadd.f32 %v2531, %v2234
      %2533 = vadd.xlane.f32.xlu0 %v2532
      %v2534 = vpop.xlane.xlu0 %2533
      %v2535 = vadd.f32 %v2235, %v2236
      %v2536 = vadd.f32 %v2535, %v2237
      %v2537 = vadd.f32 %v2536, %v2238
      %2538 = vadd.xlane.f32.xlu0 %v2537
      %v2539 = vpop.xlane.xlu0 %2538
      %v2540 = vadd.f32 %v2239, %v2240
      %v2541 = vadd.f32 %v2540, %v2241
      %v2542 = vadd.f32 %v2541, %v2242
      %2543 = vadd.xlane.f32.xlu0 %v2542
      %v2544 = vpop.xlane.xlu0 %2543
      %v2545 = vadd.f32 %v2243, %v2244
      %v2546 = vadd.f32 %v2545, %v2245
      %v2547 = vadd.f32 %v2546, %v2246
      %2548 = vadd.xlane.f32.xlu0 %v2547
      %v2549 = vpop.xlane.xlu0 %2548
      %v2550 = vadd.f32 %v2247, %v2248
      %v2551 = vadd.f32 %v2550, %v2249
      %v2552 = vadd.f32 %v2551, %v2250
      %2553 = vadd.xlane.f32.xlu0 %v2552
      %v2554 = vpop.xlane.xlu0 %2553
      %v2555 = vadd.f32 %v2251, %v2252
      %v2556 = vadd.f32 %v2555, %v2253
      %v2557 = vadd.f32 %v2556, %v2254
      %2558 = vadd.xlane.f32.xlu0 %v2557
      %v2559 = vpop.xlane.xlu0 %2558
      %v2560 = vadd.f32 %v2255, %v2256
      %v2561 = vadd.f32 %v2560, %v2257
      %v2562 = vadd.f32 %v2561, %v2258
      %2563 = vadd.xlane.f32.xlu0 %v2562
      %v2564 = vpop.xlane.xlu0 %2563
      %v2565 = vadd.f32 %v2259, %v2260
      %v2566 = vadd.f32 %v2565, %v2261
      %v2567 = vadd.f32 %v2566, %v2262
      %2568 = vadd.xlane.f32.xlu0 %v2567
      %v2569 = vpop.xlane.xlu0 %2568
      %v2570 = vadd.f32 %v2263, %v2264
      %v2571 = vadd.f32 %v2570, %v2265
      %v2572 = vadd.f32 %v2571, %v2266
      %2573 = vadd.xlane.f32.xlu0 %v2572
      %v2574 = vpop.xlane.xlu0 %2573
      %v2575 = vadd.f32 %v2267, %v2268
      %v2576 = vadd.f32 %v2575, %v2269
      %v2577 = vadd.f32 %v2576, %v2270
      %2578 = vadd.xlane.f32.xlu0 %v2577
      %v2579 = vpop.xlane.xlu0 %2578
      %v2580 = vadd.f32 %v2271, %v2272
      %v2581 = vadd.f32 %v2580, %v2273
      %v2582 = vadd.f32 %v2581, %v2274
      %2583 = vadd.xlane.f32.xlu0 %v2582
      %v2584 = vpop.xlane.xlu0 %2583
      %v2585 = vadd.f32 %v2275, %v2276
      %v2586 = vadd.f32 %v2585, %v2277
      %v2587 = vadd.f32 %v2586, %v2278
      %2588 = vadd.xlane.f32.xlu0 %v2587
      %v2589 = vpop.xlane.xlu0 %2588
      %v2590 = vadd.f32 %v2279, %v2280
      %v2591 = vadd.f32 %v2590, %v2281
      %v2592 = vadd.f32 %v2591, %v2282
      %2593 = vadd.xlane.f32.xlu0 %v2592
      %v2594 = vpop.xlane.xlu0 %2593
      %v2595 = vadd.f32 %v2283, %v2284
      %v2596 = vadd.f32 %v2595, %v2285
      %v2597 = vadd.f32 %v2596, %v2286
      %2598 = vadd.xlane.f32.xlu0 %v2597
      %v2599 = vpop.xlane.xlu0 %2598
      %v2600 = vadd.f32 %v2287, %v2288
      %v2601 = vadd.f32 %v2600, %v2289
      %v2602 = vadd.f32 %v2601, %v2290
      %2603 = vadd.xlane.f32.xlu0 %v2602
      %v2604 = vpop.xlane.xlu0 %2603
      %v2605 = vadd.f32 %v2291, %v2292
      %v2606 = vadd.f32 %v2605, %v2293
      %v2607 = vadd.f32 %v2606, %v2294
      %2608 = vadd.xlane.f32.xlu0 %v2607
      %v2609 = vpop.xlane.xlu0 %2608
      %v2610 = vadd.f32 %v2295, %v2296
      %v2611 = vadd.f32 %v2610, %v2297
      %v2612 = vadd.f32 %v2611, %v2298
      %2613 = vadd.xlane.f32.xlu0 %v2612
      %v2614 = vpop.xlane.xlu0 %2613
      %v2615 = vadd.f32 %v2299, %v2300
      %v2616 = vadd.f32 %v2615, %v2301
      %v2617 = vadd.f32 %v2616, %v2302
      %2618 = vadd.xlane.f32.xlu0 %v2617
      %v2619 = vpop.xlane.xlu0 %2618
      %v2620 = vadd.f32 %v2303, %v2304
      %v2621 = vadd.f32 %v2620, %v2305
      %v2622 = vadd.f32 %v2621, %v2306
      %2623 = vadd.xlane.f32.xlu0 %v2622
      %v2624 = vpop.xlane.xlu0 %2623
      %v2625 = vadd.f32 %v2307, %v2308
      %v2626 = vadd.f32 %v2625, %v2309
      %v2627 = vadd.f32 %v2626, %v2310
      %2628 = vadd.xlane.f32.xlu0 %v2627
      %v2629 = vpop.xlane.xlu0 %2628
      %v2630 = vadd.f32 %v2311, %v2312
      %v2631 = vadd.f32 %v2630, %v2313
      %v2632 = vadd.f32 %v2631, %v2314
      %2633 = vadd.xlane.f32.xlu0 %v2632
      %v2634 = vpop.xlane.xlu0 %2633
      %v2635 = vlaneseq
      %v2636 = vand.u32 %v2635, 127
      %v2637 = vadd.s32 %v2636, 128
      %v2638 = vadd.s32 %v2636, 256
      %v2639 = vadd.s32 %v2636, 384
      %v2640 = vcvt.s32.f32 %v2636
      %v2641 = vcvt.s32.f32 %v2637
      %v2642 = vcvt.s32.f32 %v2638
      %v2643 = vcvt.s32.f32 %v2639
      %vm2644 = vcmp.eq.f32.partialorder %v2319, %v2640
      %vm2645 = vcmp.eq.f32.partialorder %v2319, %v2641
      %vm2646 = vcmp.eq.f32.partialorder %v2319, %v2642
      %vm2647 = vcmp.eq.f32.partialorder %v2319, %v2643
      %vm2648 = vcmp.eq.f32.partialorder %v2324, %v2640
      %vm2649 = vcmp.eq.f32.partialorder %v2324, %v2641
      %vm2650 = vcmp.eq.f32.partialorder %v2324, %v2642
      %vm2651 = vcmp.eq.f32.partialorder %v2324, %v2643
      %vm2652 = vcmp.eq.f32.partialorder %v2329, %v2640
      %vm2653 = vcmp.eq.f32.partialorder %v2329, %v2641
      %vm2654 = vcmp.eq.f32.partialorder %v2329, %v2642
      %vm2655 = vcmp.eq.f32.partialorder %v2329, %v2643
      %vm2656 = vcmp.eq.f32.partialorder %v2334, %v2640
      %vm2657 = vcmp.eq.f32.partialorder %v2334, %v2641
      %vm2658 = vcmp.eq.f32.partialorder %v2334, %v2642
      %vm2659 = vcmp.eq.f32.partialorder %v2334, %v2643
      %vm2660 = vcmp.eq.f32.partialorder %v2339, %v2640
      %vm2661 = vcmp.eq.f32.partialorder %v2339, %v2641
      %vm2662 = vcmp.eq.f32.partialorder %v2339, %v2642
      %vm2663 = vcmp.eq.f32.partialorder %v2339, %v2643
      %vm2664 = vcmp.eq.f32.partialorder %v2344, %v2640
      %vm2665 = vcmp.eq.f32.partialorder %v2344, %v2641
      %vm2666 = vcmp.eq.f32.partialorder %v2344, %v2642
      %vm2667 = vcmp.eq.f32.partialorder %v2344, %v2643
      %vm2668 = vcmp.eq.f32.partialorder %v2349, %v2640
      %vm2669 = vcmp.eq.f32.partialorder %v2349, %v2641
      %vm2670 = vcmp.eq.f32.partialorder %v2349, %v2642
      %vm2671 = vcmp.eq.f32.partialorder %v2349, %v2643
      %vm2672 = vcmp.eq.f32.partialorder %v2354, %v2640
      %vm2673 = vcmp.eq.f32.partialorder %v2354, %v2641
      %vm2674 = vcmp.eq.f32.partialorder %v2354, %v2642
      %vm2675 = vcmp.eq.f32.partialorder %v2354, %v2643
      %vm2676 = vcmp.eq.f32.partialorder %v2359, %v2640
      %vm2677 = vcmp.eq.f32.partialorder %v2359, %v2641
      %vm2678 = vcmp.eq.f32.partialorder %v2359, %v2642
      %vm2679 = vcmp.eq.f32.partialorder %v2359, %v2643
      %vm2680 = vcmp.eq.f32.partialorder %v2364, %v2640
      %vm2681 = vcmp.eq.f32.partialorder %v2364, %v2641
      %vm2682 = vcmp.eq.f32.partialorder %v2364, %v2642
      %vm2683 = vcmp.eq.f32.partialorder %v2364, %v2643
      %vm2684 = vcmp.eq.f32.partialorder %v2369, %v2640
      %vm2685 = vcmp.eq.f32.partialorder %v2369, %v2641
      %vm2686 = vcmp.eq.f32.partialorder %v2369, %v2642
      %vm2687 = vcmp.eq.f32.partialorder %v2369, %v2643
      %vm2688 = vcmp.eq.f32.partialorder %v2374, %v2640
      %vm2689 = vcmp.eq.f32.partialorder %v2374, %v2641
      %vm2690 = vcmp.eq.f32.partialorder %v2374, %v2642
      %vm2691 = vcmp.eq.f32.partialorder %v2374, %v2643
      %vm2692 = vcmp.eq.f32.partialorder %v2379, %v2640
      %vm2693 = vcmp.eq.f32.partialorder %v2379, %v2641
      %vm2694 = vcmp.eq.f32.partialorder %v2379, %v2642
      %vm2695 = vcmp.eq.f32.partialorder %v2379, %v2643
      %vm2696 = vcmp.eq.f32.partialorder %v2384, %v2640
      %vm2697 = vcmp.eq.f32.partialorder %v2384, %v2641
      %vm2698 = vcmp.eq.f32.partialorder %v2384, %v2642
      %vm2699 = vcmp.eq.f32.partialorder %v2384, %v2643
      %vm2700 = vcmp.eq.f32.partialorder %v2389, %v2640
      %vm2701 = vcmp.eq.f32.partialorder %v2389, %v2641
      %vm2702 = vcmp.eq.f32.partialorder %v2389, %v2642
      %vm2703 = vcmp.eq.f32.partialorder %v2389, %v2643
      %vm2704 = vcmp.eq.f32.partialorder %v2394, %v2640
      %vm2705 = vcmp.eq.f32.partialorder %v2394, %v2641
      %vm2706 = vcmp.eq.f32.partialorder %v2394, %v2642
      %vm2707 = vcmp.eq.f32.partialorder %v2394, %v2643
      %vm2708 = vcmp.eq.f32.partialorder %v2399, %v2640
      %vm2709 = vcmp.eq.f32.partialorder %v2399, %v2641
      %vm2710 = vcmp.eq.f32.partialorder %v2399, %v2642
      %vm2711 = vcmp.eq.f32.partialorder %v2399, %v2643
      %vm2712 = vcmp.eq.f32.partialorder %v2404, %v2640
      %vm2713 = vcmp.eq.f32.partialorder %v2404, %v2641
      %vm2714 = vcmp.eq.f32.partialorder %v2404, %v2642
      %vm2715 = vcmp.eq.f32.partialorder %v2404, %v2643
      %vm2716 = vcmp.eq.f32.partialorder %v2409, %v2640
      %vm2717 = vcmp.eq.f32.partialorder %v2409, %v2641
      %vm2718 = vcmp.eq.f32.partialorder %v2409, %v2642
      %vm2719 = vcmp.eq.f32.partialorder %v2409, %v2643
      %vm2720 = vcmp.eq.f32.partialorder %v2414, %v2640
      %vm2721 = vcmp.eq.f32.partialorder %v2414, %v2641
      %vm2722 = vcmp.eq.f32.partialorder %v2414, %v2642
      %vm2723 = vcmp.eq.f32.partialorder %v2414, %v2643
      %vm2724 = vcmp.eq.f32.partialorder %v2419, %v2640
      %vm2725 = vcmp.eq.f32.partialorder %v2419, %v2641
      %vm2726 = vcmp.eq.f32.partialorder %v2419, %v2642
      %vm2727 = vcmp.eq.f32.partialorder %v2419, %v2643
      %vm2728 = vcmp.eq.f32.partialorder %v2424, %v2640
      %vm2729 = vcmp.eq.f32.partialorder %v2424, %v2641
      %vm2730 = vcmp.eq.f32.partialorder %v2424, %v2642
      %vm2731 = vcmp.eq.f32.partialorder %v2424, %v2643
      %vm2732 = vcmp.eq.f32.partialorder %v2429, %v2640
      %vm2733 = vcmp.eq.f32.partialorder %v2429, %v2641
      %vm2734 = vcmp.eq.f32.partialorder %v2429, %v2642
      %vm2735 = vcmp.eq.f32.partialorder %v2429, %v2643
      %vm2736 = vcmp.eq.f32.partialorder %v2434, %v2640
      %vm2737 = vcmp.eq.f32.partialorder %v2434, %v2641
      %vm2738 = vcmp.eq.f32.partialorder %v2434, %v2642
      %vm2739 = vcmp.eq.f32.partialorder %v2434, %v2643
      %vm2740 = vcmp.eq.f32.partialorder %v2439, %v2640
      %vm2741 = vcmp.eq.f32.partialorder %v2439, %v2641
      %vm2742 = vcmp.eq.f32.partialorder %v2439, %v2642
      %vm2743 = vcmp.eq.f32.partialorder %v2439, %v2643
      %vm2744 = vcmp.eq.f32.partialorder %v2444, %v2640
      %vm2745 = vcmp.eq.f32.partialorder %v2444, %v2641
      %vm2746 = vcmp.eq.f32.partialorder %v2444, %v2642
      %vm2747 = vcmp.eq.f32.partialorder %v2444, %v2643
      %vm2748 = vcmp.eq.f32.partialorder %v2449, %v2640
      %vm2749 = vcmp.eq.f32.partialorder %v2449, %v2641
      %vm2750 = vcmp.eq.f32.partialorder %v2449, %v2642
      %vm2751 = vcmp.eq.f32.partialorder %v2449, %v2643
      %vm2752 = vcmp.eq.f32.partialorder %v2454, %v2640
      %vm2753 = vcmp.eq.f32.partialorder %v2454, %v2641
      %vm2754 = vcmp.eq.f32.partialorder %v2454, %v2642
      %vm2755 = vcmp.eq.f32.partialorder %v2454, %v2643
      %vm2756 = vcmp.eq.f32.partialorder %v2459, %v2640
      %vm2757 = vcmp.eq.f32.partialorder %v2459, %v2641
      %vm2758 = vcmp.eq.f32.partialorder %v2459, %v2642
      %vm2759 = vcmp.eq.f32.partialorder %v2459, %v2643
      %vm2760 = vcmp.eq.f32.partialorder %v2464, %v2640
      %vm2761 = vcmp.eq.f32.partialorder %v2464, %v2641
      %vm2762 = vcmp.eq.f32.partialorder %v2464, %v2642
      %vm2763 = vcmp.eq.f32.partialorder %v2464, %v2643
      %vm2764 = vcmp.eq.f32.partialorder %v2469, %v2640
      %vm2765 = vcmp.eq.f32.partialorder %v2469, %v2641
      %vm2766 = vcmp.eq.f32.partialorder %v2469, %v2642
      %vm2767 = vcmp.eq.f32.partialorder %v2469, %v2643
      %vm2768 = vcmp.eq.f32.partialorder %v2474, %v2640
      %vm2769 = vcmp.eq.f32.partialorder %v2474, %v2641
      %vm2770 = vcmp.eq.f32.partialorder %v2474, %v2642
      %vm2771 = vcmp.eq.f32.partialorder %v2474, %v2643
      %vm2772 = vcmp.eq.f32.partialorder %v2479, %v2640
      %vm2773 = vcmp.eq.f32.partialorder %v2479, %v2641
      %vm2774 = vcmp.eq.f32.partialorder %v2479, %v2642
      %vm2775 = vcmp.eq.f32.partialorder %v2479, %v2643
      %vm2776 = vcmp.eq.f32.partialorder %v2484, %v2640
      %vm2777 = vcmp.eq.f32.partialorder %v2484, %v2641
      %vm2778 = vcmp.eq.f32.partialorder %v2484, %v2642
      %vm2779 = vcmp.eq.f32.partialorder %v2484, %v2643
      %vm2780 = vcmp.eq.f32.partialorder %v2489, %v2640
      %vm2781 = vcmp.eq.f32.partialorder %v2489, %v2641
      %vm2782 = vcmp.eq.f32.partialorder %v2489, %v2642
      %vm2783 = vcmp.eq.f32.partialorder %v2489, %v2643
      %vm2784 = vcmp.eq.f32.partialorder %v2494, %v2640
      %vm2785 = vcmp.eq.f32.partialorder %v2494, %v2641
      %vm2786 = vcmp.eq.f32.partialorder %v2494, %v2642
      %vm2787 = vcmp.eq.f32.partialorder %v2494, %v2643
      %vm2788 = vcmp.eq.f32.partialorder %v2499, %v2640
      %vm2789 = vcmp.eq.f32.partialorder %v2499, %v2641
      %vm2790 = vcmp.eq.f32.partialorder %v2499, %v2642
      %vm2791 = vcmp.eq.f32.partialorder %v2499, %v2643
      %vm2792 = vcmp.eq.f32.partialorder %v2504, %v2640
      %vm2793 = vcmp.eq.f32.partialorder %v2504, %v2641
      %vm2794 = vcmp.eq.f32.partialorder %v2504, %v2642
      %vm2795 = vcmp.eq.f32.partialorder %v2504, %v2643
      %vm2796 = vcmp.eq.f32.partialorder %v2509, %v2640
      %vm2797 = vcmp.eq.f32.partialorder %v2509, %v2641
      %vm2798 = vcmp.eq.f32.partialorder %v2509, %v2642
      %vm2799 = vcmp.eq.f32.partialorder %v2509, %v2643
      %vm2800 = vcmp.eq.f32.partialorder %v2514, %v2640
      %vm2801 = vcmp.eq.f32.partialorder %v2514, %v2641
      %vm2802 = vcmp.eq.f32.partialorder %v2514, %v2642
      %vm2803 = vcmp.eq.f32.partialorder %v2514, %v2643
      %vm2804 = vcmp.eq.f32.partialorder %v2519, %v2640
      %vm2805 = vcmp.eq.f32.partialorder %v2519, %v2641
      %vm2806 = vcmp.eq.f32.partialorder %v2519, %v2642
      %vm2807 = vcmp.eq.f32.partialorder %v2519, %v2643
      %vm2808 = vcmp.eq.f32.partialorder %v2524, %v2640
      %vm2809 = vcmp.eq.f32.partialorder %v2524, %v2641
      %vm2810 = vcmp.eq.f32.partialorder %v2524, %v2642
      %vm2811 = vcmp.eq.f32.partialorder %v2524, %v2643
      %vm2812 = vcmp.eq.f32.partialorder %v2529, %v2640
      %vm2813 = vcmp.eq.f32.partialorder %v2529, %v2641
      %vm2814 = vcmp.eq.f32.partialorder %v2529, %v2642
      %vm2815 = vcmp.eq.f32.partialorder %v2529, %v2643
      %vm2816 = vcmp.eq.f32.partialorder %v2534, %v2640
      %vm2817 = vcmp.eq.f32.partialorder %v2534, %v2641
      %vm2818 = vcmp.eq.f32.partialorder %v2534, %v2642
      %vm2819 = vcmp.eq.f32.partialorder %v2534, %v2643
      %vm2820 = vcmp.eq.f32.partialorder %v2539, %v2640
      %vm2821 = vcmp.eq.f32.partialorder %v2539, %v2641
      %vm2822 = vcmp.eq.f32.partialorder %v2539, %v2642
      %vm2823 = vcmp.eq.f32.partialorder %v2539, %v2643
      %vm2824 = vcmp.eq.f32.partialorder %v2544, %v2640
      %vm2825 = vcmp.eq.f32.partialorder %v2544, %v2641
      %vm2826 = vcmp.eq.f32.partialorder %v2544, %v2642
      %vm2827 = vcmp.eq.f32.partialorder %v2544, %v2643
      %vm2828 = vcmp.eq.f32.partialorder %v2549, %v2640
      %vm2829 = vcmp.eq.f32.partialorder %v2549, %v2641
      %vm2830 = vcmp.eq.f32.partialorder %v2549, %v2642
      %vm2831 = vcmp.eq.f32.partialorder %v2549, %v2643
      %vm2832 = vcmp.eq.f32.partialorder %v2554, %v2640
      %vm2833 = vcmp.eq.f32.partialorder %v2554, %v2641
      %vm2834 = vcmp.eq.f32.partialorder %v2554, %v2642
      %vm2835 = vcmp.eq.f32.partialorder %v2554, %v2643
      %vm2836 = vcmp.eq.f32.partialorder %v2559, %v2640
      %vm2837 = vcmp.eq.f32.partialorder %v2559, %v2641
      %vm2838 = vcmp.eq.f32.partialorder %v2559, %v2642
      %vm2839 = vcmp.eq.f32.partialorder %v2559, %v2643
      %vm2840 = vcmp.eq.f32.partialorder %v2564, %v2640
      %vm2841 = vcmp.eq.f32.partialorder %v2564, %v2641
      %vm2842 = vcmp.eq.f32.partialorder %v2564, %v2642
      %vm2843 = vcmp.eq.f32.partialorder %v2564, %v2643
      %vm2844 = vcmp.eq.f32.partialorder %v2569, %v2640
      %vm2845 = vcmp.eq.f32.partialorder %v2569, %v2641
      %vm2846 = vcmp.eq.f32.partialorder %v2569, %v2642
      %vm2847 = vcmp.eq.f32.partialorder %v2569, %v2643
      %vm2848 = vcmp.eq.f32.partialorder %v2574, %v2640
      %vm2849 = vcmp.eq.f32.partialorder %v2574, %v2641
      %vm2850 = vcmp.eq.f32.partialorder %v2574, %v2642
      %vm2851 = vcmp.eq.f32.partialorder %v2574, %v2643
      %vm2852 = vcmp.eq.f32.partialorder %v2579, %v2640
      %vm2853 = vcmp.eq.f32.partialorder %v2579, %v2641
      %vm2854 = vcmp.eq.f32.partialorder %v2579, %v2642
      %vm2855 = vcmp.eq.f32.partialorder %v2579, %v2643
      %vm2856 = vcmp.eq.f32.partialorder %v2584, %v2640
      %vm2857 = vcmp.eq.f32.partialorder %v2584, %v2641
      %vm2858 = vcmp.eq.f32.partialorder %v2584, %v2642
      %vm2859 = vcmp.eq.f32.partialorder %v2584, %v2643
      %vm2860 = vcmp.eq.f32.partialorder %v2589, %v2640
      %vm2861 = vcmp.eq.f32.partialorder %v2589, %v2641
      %vm2862 = vcmp.eq.f32.partialorder %v2589, %v2642
      %vm2863 = vcmp.eq.f32.partialorder %v2589, %v2643
      %vm2864 = vcmp.eq.f32.partialorder %v2594, %v2640
      %vm2865 = vcmp.eq.f32.partialorder %v2594, %v2641
      %vm2866 = vcmp.eq.f32.partialorder %v2594, %v2642
      %vm2867 = vcmp.eq.f32.partialorder %v2594, %v2643
      %vm2868 = vcmp.eq.f32.partialorder %v2599, %v2640
      %vm2869 = vcmp.eq.f32.partialorder %v2599, %v2641
      %vm2870 = vcmp.eq.f32.partialorder %v2599, %v2642
      %vm2871 = vcmp.eq.f32.partialorder %v2599, %v2643
      %vm2872 = vcmp.eq.f32.partialorder %v2604, %v2640
      %vm2873 = vcmp.eq.f32.partialorder %v2604, %v2641
      %vm2874 = vcmp.eq.f32.partialorder %v2604, %v2642
      %vm2875 = vcmp.eq.f32.partialorder %v2604, %v2643
      %vm2876 = vcmp.eq.f32.partialorder %v2609, %v2640
      %vm2877 = vcmp.eq.f32.partialorder %v2609, %v2641
      %vm2878 = vcmp.eq.f32.partialorder %v2609, %v2642
      %vm2879 = vcmp.eq.f32.partialorder %v2609, %v2643
      %vm2880 = vcmp.eq.f32.partialorder %v2614, %v2640
      %vm2881 = vcmp.eq.f32.partialorder %v2614, %v2641
      %vm2882 = vcmp.eq.f32.partialorder %v2614, %v2642
      %vm2883 = vcmp.eq.f32.partialorder %v2614, %v2643
      %vm2884 = vcmp.eq.f32.partialorder %v2619, %v2640
      %vm2885 = vcmp.eq.f32.partialorder %v2619, %v2641
      %vm2886 = vcmp.eq.f32.partialorder %v2619, %v2642
      %vm2887 = vcmp.eq.f32.partialorder %v2619, %v2643
      %vm2888 = vcmp.eq.f32.partialorder %v2624, %v2640
      %vm2889 = vcmp.eq.f32.partialorder %v2624, %v2641
      %vm2890 = vcmp.eq.f32.partialorder %v2624, %v2642
      %vm2891 = vcmp.eq.f32.partialorder %v2624, %v2643
      %vm2892 = vcmp.eq.f32.partialorder %v2629, %v2640
      %vm2893 = vcmp.eq.f32.partialorder %v2629, %v2641
      %vm2894 = vcmp.eq.f32.partialorder %v2629, %v2642
      %vm2895 = vcmp.eq.f32.partialorder %v2629, %v2643
      %vm2896 = vcmp.eq.f32.partialorder %v2634, %v2640
      %vm2897 = vcmp.eq.f32.partialorder %v2634, %v2641
      %vm2898 = vcmp.eq.f32.partialorder %v2634, %v2642
      %vm2899 = vcmp.eq.f32.partialorder %v2634, %v2643
      %v2900 = vsel %vm2644, 1, 0
      %v2901 = vsel %vm2645, 1, 0
      %v2902 = vsel %vm2646, 1, 0
      %v2903 = vsel %vm2647, 1, 0
      %v2904 = vsel %vm2648, 1, 0
      %v2905 = vsel %vm2649, 1, 0
      %v2906 = vsel %vm2650, 1, 0
      %v2907 = vsel %vm2651, 1, 0
      %v2908 = vsel %vm2652, 1, 0
      %v2909 = vsel %vm2653, 1, 0
      %v2910 = vsel %vm2654, 1, 0
      %v2911 = vsel %vm2655, 1, 0
      %v2912 = vsel %vm2656, 1, 0
      %v2913 = vsel %vm2657, 1, 0
      %v2914 = vsel %vm2658, 1, 0
      %v2915 = vsel %vm2659, 1, 0
      %v2916 = vsel %vm2660, 1, 0
      %v2917 = vsel %vm2661, 1, 0
      %v2918 = vsel %vm2662, 1, 0
      %v2919 = vsel %vm2663, 1, 0
      %v2920 = vsel %vm2664, 1, 0
      %v2921 = vsel %vm2665, 1, 0
      %v2922 = vsel %vm2666, 1, 0
      %v2923 = vsel %vm2667, 1, 0
      %v2924 = vsel %vm2668, 1, 0
      %v2925 = vsel %vm2669, 1, 0
      %v2926 = vsel %vm2670, 1, 0
      %v2927 = vsel %vm2671, 1, 0
      %v2928 = vsel %vm2672, 1, 0
      %v2929 = vsel %vm2673, 1, 0
      %v2930 = vsel %vm2674, 1, 0
      %v2931 = vsel %vm2675, 1, 0
      %v2932 = vsel %vm2676, 1, 0
      %v2933 = vsel %vm2677, 1, 0
      %v2934 = vsel %vm2678, 1, 0
      %v2935 = vsel %vm2679, 1, 0
      %v2936 = vsel %vm2680, 1, 0
      %v2937 = vsel %vm2681, 1, 0
      %v2938 = vsel %vm2682, 1, 0
      %v2939 = vsel %vm2683, 1, 0
      %v2940 = vsel %vm2684, 1, 0
      %v2941 = vsel %vm2685, 1, 0
      %v2942 = vsel %vm2686, 1, 0
      %v2943 = vsel %vm2687, 1, 0
      %v2944 = vsel %vm2688, 1, 0
      %v2945 = vsel %vm2689, 1, 0
      %v2946 = vsel %vm2690, 1, 0
      %v2947 = vsel %vm2691, 1, 0
      %v2948 = vsel %vm2692, 1, 0
      %v2949 = vsel %vm2693, 1, 0
      %v2950 = vsel %vm2694, 1, 0
      %v2951 = vsel %vm2695, 1, 0
      %v2952 = vsel %vm2696, 1, 0
      %v2953 = vsel %vm2697, 1, 0
      %v2954 = vsel %vm2698, 1, 0
      %v2955 = vsel %vm2699, 1, 0
      %v2956 = vsel %vm2700, 1, 0
      %v2957 = vsel %vm2701, 1, 0
      %v2958 = vsel %vm2702, 1, 0
      %v2959 = vsel %vm2703, 1, 0
      %v2960 = vsel %vm2704, 1, 0
      %v2961 = vsel %vm2705, 1, 0
      %v2962 = vsel %vm2706, 1, 0
      %v2963 = vsel %vm2707, 1, 0
      %v2964 = vsel %vm2708, 1, 0
      %v2965 = vsel %vm2709, 1, 0
      %v2966 = vsel %vm2710, 1, 0
      %v2967 = vsel %vm2711, 1, 0
      %v2968 = vsel %vm2712, 1, 0
      %v2969 = vsel %vm2713, 1, 0
      %v2970 = vsel %vm2714, 1, 0
      %v2971 = vsel %vm2715, 1, 0
      %v2972 = vsel %vm2716, 1, 0
      %v2973 = vsel %vm2717, 1, 0
      %v2974 = vsel %vm2718, 1, 0
      %v2975 = vsel %vm2719, 1, 0
      %v2976 = vsel %vm2720, 1, 0
      %v2977 = vsel %vm2721, 1, 0
      %v2978 = vsel %vm2722, 1, 0
      %v2979 = vsel %vm2723, 1, 0
      %v2980 = vsel %vm2724, 1, 0
      %v2981 = vsel %vm2725, 1, 0
      %v2982 = vsel %vm2726, 1, 0
      %v2983 = vsel %vm2727, 1, 0
      %v2984 = vsel %vm2728, 1, 0
      %v2985 = vsel %vm2729, 1, 0
      %v2986 = vsel %vm2730, 1, 0
      %v2987 = vsel %vm2731, 1, 0
      %v2988 = vsel %vm2732, 1, 0
      %v2989 = vsel %vm2733, 1, 0
      %v2990 = vsel %vm2734, 1, 0
      %v2991 = vsel %vm2735, 1, 0
      %v2992 = vsel %vm2736, 1, 0
      %v2993 = vsel %vm2737, 1, 0
      %v2994 = vsel %vm2738, 1, 0
      %v2995 = vsel %vm2739, 1, 0
      %v2996 = vsel %vm2740, 1, 0
      %v2997 = vsel %vm2741, 1, 0
      %v2998 = vsel %vm2742, 1, 0
      %v2999 = vsel %vm2743, 1, 0
      %v3000 = vsel %vm2744, 1, 0
      %v3001 = vsel %vm2745, 1, 0
      %v3002 = vsel %vm2746, 1, 0
      %v3003 = vsel %vm2747, 1, 0
      %v3004 = vsel %vm2748, 1, 0
      %v3005 = vsel %vm2749, 1, 0
      %v3006 = vsel %vm2750, 1, 0
      %v3007 = vsel %vm2751, 1, 0
      %v3008 = vsel %vm2752, 1, 0
      %v3009 = vsel %vm2753, 1, 0
      %v3010 = vsel %vm2754, 1, 0
      %v3011 = vsel %vm2755, 1, 0
      %v3012 = vsel %vm2756, 1, 0
      %v3013 = vsel %vm2757, 1, 0
      %v3014 = vsel %vm2758, 1, 0
      %v3015 = vsel %vm2759, 1, 0
      %v3016 = vsel %vm2760, 1, 0
      %v3017 = vsel %vm2761, 1, 0
      %v3018 = vsel %vm2762, 1, 0
      %v3019 = vsel %vm2763, 1, 0
      %v3020 = vsel %vm2764, 1, 0
      %v3021 = vsel %vm2765, 1, 0
      %v3022 = vsel %vm2766, 1, 0
      %v3023 = vsel %vm2767, 1, 0
      %v3024 = vsel %vm2768, 1, 0
      %v3025 = vsel %vm2769, 1, 0
      %v3026 = vsel %vm2770, 1, 0
      %v3027 = vsel %vm2771, 1, 0
      %v3028 = vsel %vm2772, 1, 0
      %v3029 = vsel %vm2773, 1, 0
      %v3030 = vsel %vm2774, 1, 0
      %v3031 = vsel %vm2775, 1, 0
      %v3032 = vsel %vm2776, 1, 0
      %v3033 = vsel %vm2777, 1, 0
      %v3034 = vsel %vm2778, 1, 0
      %v3035 = vsel %vm2779, 1, 0
      %v3036 = vsel %vm2780, 1, 0
      %v3037 = vsel %vm2781, 1, 0
      %v3038 = vsel %vm2782, 1, 0
      %v3039 = vsel %vm2783, 1, 0
      %v3040 = vsel %vm2784, 1, 0
      %v3041 = vsel %vm2785, 1, 0
      %v3042 = vsel %vm2786, 1, 0
      %v3043 = vsel %vm2787, 1, 0
      %v3044 = vsel %vm2788, 1, 0
      %v3045 = vsel %vm2789, 1, 0
      %v3046 = vsel %vm2790, 1, 0
      %v3047 = vsel %vm2791, 1, 0
      %v3048 = vsel %vm2792, 1, 0
      %v3049 = vsel %vm2793, 1, 0
      %v3050 = vsel %vm2794, 1, 0
      %v3051 = vsel %vm2795, 1, 0
      %v3052 = vsel %vm2796, 1, 0
      %v3053 = vsel %vm2797, 1, 0
      %v3054 = vsel %vm2798, 1, 0
      %v3055 = vsel %vm2799, 1, 0
      %v3056 = vsel %vm2800, 1, 0
      %v3057 = vsel %vm2801, 1, 0
      %v3058 = vsel %vm2802, 1, 0
      %v3059 = vsel %vm2803, 1, 0
      %v3060 = vsel %vm2804, 1, 0
      %v3061 = vsel %vm2805, 1, 0
      %v3062 = vsel %vm2806, 1, 0
      %v3063 = vsel %vm2807, 1, 0
      %v3064 = vsel %vm2808, 1, 0
      %v3065 = vsel %vm2809, 1, 0
      %v3066 = vsel %vm2810, 1, 0
      %v3067 = vsel %vm2811, 1, 0
      %v3068 = vsel %vm2812, 1, 0
      %v3069 = vsel %vm2813, 1, 0
      %v3070 = vsel %vm2814, 1, 0
      %v3071 = vsel %vm2815, 1, 0
      %v3072 = vsel %vm2816, 1, 0
      %v3073 = vsel %vm2817, 1, 0
      %v3074 = vsel %vm2818, 1, 0
      %v3075 = vsel %vm2819, 1, 0
      %v3076 = vsel %vm2820, 1, 0
      %v3077 = vsel %vm2821, 1, 0
      %v3078 = vsel %vm2822, 1, 0
      %v3079 = vsel %vm2823, 1, 0
      %v3080 = vsel %vm2824, 1, 0
      %v3081 = vsel %vm2825, 1, 0
      %v3082 = vsel %vm2826, 1, 0
      %v3083 = vsel %vm2827, 1, 0
      %v3084 = vsel %vm2828, 1, 0
      %v3085 = vsel %vm2829, 1, 0
      %v3086 = vsel %vm2830, 1, 0
      %v3087 = vsel %vm2831, 1, 0
      %v3088 = vsel %vm2832, 1, 0
      %v3089 = vsel %vm2833, 1, 0
      %v3090 = vsel %vm2834, 1, 0
      %v3091 = vsel %vm2835, 1, 0
      %v3092 = vsel %vm2836, 1, 0
      %v3093 = vsel %vm2837, 1, 0
      %v3094 = vsel %vm2838, 1, 0
      %v3095 = vsel %vm2839, 1, 0
      %v3096 = vsel %vm2840, 1, 0
      %v3097 = vsel %vm2841, 1, 0
      %v3098 = vsel %vm2842, 1, 0
      %v3099 = vsel %vm2843, 1, 0
      %v3100 = vsel %vm2844, 1, 0
      %v3101 = vsel %vm2845, 1, 0
      %v3102 = vsel %vm2846, 1, 0
      %v3103 = vsel %vm2847, 1, 0
      %v3104 = vsel %vm2848, 1, 0
      %v3105 = vsel %vm2849, 1, 0
      %v3106 = vsel %vm2850, 1, 0
      %v3107 = vsel %vm2851, 1, 0
      %v3108 = vsel %vm2852, 1, 0
      %v3109 = vsel %vm2853, 1, 0
      %v3110 = vsel %vm2854, 1, 0
      %v3111 = vsel %vm2855, 1, 0
      %v3112 = vsel %vm2856, 1, 0
      %v3113 = vsel %vm2857, 1, 0
      %v3114 = vsel %vm2858, 1, 0
      %v3115 = vsel %vm2859, 1, 0
      %v3116 = vsel %vm2860, 1, 0
      %v3117 = vsel %vm2861, 1, 0
      %v3118 = vsel %vm2862, 1, 0
      %v3119 = vsel %vm2863, 1, 0
      %v3120 = vsel %vm2864, 1, 0
      %v3121 = vsel %vm2865, 1, 0
      %v3122 = vsel %vm2866, 1, 0
      %v3123 = vsel %vm2867, 1, 0
      %v3124 = vsel %vm2868, 1, 0
      %v3125 = vsel %vm2869, 1, 0
      %v3126 = vsel %vm2870, 1, 0
      %v3127 = vsel %vm2871, 1, 0
      %v3128 = vsel %vm2872, 1, 0
      %v3129 = vsel %vm2873, 1, 0
      %v3130 = vsel %vm2874, 1, 0
      %v3131 = vsel %vm2875, 1, 0
      %v3132 = vsel %vm2876, 1, 0
      %v3133 = vsel %vm2877, 1, 0
      %v3134 = vsel %vm2878, 1, 0
      %v3135 = vsel %vm2879, 1, 0
      %v3136 = vsel %vm2880, 1, 0
      %v3137 = vsel %vm2881, 1, 0
      %v3138 = vsel %vm2882, 1, 0
      %v3139 = vsel %vm2883, 1, 0
      %v3140 = vsel %vm2884, 1, 0
      %v3141 = vsel %vm2885, 1, 0
      %v3142 = vsel %vm2886, 1, 0
      %v3143 = vsel %vm2887, 1, 0
      %v3144 = vsel %vm2888, 1, 0
      %v3145 = vsel %vm2889, 1, 0
      %v3146 = vsel %vm2890, 1, 0
      %v3147 = vsel %vm2891, 1, 0
      %v3148 = vsel %vm2892, 1, 0
      %v3149 = vsel %vm2893, 1, 0
      %v3150 = vsel %vm2894, 1, 0
      %v3151 = vsel %vm2895, 1, 0
      %v3152 = vsel %vm2896, 1, 0
      %v3153 = vsel %vm2897, 1, 0
      %v3154 = vsel %vm2898, 1, 0
      %v3155 = vsel %vm2899, 1, 0
      %v3156 = vcvt.s32.f32 %v2900
      %v3157 = vcvt.s32.f32 %v2901
      %v3158 = vcvt.s32.f32 %v2902
      %v3159 = vcvt.s32.f32 %v2903
      %v3160 = vcvt.s32.f32 %v2904
      %v3161 = vcvt.s32.f32 %v2905
      %v3162 = vcvt.s32.f32 %v2906
      %v3163 = vcvt.s32.f32 %v2907
      %v3164 = vcvt.s32.f32 %v2908
      %v3165 = vcvt.s32.f32 %v2909
      %v3166 = vcvt.s32.f32 %v2910
      %v3167 = vcvt.s32.f32 %v2911
      %v3168 = vcvt.s32.f32 %v2912
      %v3169 = vcvt.s32.f32 %v2913
      %v3170 = vcvt.s32.f32 %v2914
      %v3171 = vcvt.s32.f32 %v2915
      %v3172 = vcvt.s32.f32 %v2916
      %v3173 = vcvt.s32.f32 %v2917
      %v3174 = vcvt.s32.f32 %v2918
      %v3175 = vcvt.s32.f32 %v2919
      %v3176 = vcvt.s32.f32 %v2920
      %v3177 = vcvt.s32.f32 %v2921
      %v3178 = vcvt.s32.f32 %v2922
      %v3179 = vcvt.s32.f32 %v2923
      %v3180 = vcvt.s32.f32 %v2924
      %v3181 = vcvt.s32.f32 %v2925
      %v3182 = vcvt.s32.f32 %v2926
      %v3183 = vcvt.s32.f32 %v2927
      %v3184 = vcvt.s32.f32 %v2928
      %v3185 = vcvt.s32.f32 %v2929
      %v3186 = vcvt.s32.f32 %v2930
      %v3187 = vcvt.s32.f32 %v2931
      %v3188 = vcvt.s32.f32 %v2932
      %v3189 = vcvt.s32.f32 %v2933
      %v3190 = vcvt.s32.f32 %v2934
      %v3191 = vcvt.s32.f32 %v2935
      %v3192 = vcvt.s32.f32 %v2936
      %v3193 = vcvt.s32.f32 %v2937
      %v3194 = vcvt.s32.f32 %v2938
      %v3195 = vcvt.s32.f32 %v2939
      %v3196 = vcvt.s32.f32 %v2940
      %v3197 = vcvt.s32.f32 %v2941
      %v3198 = vcvt.s32.f32 %v2942
      %v3199 = vcvt.s32.f32 %v2943
      %v3200 = vcvt.s32.f32 %v2944
      %v3201 = vcvt.s32.f32 %v2945
      %v3202 = vcvt.s32.f32 %v2946
      %v3203 = vcvt.s32.f32 %v2947
      %v3204 = vcvt.s32.f32 %v2948
      %v3205 = vcvt.s32.f32 %v2949
      %v3206 = vcvt.s32.f32 %v2950
      %v3207 = vcvt.s32.f32 %v2951
      %v3208 = vcvt.s32.f32 %v2952
      %v3209 = vcvt.s32.f32 %v2953
      %v3210 = vcvt.s32.f32 %v2954
      %v3211 = vcvt.s32.f32 %v2955
      %v3212 = vcvt.s32.f32 %v2956
      %v3213 = vcvt.s32.f32 %v2957
      %v3214 = vcvt.s32.f32 %v2958
      %v3215 = vcvt.s32.f32 %v2959
      %v3216 = vcvt.s32.f32 %v2960
      %v3217 = vcvt.s32.f32 %v2961
      %v3218 = vcvt.s32.f32 %v2962
      %v3219 = vcvt.s32.f32 %v2963
      %v3220 = vcvt.s32.f32 %v2964
      %v3221 = vcvt.s32.f32 %v2965
      %v3222 = vcvt.s32.f32 %v2966
      %v3223 = vcvt.s32.f32 %v2967
      %v3224 = vcvt.s32.f32 %v2968
      %v3225 = vcvt.s32.f32 %v2969
      %v3226 = vcvt.s32.f32 %v2970
      %v3227 = vcvt.s32.f32 %v2971
      %v3228 = vcvt.s32.f32 %v2972
      %v3229 = vcvt.s32.f32 %v2973
      %v3230 = vcvt.s32.f32 %v2974
      %v3231 = vcvt.s32.f32 %v2975
      %v3232 = vcvt.s32.f32 %v2976
      %v3233 = vcvt.s32.f32 %v2977
      %v3234 = vcvt.s32.f32 %v2978
      %v3235 = vcvt.s32.f32 %v2979
      %v3236 = vcvt.s32.f32 %v2980
      %v3237 = vcvt.s32.f32 %v2981
      %v3238 = vcvt.s32.f32 %v2982
      %v3239 = vcvt.s32.f32 %v2983
      %v3240 = vcvt.s32.f32 %v2984
      %v3241 = vcvt.s32.f32 %v2985
      %v3242 = vcvt.s32.f32 %v2986
      %v3243 = vcvt.s32.f32 %v2987
      %v3244 = vcvt.s32.f32 %v2988
      %v3245 = vcvt.s32.f32 %v2989
      %v3246 = vcvt.s32.f32 %v2990
      %v3247 = vcvt.s32.f32 %v2991
      %v3248 = vcvt.s32.f32 %v2992
      %v3249 = vcvt.s32.f32 %v2993
      %v3250 = vcvt.s32.f32 %v2994
      %v3251 = vcvt.s32.f32 %v2995
      %v3252 = vcvt.s32.f32 %v2996
      %v3253 = vcvt.s32.f32 %v2997
      %v3254 = vcvt.s32.f32 %v2998
      %v3255 = vcvt.s32.f32 %v2999
      %v3256 = vcvt.s32.f32 %v3000
      %v3257 = vcvt.s32.f32 %v3001
      %v3258 = vcvt.s32.f32 %v3002
      %v3259 = vcvt.s32.f32 %v3003
      %v3260 = vcvt.s32.f32 %v3004
      %v3261 = vcvt.s32.f32 %v3005
      %v3262 = vcvt.s32.f32 %v3006
      %v3263 = vcvt.s32.f32 %v3007
      %v3264 = vcvt.s32.f32 %v3008
      %v3265 = vcvt.s32.f32 %v3009
      %v3266 = vcvt.s32.f32 %v3010
      %v3267 = vcvt.s32.f32 %v3011
      %v3268 = vcvt.s32.f32 %v3012
      %v3269 = vcvt.s32.f32 %v3013
      %v3270 = vcvt.s32.f32 %v3014
      %v3271 = vcvt.s32.f32 %v3015
      %v3272 = vcvt.s32.f32 %v3016
      %v3273 = vcvt.s32.f32 %v3017
      %v3274 = vcvt.s32.f32 %v3018
      %v3275 = vcvt.s32.f32 %v3019
      %v3276 = vcvt.s32.f32 %v3020
      %v3277 = vcvt.s32.f32 %v3021
      %v3278 = vcvt.s32.f32 %v3022
      %v3279 = vcvt.s32.f32 %v3023
      %v3280 = vcvt.s32.f32 %v3024
      %v3281 = vcvt.s32.f32 %v3025
      %v3282 = vcvt.s32.f32 %v3026
      %v3283 = vcvt.s32.f32 %v3027
      %v3284 = vcvt.s32.f32 %v3028
      %v3285 = vcvt.s32.f32 %v3029
      %v3286 = vcvt.s32.f32 %v3030
      %v3287 = vcvt.s32.f32 %v3031
      %v3288 = vcvt.s32.f32 %v3032
      %v3289 = vcvt.s32.f32 %v3033
      %v3290 = vcvt.s32.f32 %v3034
      %v3291 = vcvt.s32.f32 %v3035
      %v3292 = vcvt.s32.f32 %v3036
      %v3293 = vcvt.s32.f32 %v3037
      %v3294 = vcvt.s32.f32 %v3038
      %v3295 = vcvt.s32.f32 %v3039
      %v3296 = vcvt.s32.f32 %v3040
      %v3297 = vcvt.s32.f32 %v3041
      %v3298 = vcvt.s32.f32 %v3042
      %v3299 = vcvt.s32.f32 %v3043
      %v3300 = vcvt.s32.f32 %v3044
      %v3301 = vcvt.s32.f32 %v3045
      %v3302 = vcvt.s32.f32 %v3046
      %v3303 = vcvt.s32.f32 %v3047
      %v3304 = vcvt.s32.f32 %v3048
      %v3305 = vcvt.s32.f32 %v3049
      %v3306 = vcvt.s32.f32 %v3050
      %v3307 = vcvt.s32.f32 %v3051
      %v3308 = vcvt.s32.f32 %v3052
      %v3309 = vcvt.s32.f32 %v3053
      %v3310 = vcvt.s32.f32 %v3054
      %v3311 = vcvt.s32.f32 %v3055
      %v3312 = vcvt.s32.f32 %v3056
      %v3313 = vcvt.s32.f32 %v3057
      %v3314 = vcvt.s32.f32 %v3058
      %v3315 = vcvt.s32.f32 %v3059
      %v3316 = vcvt.s32.f32 %v3060
      %v3317 = vcvt.s32.f32 %v3061
      %v3318 = vcvt.s32.f32 %v3062
      %v3319 = vcvt.s32.f32 %v3063
      %v3320 = vcvt.s32.f32 %v3064
      %v3321 = vcvt.s32.f32 %v3065
      %v3322 = vcvt.s32.f32 %v3066
      %v3323 = vcvt.s32.f32 %v3067
      %v3324 = vcvt.s32.f32 %v3068
      %v3325 = vcvt.s32.f32 %v3069
      %v3326 = vcvt.s32.f32 %v3070
      %v3327 = vcvt.s32.f32 %v3071
      %v3328 = vcvt.s32.f32 %v3072
      %v3329 = vcvt.s32.f32 %v3073
      %v3330 = vcvt.s32.f32 %v3074
      %v3331 = vcvt.s32.f32 %v3075
      %v3332 = vcvt.s32.f32 %v3076
      %v3333 = vcvt.s32.f32 %v3077
      %v3334 = vcvt.s32.f32 %v3078
      %v3335 = vcvt.s32.f32 %v3079
      %v3336 = vcvt.s32.f32 %v3080
      %v3337 = vcvt.s32.f32 %v3081
      %v3338 = vcvt.s32.f32 %v3082
      %v3339 = vcvt.s32.f32 %v3083
      %v3340 = vcvt.s32.f32 %v3084
      %v3341 = vcvt.s32.f32 %v3085
      %v3342 = vcvt.s32.f32 %v3086
      %v3343 = vcvt.s32.f32 %v3087
      %v3344 = vcvt.s32.f32 %v3088
      %v3345 = vcvt.s32.f32 %v3089
      %v3346 = vcvt.s32.f32 %v3090
      %v3347 = vcvt.s32.f32 %v3091
      %v3348 = vcvt.s32.f32 %v3092
      %v3349 = vcvt.s32.f32 %v3093
      %v3350 = vcvt.s32.f32 %v3094
      %v3351 = vcvt.s32.f32 %v3095
      %v3352 = vcvt.s32.f32 %v3096
      %v3353 = vcvt.s32.f32 %v3097
      %v3354 = vcvt.s32.f32 %v3098
      %v3355 = vcvt.s32.f32 %v3099
      %v3356 = vcvt.s32.f32 %v3100
      %v3357 = vcvt.s32.f32 %v3101
      %v3358 = vcvt.s32.f32 %v3102
      %v3359 = vcvt.s32.f32 %v3103
      %v3360 = vcvt.s32.f32 %v3104
      %v3361 = vcvt.s32.f32 %v3105
      %v3362 = vcvt.s32.f32 %v3106
      %v3363 = vcvt.s32.f32 %v3107
      %v3364 = vcvt.s32.f32 %v3108
      %v3365 = vcvt.s32.f32 %v3109
      %v3366 = vcvt.s32.f32 %v3110
      %v3367 = vcvt.s32.f32 %v3111
      %v3368 = vcvt.s32.f32 %v3112
      %v3369 = vcvt.s32.f32 %v3113
      %v3370 = vcvt.s32.f32 %v3114
      %v3371 = vcvt.s32.f32 %v3115
      %v3372 = vcvt.s32.f32 %v3116
      %v3373 = vcvt.s32.f32 %v3117
      %v3374 = vcvt.s32.f32 %v3118
      %v3375 = vcvt.s32.f32 %v3119
      %v3376 = vcvt.s32.f32 %v3120
      %v3377 = vcvt.s32.f32 %v3121
      %v3378 = vcvt.s32.f32 %v3122
      %v3379 = vcvt.s32.f32 %v3123
      %v3380 = vcvt.s32.f32 %v3124
      %v3381 = vcvt.s32.f32 %v3125
      %v3382 = vcvt.s32.f32 %v3126
      %v3383 = vcvt.s32.f32 %v3127
      %v3384 = vcvt.s32.f32 %v3128
      %v3385 = vcvt.s32.f32 %v3129
      %v3386 = vcvt.s32.f32 %v3130
      %v3387 = vcvt.s32.f32 %v3131
      %v3388 = vcvt.s32.f32 %v3132
      %v3389 = vcvt.s32.f32 %v3133
      %v3390 = vcvt.s32.f32 %v3134
      %v3391 = vcvt.s32.f32 %v3135
      %v3392 = vcvt.s32.f32 %v3136
      %v3393 = vcvt.s32.f32 %v3137
      %v3394 = vcvt.s32.f32 %v3138
      %v3395 = vcvt.s32.f32 %v3139
      %v3396 = vcvt.s32.f32 %v3140
      %v3397 = vcvt.s32.f32 %v3141
      %v3398 = vcvt.s32.f32 %v3142
      %v3399 = vcvt.s32.f32 %v3143
      %v3400 = vcvt.s32.f32 %v3144
      %v3401 = vcvt.s32.f32 %v3145
      %v3402 = vcvt.s32.f32 %v3146
      %v3403 = vcvt.s32.f32 %v3147
      %v3404 = vcvt.s32.f32 %v3148
      %v3405 = vcvt.s32.f32 %v3149
      %v3406 = vcvt.s32.f32 %v3150
      %v3407 = vcvt.s32.f32 %v3151
      %v3408 = vcvt.s32.f32 %v3152
      %v3409 = vcvt.s32.f32 %v3153
      %v3410 = vcvt.s32.f32 %v3154
      %v3411 = vcvt.s32.f32 %v3155
      %v3412 = vadd.f32 %v2640, 1.0
      %v3413 = vadd.f32 %v2641, 1.0
      %v3414 = vadd.f32 %v2642, 1.0
      %v3415 = vadd.f32 %v2643, 1.0
      %vm3416 = vcmp.eq.f32.partialorder %v2319, %v3412
      %vm3417 = vcmp.eq.f32.partialorder %v2319, %v3413
      %vm3418 = vcmp.eq.f32.partialorder %v2319, %v3414
      %vm3419 = vcmp.eq.f32.partialorder %v2319, %v3415
      %vm3420 = vcmp.eq.f32.partialorder %v2324, %v3412
      %vm3421 = vcmp.eq.f32.partialorder %v2324, %v3413
      %vm3422 = vcmp.eq.f32.partialorder %v2324, %v3414
      %vm3423 = vcmp.eq.f32.partialorder %v2324, %v3415
      %vm3424 = vcmp.eq.f32.partialorder %v2329, %v3412
      %vm3425 = vcmp.eq.f32.partialorder %v2329, %v3413
      %vm3426 = vcmp.eq.f32.partialorder %v2329, %v3414
      %vm3427 = vcmp.eq.f32.partialorder %v2329, %v3415
      %vm3428 = vcmp.eq.f32.partialorder %v2334, %v3412
      %vm3429 = vcmp.eq.f32.partialorder %v2334, %v3413
      %vm3430 = vcmp.eq.f32.partialorder %v2334, %v3414
      %vm3431 = vcmp.eq.f32.partialorder %v2334, %v3415
      %vm3432 = vcmp.eq.f32.partialorder %v2339, %v3412
      %vm3433 = vcmp.eq.f32.partialorder %v2339, %v3413
      %vm3434 = vcmp.eq.f32.partialorder %v2339, %v3414
      %vm3435 = vcmp.eq.f32.partialorder %v2339, %v3415
      %vm3436 = vcmp.eq.f32.partialorder %v2344, %v3412
      %vm3437 = vcmp.eq.f32.partialorder %v2344, %v3413
      %vm3438 = vcmp.eq.f32.partialorder %v2344, %v3414
      %vm3439 = vcmp.eq.f32.partialorder %v2344, %v3415
      %vm3440 = vcmp.eq.f32.partialorder %v2349, %v3412
      %vm3441 = vcmp.eq.f32.partialorder %v2349, %v3413
      %vm3442 = vcmp.eq.f32.partialorder %v2349, %v3414
      %vm3443 = vcmp.eq.f32.partialorder %v2349, %v3415
      %vm3444 = vcmp.eq.f32.partialorder %v2354, %v3412
      %vm3445 = vcmp.eq.f32.partialorder %v2354, %v3413
      %vm3446 = vcmp.eq.f32.partialorder %v2354, %v3414
      %vm3447 = vcmp.eq.f32.partialorder %v2354, %v3415
      %vm3448 = vcmp.eq.f32.partialorder %v2359, %v3412
      %vm3449 = vcmp.eq.f32.partialorder %v2359, %v3413
      %vm3450 = vcmp.eq.f32.partialorder %v2359, %v3414
      %vm3451 = vcmp.eq.f32.partialorder %v2359, %v3415
      %vm3452 = vcmp.eq.f32.partialorder %v2364, %v3412
      %vm3453 = vcmp.eq.f32.partialorder %v2364, %v3413
      %vm3454 = vcmp.eq.f32.partialorder %v2364, %v3414
      %vm3455 = vcmp.eq.f32.partialorder %v2364, %v3415
      %vm3456 = vcmp.eq.f32.partialorder %v2369, %v3412
      %vm3457 = vcmp.eq.f32.partialorder %v2369, %v3413
      %vm3458 = vcmp.eq.f32.partialorder %v2369, %v3414
      %vm3459 = vcmp.eq.f32.partialorder %v2369, %v3415
      %vm3460 = vcmp.eq.f32.partialorder %v2374, %v3412
      %vm3461 = vcmp.eq.f32.partialorder %v2374, %v3413
      %vm3462 = vcmp.eq.f32.partialorder %v2374, %v3414
      %vm3463 = vcmp.eq.f32.partialorder %v2374, %v3415
      %vm3464 = vcmp.eq.f32.partialorder %v2379, %v3412
      %vm3465 = vcmp.eq.f32.partialorder %v2379, %v3413
      %vm3466 = vcmp.eq.f32.partialorder %v2379, %v3414
      %vm3467 = vcmp.eq.f32.partialorder %v2379, %v3415
      %vm3468 = vcmp.eq.f32.partialorder %v2384, %v3412
      %vm3469 = vcmp.eq.f32.partialorder %v2384, %v3413
      %vm3470 = vcmp.eq.f32.partialorder %v2384, %v3414
      %vm3471 = vcmp.eq.f32.partialorder %v2384, %v3415
      %vm3472 = vcmp.eq.f32.partialorder %v2389, %v3412
      %vm3473 = vcmp.eq.f32.partialorder %v2389, %v3413
      %vm3474 = vcmp.eq.f32.partialorder %v2389, %v3414
      %vm3475 = vcmp.eq.f32.partialorder %v2389, %v3415
      %vm3476 = vcmp.eq.f32.partialorder %v2394, %v3412
      %vm3477 = vcmp.eq.f32.partialorder %v2394, %v3413
      %vm3478 = vcmp.eq.f32.partialorder %v2394, %v3414
      %vm3479 = vcmp.eq.f32.partialorder %v2394, %v3415
      %vm3480 = vcmp.eq.f32.partialorder %v2399, %v3412
      %vm3481 = vcmp.eq.f32.partialorder %v2399, %v3413
      %vm3482 = vcmp.eq.f32.partialorder %v2399, %v3414
      %vm3483 = vcmp.eq.f32.partialorder %v2399, %v3415
      %vm3484 = vcmp.eq.f32.partialorder %v2404, %v3412
      %vm3485 = vcmp.eq.f32.partialorder %v2404, %v3413
      %vm3486 = vcmp.eq.f32.partialorder %v2404, %v3414
      %vm3487 = vcmp.eq.f32.partialorder %v2404, %v3415
      %vm3488 = vcmp.eq.f32.partialorder %v2409, %v3412
      %vm3489 = vcmp.eq.f32.partialorder %v2409, %v3413
      %vm3490 = vcmp.eq.f32.partialorder %v2409, %v3414
      %vm3491 = vcmp.eq.f32.partialorder %v2409, %v3415
      %vm3492 = vcmp.eq.f32.partialorder %v2414, %v3412
      %vm3493 = vcmp.eq.f32.partialorder %v2414, %v3413
      %vm3494 = vcmp.eq.f32.partialorder %v2414, %v3414
      %vm3495 = vcmp.eq.f32.partialorder %v2414, %v3415
      %vm3496 = vcmp.eq.f32.partialorder %v2419, %v3412
      %vm3497 = vcmp.eq.f32.partialorder %v2419, %v3413
      %vm3498 = vcmp.eq.f32.partialorder %v2419, %v3414
      %vm3499 = vcmp.eq.f32.partialorder %v2419, %v3415
      %vm3500 = vcmp.eq.f32.partialorder %v2424, %v3412
      %vm3501 = vcmp.eq.f32.partialorder %v2424, %v3413
      %vm3502 = vcmp.eq.f32.partialorder %v2424, %v3414
      %vm3503 = vcmp.eq.f32.partialorder %v2424, %v3415
      %vm3504 = vcmp.eq.f32.partialorder %v2429, %v3412
      %vm3505 = vcmp.eq.f32.partialorder %v2429, %v3413
      %vm3506 = vcmp.eq.f32.partialorder %v2429, %v3414
      %vm3507 = vcmp.eq.f32.partialorder %v2429, %v3415
      %vm3508 = vcmp.eq.f32.partialorder %v2434, %v3412
      %vm3509 = vcmp.eq.f32.partialorder %v2434, %v3413
      %vm3510 = vcmp.eq.f32.partialorder %v2434, %v3414
      %vm3511 = vcmp.eq.f32.partialorder %v2434, %v3415
      %vm3512 = vcmp.eq.f32.partialorder %v2439, %v3412
      %vm3513 = vcmp.eq.f32.partialorder %v2439, %v3413
      %vm3514 = vcmp.eq.f32.partialorder %v2439, %v3414
      %vm3515 = vcmp.eq.f32.partialorder %v2439, %v3415
      %vm3516 = vcmp.eq.f32.partialorder %v2444, %v3412
      %vm3517 = vcmp.eq.f32.partialorder %v2444, %v3413
      %vm3518 = vcmp.eq.f32.partialorder %v2444, %v3414
      %vm3519 = vcmp.eq.f32.partialorder %v2444, %v3415
      %vm3520 = vcmp.eq.f32.partialorder %v2449, %v3412
      %vm3521 = vcmp.eq.f32.partialorder %v2449, %v3413
      %vm3522 = vcmp.eq.f32.partialorder %v2449, %v3414
      %vm3523 = vcmp.eq.f32.partialorder %v2449, %v3415
      %vm3524 = vcmp.eq.f32.partialorder %v2454, %v3412
      %vm3525 = vcmp.eq.f32.partialorder %v2454, %v3413
      %vm3526 = vcmp.eq.f32.partialorder %v2454, %v3414
      %vm3527 = vcmp.eq.f32.partialorder %v2454, %v3415
      %vm3528 = vcmp.eq.f32.partialorder %v2459, %v3412
      %vm3529 = vcmp.eq.f32.partialorder %v2459, %v3413
      %vm3530 = vcmp.eq.f32.partialorder %v2459, %v3414
      %vm3531 = vcmp.eq.f32.partialorder %v2459, %v3415
      %vm3532 = vcmp.eq.f32.partialorder %v2464, %v3412
      %vm3533 = vcmp.eq.f32.partialorder %v2464, %v3413
      %vm3534 = vcmp.eq.f32.partialorder %v2464, %v3414
      %vm3535 = vcmp.eq.f32.partialorder %v2464, %v3415
      %vm3536 = vcmp.eq.f32.partialorder %v2469, %v3412
      %vm3537 = vcmp.eq.f32.partialorder %v2469, %v3413
      %vm3538 = vcmp.eq.f32.partialorder %v2469, %v3414
      %vm3539 = vcmp.eq.f32.partialorder %v2469, %v3415
      %vm3540 = vcmp.eq.f32.partialorder %v2474, %v3412
      %vm3541 = vcmp.eq.f32.partialorder %v2474, %v3413
      %vm3542 = vcmp.eq.f32.partialorder %v2474, %v3414
      %vm3543 = vcmp.eq.f32.partialorder %v2474, %v3415
      %vm3544 = vcmp.eq.f32.partialorder %v2479, %v3412
      %vm3545 = vcmp.eq.f32.partialorder %v2479, %v3413
      %vm3546 = vcmp.eq.f32.partialorder %v2479, %v3414
      %vm3547 = vcmp.eq.f32.partialorder %v2479, %v3415
      %vm3548 = vcmp.eq.f32.partialorder %v2484, %v3412
      %vm3549 = vcmp.eq.f32.partialorder %v2484, %v3413
      %vm3550 = vcmp.eq.f32.partialorder %v2484, %v3414
      %vm3551 = vcmp.eq.f32.partialorder %v2484, %v3415
      %vm3552 = vcmp.eq.f32.partialorder %v2489, %v3412
      %vm3553 = vcmp.eq.f32.partialorder %v2489, %v3413
      %vm3554 = vcmp.eq.f32.partialorder %v2489, %v3414
      %vm3555 = vcmp.eq.f32.partialorder %v2489, %v3415
      %vm3556 = vcmp.eq.f32.partialorder %v2494, %v3412
      %vm3557 = vcmp.eq.f32.partialorder %v2494, %v3413
      %vm3558 = vcmp.eq.f32.partialorder %v2494, %v3414
      %vm3559 = vcmp.eq.f32.partialorder %v2494, %v3415
      %vm3560 = vcmp.eq.f32.partialorder %v2499, %v3412
      %vm3561 = vcmp.eq.f32.partialorder %v2499, %v3413
      %vm3562 = vcmp.eq.f32.partialorder %v2499, %v3414
      %vm3563 = vcmp.eq.f32.partialorder %v2499, %v3415
      %vm3564 = vcmp.eq.f32.partialorder %v2504, %v3412
      %vm3565 = vcmp.eq.f32.partialorder %v2504, %v3413
      %vm3566 = vcmp.eq.f32.partialorder %v2504, %v3414
      %vm3567 = vcmp.eq.f32.partialorder %v2504, %v3415
      %vm3568 = vcmp.eq.f32.partialorder %v2509, %v3412
      %vm3569 = vcmp.eq.f32.partialorder %v2509, %v3413
      %vm3570 = vcmp.eq.f32.partialorder %v2509, %v3414
      %vm3571 = vcmp.eq.f32.partialorder %v2509, %v3415
      %vm3572 = vcmp.eq.f32.partialorder %v2514, %v3412
      %vm3573 = vcmp.eq.f32.partialorder %v2514, %v3413
      %vm3574 = vcmp.eq.f32.partialorder %v2514, %v3414
      %vm3575 = vcmp.eq.f32.partialorder %v2514, %v3415
      %vm3576 = vcmp.eq.f32.partialorder %v2519, %v3412
      %vm3577 = vcmp.eq.f32.partialorder %v2519, %v3413
      %vm3578 = vcmp.eq.f32.partialorder %v2519, %v3414
      %vm3579 = vcmp.eq.f32.partialorder %v2519, %v3415
      %vm3580 = vcmp.eq.f32.partialorder %v2524, %v3412
      %vm3581 = vcmp.eq.f32.partialorder %v2524, %v3413
      %vm3582 = vcmp.eq.f32.partialorder %v2524, %v3414
      %vm3583 = vcmp.eq.f32.partialorder %v2524, %v3415
      %vm3584 = vcmp.eq.f32.partialorder %v2529, %v3412
      %vm3585 = vcmp.eq.f32.partialorder %v2529, %v3413
      %vm3586 = vcmp.eq.f32.partialorder %v2529, %v3414
      %vm3587 = vcmp.eq.f32.partialorder %v2529, %v3415
      %vm3588 = vcmp.eq.f32.partialorder %v2534, %v3412
      %vm3589 = vcmp.eq.f32.partialorder %v2534, %v3413
      %vm3590 = vcmp.eq.f32.partialorder %v2534, %v3414
      %vm3591 = vcmp.eq.f32.partialorder %v2534, %v3415
      %vm3592 = vcmp.eq.f32.partialorder %v2539, %v3412
      %vm3593 = vcmp.eq.f32.partialorder %v2539, %v3413
      %vm3594 = vcmp.eq.f32.partialorder %v2539, %v3414
      %vm3595 = vcmp.eq.f32.partialorder %v2539, %v3415
      %vm3596 = vcmp.eq.f32.partialorder %v2544, %v3412
      %vm3597 = vcmp.eq.f32.partialorder %v2544, %v3413
      %vm3598 = vcmp.eq.f32.partialorder %v2544, %v3414
      %vm3599 = vcmp.eq.f32.partialorder %v2544, %v3415
      %vm3600 = vcmp.eq.f32.partialorder %v2549, %v3412
      %vm3601 = vcmp.eq.f32.partialorder %v2549, %v3413
      %vm3602 = vcmp.eq.f32.partialorder %v2549, %v3414
      %vm3603 = vcmp.eq.f32.partialorder %v2549, %v3415
      %vm3604 = vcmp.eq.f32.partialorder %v2554, %v3412
      %vm3605 = vcmp.eq.f32.partialorder %v2554, %v3413
      %vm3606 = vcmp.eq.f32.partialorder %v2554, %v3414
      %vm3607 = vcmp.eq.f32.partialorder %v2554, %v3415
      %vm3608 = vcmp.eq.f32.partialorder %v2559, %v3412
      %vm3609 = vcmp.eq.f32.partialorder %v2559, %v3413
      %vm3610 = vcmp.eq.f32.partialorder %v2559, %v3414
      %vm3611 = vcmp.eq.f32.partialorder %v2559, %v3415
      %vm3612 = vcmp.eq.f32.partialorder %v2564, %v3412
      %vm3613 = vcmp.eq.f32.partialorder %v2564, %v3413
      %vm3614 = vcmp.eq.f32.partialorder %v2564, %v3414
      %vm3615 = vcmp.eq.f32.partialorder %v2564, %v3415
      %vm3616 = vcmp.eq.f32.partialorder %v2569, %v3412
      %vm3617 = vcmp.eq.f32.partialorder %v2569, %v3413
      %vm3618 = vcmp.eq.f32.partialorder %v2569, %v3414
      %vm3619 = vcmp.eq.f32.partialorder %v2569, %v3415
      %vm3620 = vcmp.eq.f32.partialorder %v2574, %v3412
      %vm3621 = vcmp.eq.f32.partialorder %v2574, %v3413
      %vm3622 = vcmp.eq.f32.partialorder %v2574, %v3414
      %vm3623 = vcmp.eq.f32.partialorder %v2574, %v3415
      %vm3624 = vcmp.eq.f32.partialorder %v2579, %v3412
      %vm3625 = vcmp.eq.f32.partialorder %v2579, %v3413
      %vm3626 = vcmp.eq.f32.partialorder %v2579, %v3414
      %vm3627 = vcmp.eq.f32.partialorder %v2579, %v3415
      %vm3628 = vcmp.eq.f32.partialorder %v2584, %v3412
      %vm3629 = vcmp.eq.f32.partialorder %v2584, %v3413
      %vm3630 = vcmp.eq.f32.partialorder %v2584, %v3414
      %vm3631 = vcmp.eq.f32.partialorder %v2584, %v3415
      %vm3632 = vcmp.eq.f32.partialorder %v2589, %v3412
      %vm3633 = vcmp.eq.f32.partialorder %v2589, %v3413
      %vm3634 = vcmp.eq.f32.partialorder %v2589, %v3414
      %vm3635 = vcmp.eq.f32.partialorder %v2589, %v3415
      %vm3636 = vcmp.eq.f32.partialorder %v2594, %v3412
      %vm3637 = vcmp.eq.f32.partialorder %v2594, %v3413
      %vm3638 = vcmp.eq.f32.partialorder %v2594, %v3414
      %vm3639 = vcmp.eq.f32.partialorder %v2594, %v3415
      %vm3640 = vcmp.eq.f32.partialorder %v2599, %v3412
      %vm3641 = vcmp.eq.f32.partialorder %v2599, %v3413
      %vm3642 = vcmp.eq.f32.partialorder %v2599, %v3414
      %vm3643 = vcmp.eq.f32.partialorder %v2599, %v3415
      %vm3644 = vcmp.eq.f32.partialorder %v2604, %v3412
      %vm3645 = vcmp.eq.f32.partialorder %v2604, %v3413
      %vm3646 = vcmp.eq.f32.partialorder %v2604, %v3414
      %vm3647 = vcmp.eq.f32.partialorder %v2604, %v3415
      %vm3648 = vcmp.eq.f32.partialorder %v2609, %v3412
      %vm3649 = vcmp.eq.f32.partialorder %v2609, %v3413
      %vm3650 = vcmp.eq.f32.partialorder %v2609, %v3414
      %vm3651 = vcmp.eq.f32.partialorder %v2609, %v3415
      %vm3652 = vcmp.eq.f32.partialorder %v2614, %v3412
      %vm3653 = vcmp.eq.f32.partialorder %v2614, %v3413
      %vm3654 = vcmp.eq.f32.partialorder %v2614, %v3414
      %vm3655 = vcmp.eq.f32.partialorder %v2614, %v3415
      %vm3656 = vcmp.eq.f32.partialorder %v2619, %v3412
      %vm3657 = vcmp.eq.f32.partialorder %v2619, %v3413
      %vm3658 = vcmp.eq.f32.partialorder %v2619, %v3414
      %vm3659 = vcmp.eq.f32.partialorder %v2619, %v3415
      %vm3660 = vcmp.eq.f32.partialorder %v2624, %v3412
      %vm3661 = vcmp.eq.f32.partialorder %v2624, %v3413
      %vm3662 = vcmp.eq.f32.partialorder %v2624, %v3414
      %vm3663 = vcmp.eq.f32.partialorder %v2624, %v3415
      %vm3664 = vcmp.eq.f32.partialorder %v2629, %v3412
      %vm3665 = vcmp.eq.f32.partialorder %v2629, %v3413
      %vm3666 = vcmp.eq.f32.partialorder %v2629, %v3414
      %vm3667 = vcmp.eq.f32.partialorder %v2629, %v3415
      %vm3668 = vcmp.eq.f32.partialorder %v2634, %v3412
      %vm3669 = vcmp.eq.f32.partialorder %v2634, %v3413
      %vm3670 = vcmp.eq.f32.partialorder %v2634, %v3414
      %vm3671 = vcmp.eq.f32.partialorder %v2634, %v3415
      %v3672 = vsel %vm3416, 1, 0
      %v3673 = vsel %vm3417, 1, 0
      %v3674 = vsel %vm3418, 1, 0
      %v3675 = vsel %vm3419, 1, 0
      %v3676 = vsel %vm3420, 1, 0
      %v3677 = vsel %vm3421, 1, 0
      %v3678 = vsel %vm3422, 1, 0
      %v3679 = vsel %vm3423, 1, 0
      %v3680 = vsel %vm3424, 1, 0
      %v3681 = vsel %vm3425, 1, 0
      %v3682 = vsel %vm3426, 1, 0
      %v3683 = vsel %vm3427, 1, 0
      %v3684 = vsel %vm3428, 1, 0
      %v3685 = vsel %vm3429, 1, 0
      %v3686 = vsel %vm3430, 1, 0
      %v3687 = vsel %vm3431, 1, 0
      %v3688 = vsel %vm3432, 1, 0
      %v3689 = vsel %vm3433, 1, 0
      %v3690 = vsel %vm3434, 1, 0
      %v3691 = vsel %vm3435, 1, 0
      %v3692 = vsel %vm3436, 1, 0
      %v3693 = vsel %vm3437, 1, 0
      %v3694 = vsel %vm3438, 1, 0
      %v3695 = vsel %vm3439, 1, 0
      %v3696 = vsel %vm3440, 1, 0
      %v3697 = vsel %vm3441, 1, 0
      %v3698 = vsel %vm3442, 1, 0
      %v3699 = vsel %vm3443, 1, 0
      %v3700 = vsel %vm3444, 1, 0
      %v3701 = vsel %vm3445, 1, 0
      %v3702 = vsel %vm3446, 1, 0
      %v3703 = vsel %vm3447, 1, 0
      %v3704 = vsel %vm3448, 1, 0
      %v3705 = vsel %vm3449, 1, 0
      %v3706 = vsel %vm3450, 1, 0
      %v3707 = vsel %vm3451, 1, 0
      %v3708 = vsel %vm3452, 1, 0
      %v3709 = vsel %vm3453, 1, 0
      %v3710 = vsel %vm3454, 1, 0
      %v3711 = vsel %vm3455, 1, 0
      %v3712 = vsel %vm3456, 1, 0
      %v3713 = vsel %vm3457, 1, 0
      %v3714 = vsel %vm3458, 1, 0
      %v3715 = vsel %vm3459, 1, 0
      %v3716 = vsel %vm3460, 1, 0
      %v3717 = vsel %vm3461, 1, 0
      %v3718 = vsel %vm3462, 1, 0
      %v3719 = vsel %vm3463, 1, 0
      %v3720 = vsel %vm3464, 1, 0
      %v3721 = vsel %vm3465, 1, 0
      %v3722 = vsel %vm3466, 1, 0
      %v3723 = vsel %vm3467, 1, 0
      %v3724 = vsel %vm3468, 1, 0
      %v3725 = vsel %vm3469, 1, 0
      %v3726 = vsel %vm3470, 1, 0
      %v3727 = vsel %vm3471, 1, 0
      %v3728 = vsel %vm3472, 1, 0
      %v3729 = vsel %vm3473, 1, 0
      %v3730 = vsel %vm3474, 1, 0
      %v3731 = vsel %vm3475, 1, 0
      %v3732 = vsel %vm3476, 1, 0
      %v3733 = vsel %vm3477, 1, 0
      %v3734 = vsel %vm3478, 1, 0
      %v3735 = vsel %vm3479, 1, 0
      %v3736 = vsel %vm3480, 1, 0
      %v3737 = vsel %vm3481, 1, 0
      %v3738 = vsel %vm3482, 1, 0
      %v3739 = vsel %vm3483, 1, 0
      %v3740 = vsel %vm3484, 1, 0
      %v3741 = vsel %vm3485, 1, 0
      %v3742 = vsel %vm3486, 1, 0
      %v3743 = vsel %vm3487, 1, 0
      %v3744 = vsel %vm3488, 1, 0
      %v3745 = vsel %vm3489, 1, 0
      %v3746 = vsel %vm3490, 1, 0
      %v3747 = vsel %vm3491, 1, 0
      %v3748 = vsel %vm3492, 1, 0
      %v3749 = vsel %vm3493, 1, 0
      %v3750 = vsel %vm3494, 1, 0
      %v3751 = vsel %vm3495, 1, 0
      %v3752 = vsel %vm3496, 1, 0
      %v3753 = vsel %vm3497, 1, 0
      %v3754 = vsel %vm3498, 1, 0
      %v3755 = vsel %vm3499, 1, 0
      %v3756 = vsel %vm3500, 1, 0
      %v3757 = vsel %vm3501, 1, 0
      %v3758 = vsel %vm3502, 1, 0
      %v3759 = vsel %vm3503, 1, 0
      %v3760 = vsel %vm3504, 1, 0
      %v3761 = vsel %vm3505, 1, 0
      %v3762 = vsel %vm3506, 1, 0
      %v3763 = vsel %vm3507, 1, 0
      %v3764 = vsel %vm3508, 1, 0
      %v3765 = vsel %vm3509, 1, 0
      %v3766 = vsel %vm3510, 1, 0
      %v3767 = vsel %vm3511, 1, 0
      %v3768 = vsel %vm3512, 1, 0
      %v3769 = vsel %vm3513, 1, 0
      %v3770 = vsel %vm3514, 1, 0
      %v3771 = vsel %vm3515, 1, 0
      %v3772 = vsel %vm3516, 1, 0
      %v3773 = vsel %vm3517, 1, 0
      %v3774 = vsel %vm3518, 1, 0
      %v3775 = vsel %vm3519, 1, 0
      %v3776 = vsel %vm3520, 1, 0
      %v3777 = vsel %vm3521, 1, 0
      %v3778 = vsel %vm3522, 1, 0
      %v3779 = vsel %vm3523, 1, 0
      %v3780 = vsel %vm3524, 1, 0
      %v3781 = vsel %vm3525, 1, 0
      %v3782 = vsel %vm3526, 1, 0
      %v3783 = vsel %vm3527, 1, 0
      %v3784 = vsel %vm3528, 1, 0
      %v3785 = vsel %vm3529, 1, 0
      %v3786 = vsel %vm3530, 1, 0
      %v3787 = vsel %vm3531, 1, 0
      %v3788 = vsel %vm3532, 1, 0
      %v3789 = vsel %vm3533, 1, 0
      %v3790 = vsel %vm3534, 1, 0
      %v3791 = vsel %vm3535, 1, 0
      %v3792 = vsel %vm3536, 1, 0
      %v3793 = vsel %vm3537, 1, 0
      %v3794 = vsel %vm3538, 1, 0
      %v3795 = vsel %vm3539, 1, 0
      %v3796 = vsel %vm3540, 1, 0
      %v3797 = vsel %vm3541, 1, 0
      %v3798 = vsel %vm3542, 1, 0
      %v3799 = vsel %vm3543, 1, 0
      %v3800 = vsel %vm3544, 1, 0
      %v3801 = vsel %vm3545, 1, 0
      %v3802 = vsel %vm3546, 1, 0
      %v3803 = vsel %vm3547, 1, 0
      %v3804 = vsel %vm3548, 1, 0
      %v3805 = vsel %vm3549, 1, 0
      %v3806 = vsel %vm3550, 1, 0
      %v3807 = vsel %vm3551, 1, 0
      %v3808 = vsel %vm3552, 1, 0
      %v3809 = vsel %vm3553, 1, 0
      %v3810 = vsel %vm3554, 1, 0
      %v3811 = vsel %vm3555, 1, 0
      %v3812 = vsel %vm3556, 1, 0
      %v3813 = vsel %vm3557, 1, 0
      %v3814 = vsel %vm3558, 1, 0
      %v3815 = vsel %vm3559, 1, 0
      %v3816 = vsel %vm3560, 1, 0
      %v3817 = vsel %vm3561, 1, 0
      %v3818 = vsel %vm3562, 1, 0
      %v3819 = vsel %vm3563, 1, 0
      %v3820 = vsel %vm3564, 1, 0
      %v3821 = vsel %vm3565, 1, 0
      %v3822 = vsel %vm3566, 1, 0
      %v3823 = vsel %vm3567, 1, 0
      %v3824 = vsel %vm3568, 1, 0
      %v3825 = vsel %vm3569, 1, 0
      %v3826 = vsel %vm3570, 1, 0
      %v3827 = vsel %vm3571, 1, 0
      %v3828 = vsel %vm3572, 1, 0
      %v3829 = vsel %vm3573, 1, 0
      %v3830 = vsel %vm3574, 1, 0
      %v3831 = vsel %vm3575, 1, 0
      %v3832 = vsel %vm3576, 1, 0
      %v3833 = vsel %vm3577, 1, 0
      %v3834 = vsel %vm3578, 1, 0
      %v3835 = vsel %vm3579, 1, 0
      %v3836 = vsel %vm3580, 1, 0
      %v3837 = vsel %vm3581, 1, 0
      %v3838 = vsel %vm3582, 1, 0
      %v3839 = vsel %vm3583, 1, 0
      %v3840 = vsel %vm3584, 1, 0
      %v3841 = vsel %vm3585, 1, 0
      %v3842 = vsel %vm3586, 1, 0
      %v3843 = vsel %vm3587, 1, 0
      %v3844 = vsel %vm3588, 1, 0
      %v3845 = vsel %vm3589, 1, 0
      %v3846 = vsel %vm3590, 1, 0
      %v3847 = vsel %vm3591, 1, 0
      %v3848 = vsel %vm3592, 1, 0
      %v3849 = vsel %vm3593, 1, 0
      %v3850 = vsel %vm3594, 1, 0
      %v3851 = vsel %vm3595, 1, 0
      %v3852 = vsel %vm3596, 1, 0
      %v3853 = vsel %vm3597, 1, 0
      %v3854 = vsel %vm3598, 1, 0
      %v3855 = vsel %vm3599, 1, 0
      %v3856 = vsel %vm3600, 1, 0
      %v3857 = vsel %vm3601, 1, 0
      %v3858 = vsel %vm3602, 1, 0
      %v3859 = vsel %vm3603, 1, 0
      %v3860 = vsel %vm3604, 1, 0
      %v3861 = vsel %vm3605, 1, 0
      %v3862 = vsel %vm3606, 1, 0
      %v3863 = vsel %vm3607, 1, 0
      %v3864 = vsel %vm3608, 1, 0
      %v3865 = vsel %vm3609, 1, 0
      %v3866 = vsel %vm3610, 1, 0
      %v3867 = vsel %vm3611, 1, 0
      %v3868 = vsel %vm3612, 1, 0
      %v3869 = vsel %vm3613, 1, 0
      %v3870 = vsel %vm3614, 1, 0
      %v3871 = vsel %vm3615, 1, 0
      %v3872 = vsel %vm3616, 1, 0
      %v3873 = vsel %vm3617, 1, 0
      %v3874 = vsel %vm3618, 1, 0
      %v3875 = vsel %vm3619, 1, 0
      %v3876 = vsel %vm3620, 1, 0
      %v3877 = vsel %vm3621, 1, 0
      %v3878 = vsel %vm3622, 1, 0
      %v3879 = vsel %vm3623, 1, 0
      %v3880 = vsel %vm3624, 1, 0
      %v3881 = vsel %vm3625, 1, 0
      %v3882 = vsel %vm3626, 1, 0
      %v3883 = vsel %vm3627, 1, 0
      %v3884 = vsel %vm3628, 1, 0
      %v3885 = vsel %vm3629, 1, 0
      %v3886 = vsel %vm3630, 1, 0
      %v3887 = vsel %vm3631, 1, 0
      %v3888 = vsel %vm3632, 1, 0
      %v3889 = vsel %vm3633, 1, 0
      %v3890 = vsel %vm3634, 1, 0
      %v3891 = vsel %vm3635, 1, 0
      %v3892 = vsel %vm3636, 1, 0
      %v3893 = vsel %vm3637, 1, 0
      %v3894 = vsel %vm3638, 1, 0
      %v3895 = vsel %vm3639, 1, 0
      %v3896 = vsel %vm3640, 1, 0
      %v3897 = vsel %vm3641, 1, 0
      %v3898 = vsel %vm3642, 1, 0
      %v3899 = vsel %vm3643, 1, 0
      %v3900 = vsel %vm3644, 1, 0
      %v3901 = vsel %vm3645, 1, 0
      %v3902 = vsel %vm3646, 1, 0
      %v3903 = vsel %vm3647, 1, 0
      %v3904 = vsel %vm3648, 1, 0
      %v3905 = vsel %vm3649, 1, 0
      %v3906 = vsel %vm3650, 1, 0
      %v3907 = vsel %vm3651, 1, 0
      %v3908 = vsel %vm3652, 1, 0
      %v3909 = vsel %vm3653, 1, 0
      %v3910 = vsel %vm3654, 1, 0
      %v3911 = vsel %vm3655, 1, 0
      %v3912 = vsel %vm3656, 1, 0
      %v3913 = vsel %vm3657, 1, 0
      %v3914 = vsel %vm3658, 1, 0
      %v3915 = vsel %vm3659, 1, 0
      %v3916 = vsel %vm3660, 1, 0
      %v3917 = vsel %vm3661, 1, 0
      %v3918 = vsel %vm3662, 1, 0
      %v3919 = vsel %vm3663, 1, 0
      %v3920 = vsel %vm3664, 1, 0
      %v3921 = vsel %vm3665, 1, 0
      %v3922 = vsel %vm3666, 1, 0
      %v3923 = vsel %vm3667, 1, 0
      %v3924 = vsel %vm3668, 1, 0
      %v3925 = vsel %vm3669, 1, 0
      %v3926 = vsel %vm3670, 1, 0
      %v3927 = vsel %vm3671, 1, 0
      %v3928 = vcvt.s32.f32 %v3672
      %v3929 = vcvt.s32.f32 %v3673
      %v3930 = vcvt.s32.f32 %v3674
      %v3931 = vcvt.s32.f32 %v3675
      %v3932 = vcvt.s32.f32 %v3676
      %v3933 = vcvt.s32.f32 %v3677
      %v3934 = vcvt.s32.f32 %v3678
      %v3935 = vcvt.s32.f32 %v3679
      %v3936 = vcvt.s32.f32 %v3680
      %v3937 = vcvt.s32.f32 %v3681
      %v3938 = vcvt.s32.f32 %v3682
      %v3939 = vcvt.s32.f32 %v3683
      %v3940 = vcvt.s32.f32 %v3684
      %v3941 = vcvt.s32.f32 %v3685
      %v3942 = vcvt.s32.f32 %v3686
      %v3943 = vcvt.s32.f32 %v3687
      %v3944 = vcvt.s32.f32 %v3688
      %v3945 = vcvt.s32.f32 %v3689
      %v3946 = vcvt.s32.f32 %v3690
      %v3947 = vcvt.s32.f32 %v3691
      %v3948 = vcvt.s32.f32 %v3692
      %v3949 = vcvt.s32.f32 %v3693
      %v3950 = vcvt.s32.f32 %v3694
      %v3951 = vcvt.s32.f32 %v3695
      %v3952 = vcvt.s32.f32 %v3696
      %v3953 = vcvt.s32.f32 %v3697
      %v3954 = vcvt.s32.f32 %v3698
      %v3955 = vcvt.s32.f32 %v3699
      %v3956 = vcvt.s32.f32 %v3700
      %v3957 = vcvt.s32.f32 %v3701
      %v3958 = vcvt.s32.f32 %v3702
      %v3959 = vcvt.s32.f32 %v3703
      %v3960 = vcvt.s32.f32 %v3704
      %v3961 = vcvt.s32.f32 %v3705
      %v3962 = vcvt.s32.f32 %v3706
      %v3963 = vcvt.s32.f32 %v3707
      %v3964 = vcvt.s32.f32 %v3708
      %v3965 = vcvt.s32.f32 %v3709
      %v3966 = vcvt.s32.f32 %v3710
      %v3967 = vcvt.s32.f32 %v3711
      %v3968 = vcvt.s32.f32 %v3712
      %v3969 = vcvt.s32.f32 %v3713
      %v3970 = vcvt.s32.f32 %v3714
      %v3971 = vcvt.s32.f32 %v3715
      %v3972 = vcvt.s32.f32 %v3716
      %v3973 = vcvt.s32.f32 %v3717
      %v3974 = vcvt.s32.f32 %v3718
      %v3975 = vcvt.s32.f32 %v3719
      %v3976 = vcvt.s32.f32 %v3720
      %v3977 = vcvt.s32.f32 %v3721
      %v3978 = vcvt.s32.f32 %v3722
      %v3979 = vcvt.s32.f32 %v3723
      %v3980 = vcvt.s32.f32 %v3724
      %v3981 = vcvt.s32.f32 %v3725
      %v3982 = vcvt.s32.f32 %v3726
      %v3983 = vcvt.s32.f32 %v3727
      %v3984 = vcvt.s32.f32 %v3728
      %v3985 = vcvt.s32.f32 %v3729
      %v3986 = vcvt.s32.f32 %v3730
      %v3987 = vcvt.s32.f32 %v3731
      %v3988 = vcvt.s32.f32 %v3732
      %v3989 = vcvt.s32.f32 %v3733
      %v3990 = vcvt.s32.f32 %v3734
      %v3991 = vcvt.s32.f32 %v3735
      %v3992 = vcvt.s32.f32 %v3736
      %v3993 = vcvt.s32.f32 %v3737
      %v3994 = vcvt.s32.f32 %v3738
      %v3995 = vcvt.s32.f32 %v3739
      %v3996 = vcvt.s32.f32 %v3740
      %v3997 = vcvt.s32.f32 %v3741
      %v3998 = vcvt.s32.f32 %v3742
      %v3999 = vcvt.s32.f32 %v3743
      %v4000 = vcvt.s32.f32 %v3744
      %v4001 = vcvt.s32.f32 %v3745
      %v4002 = vcvt.s32.f32 %v3746
      %v4003 = vcvt.s32.f32 %v3747
      %v4004 = vcvt.s32.f32 %v3748
      %v4005 = vcvt.s32.f32 %v3749
      %v4006 = vcvt.s32.f32 %v3750
      %v4007 = vcvt.s32.f32 %v3751
      %v4008 = vcvt.s32.f32 %v3752
      %v4009 = vcvt.s32.f32 %v3753
      %v4010 = vcvt.s32.f32 %v3754
      %v4011 = vcvt.s32.f32 %v3755
      %v4012 = vcvt.s32.f32 %v3756
      %v4013 = vcvt.s32.f32 %v3757
      %v4014 = vcvt.s32.f32 %v3758
      %v4015 = vcvt.s32.f32 %v3759
      %v4016 = vcvt.s32.f32 %v3760
      %v4017 = vcvt.s32.f32 %v3761
      %v4018 = vcvt.s32.f32 %v3762
      %v4019 = vcvt.s32.f32 %v3763
      %v4020 = vcvt.s32.f32 %v3764
      %v4021 = vcvt.s32.f32 %v3765
      %v4022 = vcvt.s32.f32 %v3766
      %v4023 = vcvt.s32.f32 %v3767
      %v4024 = vcvt.s32.f32 %v3768
      %v4025 = vcvt.s32.f32 %v3769
      %v4026 = vcvt.s32.f32 %v3770
      %v4027 = vcvt.s32.f32 %v3771
      %v4028 = vcvt.s32.f32 %v3772
      %v4029 = vcvt.s32.f32 %v3773
      %v4030 = vcvt.s32.f32 %v3774
      %v4031 = vcvt.s32.f32 %v3775
      %v4032 = vcvt.s32.f32 %v3776
      %v4033 = vcvt.s32.f32 %v3777
      %v4034 = vcvt.s32.f32 %v3778
      %v4035 = vcvt.s32.f32 %v3779
      %v4036 = vcvt.s32.f32 %v3780
      %v4037 = vcvt.s32.f32 %v3781
      %v4038 = vcvt.s32.f32 %v3782
      %v4039 = vcvt.s32.f32 %v3783
      %v4040 = vcvt.s32.f32 %v3784
      %v4041 = vcvt.s32.f32 %v3785
      %v4042 = vcvt.s32.f32 %v3786
      %v4043 = vcvt.s32.f32 %v3787
      %v4044 = vcvt.s32.f32 %v3788
      %v4045 = vcvt.s32.f32 %v3789
      %v4046 = vcvt.s32.f32 %v3790
      %v4047 = vcvt.s32.f32 %v3791
      %v4048 = vcvt.s32.f32 %v3792
      %v4049 = vcvt.s32.f32 %v3793
      %v4050 = vcvt.s32.f32 %v3794
      %v4051 = vcvt.s32.f32 %v3795
      %v4052 = vcvt.s32.f32 %v3796
      %v4053 = vcvt.s32.f32 %v3797
      %v4054 = vcvt.s32.f32 %v3798
      %v4055 = vcvt.s32.f32 %v3799
      %v4056 = vcvt.s32.f32 %v3800
      %v4057 = vcvt.s32.f32 %v3801
      %v4058 = vcvt.s32.f32 %v3802
      %v4059 = vcvt.s32.f32 %v3803
      %v4060 = vcvt.s32.f32 %v3804
      %v4061 = vcvt.s32.f32 %v3805
      %v4062 = vcvt.s32.f32 %v3806
      %v4063 = vcvt.s32.f32 %v3807
      %v4064 = vcvt.s32.f32 %v3808
      %v4065 = vcvt.s32.f32 %v3809
      %v4066 = vcvt.s32.f32 %v3810
      %v4067 = vcvt.s32.f32 %v3811
      %v4068 = vcvt.s32.f32 %v3812
      %v4069 = vcvt.s32.f32 %v3813
      %v4070 = vcvt.s32.f32 %v3814
      %v4071 = vcvt.s32.f32 %v3815
      %v4072 = vcvt.s32.f32 %v3816
      %v4073 = vcvt.s32.f32 %v3817
      %v4074 = vcvt.s32.f32 %v3818
      %v4075 = vcvt.s32.f32 %v3819
      %v4076 = vcvt.s32.f32 %v3820
      %v4077 = vcvt.s32.f32 %v3821
      %v4078 = vcvt.s32.f32 %v3822
      %v4079 = vcvt.s32.f32 %v3823
      %v4080 = vcvt.s32.f32 %v3824
      %v4081 = vcvt.s32.f32 %v3825
      %v4082 = vcvt.s32.f32 %v3826
      %v4083 = vcvt.s32.f32 %v3827
      %v4084 = vcvt.s32.f32 %v3828
      %v4085 = vcvt.s32.f32 %v3829
      %v4086 = vcvt.s32.f32 %v3830
      %v4087 = vcvt.s32.f32 %v3831
      %v4088 = vcvt.s32.f32 %v3832
      %v4089 = vcvt.s32.f32 %v3833
      %v4090 = vcvt.s32.f32 %v3834
      %v4091 = vcvt.s32.f32 %v3835
      %v4092 = vcvt.s32.f32 %v3836
      %v4093 = vcvt.s32.f32 %v3837
      %v4094 = vcvt.s32.f32 %v3838
      %v4095 = vcvt.s32.f32 %v3839
      %v4096 = vcvt.s32.f32 %v3840
      %v4097 = vcvt.s32.f32 %v3841
      %v4098 = vcvt.s32.f32 %v3842
      %v4099 = vcvt.s32.f32 %v3843
      %v4100 = vcvt.s32.f32 %v3844
      %v4101 = vcvt.s32.f32 %v3845
      %v4102 = vcvt.s32.f32 %v3846
      %v4103 = vcvt.s32.f32 %v3847
      %v4104 = vcvt.s32.f32 %v3848
      %v4105 = vcvt.s32.f32 %v3849
      %v4106 = vcvt.s32.f32 %v3850
      %v4107 = vcvt.s32.f32 %v3851
      %v4108 = vcvt.s32.f32 %v3852
      %v4109 = vcvt.s32.f32 %v3853
      %v4110 = vcvt.s32.f32 %v3854
      %v4111 = vcvt.s32.f32 %v3855
      %v4112 = vcvt.s32.f32 %v3856
      %v4113 = vcvt.s32.f32 %v3857
      %v4114 = vcvt.s32.f32 %v3858
      %v4115 = vcvt.s32.f32 %v3859
      %v4116 = vcvt.s32.f32 %v3860
      %v4117 = vcvt.s32.f32 %v3861
      %v4118 = vcvt.s32.f32 %v3862
      %v4119 = vcvt.s32.f32 %v3863
      %v4120 = vcvt.s32.f32 %v3864
      %v4121 = vcvt.s32.f32 %v3865
      %v4122 = vcvt.s32.f32 %v3866
      %v4123 = vcvt.s32.f32 %v3867
      %v4124 = vcvt.s32.f32 %v3868
      %v4125 = vcvt.s32.f32 %v3869
      %v4126 = vcvt.s32.f32 %v3870
      %v4127 = vcvt.s32.f32 %v3871
      %v4128 = vcvt.s32.f32 %v3872
      %v4129 = vcvt.s32.f32 %v3873
      %v4130 = vcvt.s32.f32 %v3874
      %v4131 = vcvt.s32.f32 %v3875
      %v4132 = vcvt.s32.f32 %v3876
      %v4133 = vcvt.s32.f32 %v3877
      %v4134 = vcvt.s32.f32 %v3878
      %v4135 = vcvt.s32.f32 %v3879
      %v4136 = vcvt.s32.f32 %v3880
      %v4137 = vcvt.s32.f32 %v3881
      %v4138 = vcvt.s32.f32 %v3882
      %v4139 = vcvt.s32.f32 %v3883
      %v4140 = vcvt.s32.f32 %v3884
      %v4141 = vcvt.s32.f32 %v3885
      %v4142 = vcvt.s32.f32 %v3886
      %v4143 = vcvt.s32.f32 %v3887
      %v4144 = vcvt.s32.f32 %v3888
      %v4145 = vcvt.s32.f32 %v3889
      %v4146 = vcvt.s32.f32 %v3890
      %v4147 = vcvt.s32.f32 %v3891
      %v4148 = vcvt.s32.f32 %v3892
      %v4149 = vcvt.s32.f32 %v3893
      %v4150 = vcvt.s32.f32 %v3894
      %v4151 = vcvt.s32.f32 %v3895
      %v4152 = vcvt.s32.f32 %v3896
      %v4153 = vcvt.s32.f32 %v3897
      %v4154 = vcvt.s32.f32 %v3898
      %v4155 = vcvt.s32.f32 %v3899
      %v4156 = vcvt.s32.f32 %v3900
      %v4157 = vcvt.s32.f32 %v3901
      %v4158 = vcvt.s32.f32 %v3902
      %v4159 = vcvt.s32.f32 %v3903
      %v4160 = vcvt.s32.f32 %v3904
      %v4161 = vcvt.s32.f32 %v3905
      %v4162 = vcvt.s32.f32 %v3906
      %v4163 = vcvt.s32.f32 %v3907
      %v4164 = vcvt.s32.f32 %v3908
      %v4165 = vcvt.s32.f32 %v3909
      %v4166 = vcvt.s32.f32 %v3910
      %v4167 = vcvt.s32.f32 %v3911
      %v4168 = vcvt.s32.f32 %v3912
      %v4169 = vcvt.s32.f32 %v3913
      %v4170 = vcvt.s32.f32 %v3914
      %v4171 = vcvt.s32.f32 %v3915
      %v4172 = vcvt.s32.f32 %v3916
      %v4173 = vcvt.s32.f32 %v3917
      %v4174 = vcvt.s32.f32 %v3918
      %v4175 = vcvt.s32.f32 %v3919
      %v4176 = vcvt.s32.f32 %v3920
      %v4177 = vcvt.s32.f32 %v3921
      %v4178 = vcvt.s32.f32 %v3922
      %v4179 = vcvt.s32.f32 %v3923
      %v4180 = vcvt.s32.f32 %v3924
      %v4181 = vcvt.s32.f32 %v3925
      %v4182 = vcvt.s32.f32 %v3926
      %v4183 = vcvt.s32.f32 %v3927
      %v4184 = vsub.f32 %v3156, %v3928
      %v4185 = vsub.f32 %v3157, %v3929
      %v4186 = vsub.f32 %v3158, %v3930
      %v4187 = vsub.f32 %v3159, %v3931
      %v4188 = vsub.f32 %v3160, %v3932
      %v4189 = vsub.f32 %v3161, %v3933
      %v4190 = vsub.f32 %v3162, %v3934
      %v4191 = vsub.f32 %v3163, %v3935
      %v4192 = vsub.f32 %v3164, %v3936
      %v4193 = vsub.f32 %v3165, %v3937
      %v4194 = vsub.f32 %v3166, %v3938
      %v4195 = vsub.f32 %v3167, %v3939
      %v4196 = vsub.f32 %v3168, %v3940
      %v4197 = vsub.f32 %v3169, %v3941
      %v4198 = vsub.f32 %v3170, %v3942
      %v4199 = vsub.f32 %v3171, %v3943
      %v4200 = vsub.f32 %v3172, %v3944
      %v4201 = vsub.f32 %v3173, %v3945
      %v4202 = vsub.f32 %v3174, %v3946
      %v4203 = vsub.f32 %v3175, %v3947
      %v4204 = vsub.f32 %v3176, %v3948
      %v4205 = vsub.f32 %v3177, %v3949
      %v4206 = vsub.f32 %v3178, %v3950
      %v4207 = vsub.f32 %v3179, %v3951
      %v4208 = vsub.f32 %v3180, %v3952
      %v4209 = vsub.f32 %v3181, %v3953
      %v4210 = vsub.f32 %v3182, %v3954
      %v4211 = vsub.f32 %v3183, %v3955
      %v4212 = vsub.f32 %v3184, %v3956
      %v4213 = vsub.f32 %v3185, %v3957
      %v4214 = vsub.f32 %v3186, %v3958
      %v4215 = vsub.f32 %v3187, %v3959
      %v4216 = vsub.f32 %v3188, %v3960
      %v4217 = vsub.f32 %v3189, %v3961
      %v4218 = vsub.f32 %v3190, %v3962
      %v4219 = vsub.f32 %v3191, %v3963
      %v4220 = vsub.f32 %v3192, %v3964
      %v4221 = vsub.f32 %v3193, %v3965
      %v4222 = vsub.f32 %v3194, %v3966
      %v4223 = vsub.f32 %v3195, %v3967
      %v4224 = vsub.f32 %v3196, %v3968
      %v4225 = vsub.f32 %v3197, %v3969
      %v4226 = vsub.f32 %v3198, %v3970
      %v4227 = vsub.f32 %v3199, %v3971
      %v4228 = vsub.f32 %v3200, %v3972
      %v4229 = vsub.f32 %v3201, %v3973
      %v4230 = vsub.f32 %v3202, %v3974
      %v4231 = vsub.f32 %v3203, %v3975
      %v4232 = vsub.f32 %v3204, %v3976
      %v4233 = vsub.f32 %v3205, %v3977
      %v4234 = vsub.f32 %v3206, %v3978
      %v4235 = vsub.f32 %v3207, %v3979
      %v4236 = vsub.f32 %v3208, %v3980
      %v4237 = vsub.f32 %v3209, %v3981
      %v4238 = vsub.f32 %v3210, %v3982
      %v4239 = vsub.f32 %v3211, %v3983
      %v4240 = vsub.f32 %v3212, %v3984
      %v4241 = vsub.f32 %v3213, %v3985
      %v4242 = vsub.f32 %v3214, %v3986
      %v4243 = vsub.f32 %v3215, %v3987
      %v4244 = vsub.f32 %v3216, %v3988
      %v4245 = vsub.f32 %v3217, %v3989
      %v4246 = vsub.f32 %v3218, %v3990
      %v4247 = vsub.f32 %v3219, %v3991
      %v4248 = vsub.f32 %v3220, %v3992
      %v4249 = vsub.f32 %v3221, %v3993
      %v4250 = vsub.f32 %v3222, %v3994
      %v4251 = vsub.f32 %v3223, %v3995
      %v4252 = vsub.f32 %v3224, %v3996
      %v4253 = vsub.f32 %v3225, %v3997
      %v4254 = vsub.f32 %v3226, %v3998
      %v4255 = vsub.f32 %v3227, %v3999
      %v4256 = vsub.f32 %v3228, %v4000
      %v4257 = vsub.f32 %v3229, %v4001
      %v4258 = vsub.f32 %v3230, %v4002
      %v4259 = vsub.f32 %v3231, %v4003
      %v4260 = vsub.f32 %v3232, %v4004
      %v4261 = vsub.f32 %v3233, %v4005
      %v4262 = vsub.f32 %v3234, %v4006
      %v4263 = vsub.f32 %v3235, %v4007
      %v4264 = vsub.f32 %v3236, %v4008
      %v4265 = vsub.f32 %v3237, %v4009
      %v4266 = vsub.f32 %v3238, %v4010
      %v4267 = vsub.f32 %v3239, %v4011
      %v4268 = vsub.f32 %v3240, %v4012
      %v4269 = vsub.f32 %v3241, %v4013
      %v4270 = vsub.f32 %v3242, %v4014
      %v4271 = vsub.f32 %v3243, %v4015
      %v4272 = vsub.f32 %v3244, %v4016
      %v4273 = vsub.f32 %v3245, %v4017
      %v4274 = vsub.f32 %v3246, %v4018
      %v4275 = vsub.f32 %v3247, %v4019
      %v4276 = vsub.f32 %v3248, %v4020
      %v4277 = vsub.f32 %v3249, %v4021
      %v4278 = vsub.f32 %v3250, %v4022
      %v4279 = vsub.f32 %v3251, %v4023
      %v4280 = vsub.f32 %v3252, %v4024
      %v4281 = vsub.f32 %v3253, %v4025
      %v4282 = vsub.f32 %v3254, %v4026
      %v4283 = vsub.f32 %v3255, %v4027
      %v4284 = vsub.f32 %v3256, %v4028
      %v4285 = vsub.f32 %v3257, %v4029
      %v4286 = vsub.f32 %v3258, %v4030
      %v4287 = vsub.f32 %v3259, %v4031
      %v4288 = vsub.f32 %v3260, %v4032
      %v4289 = vsub.f32 %v3261, %v4033
      %v4290 = vsub.f32 %v3262, %v4034
      %v4291 = vsub.f32 %v3263, %v4035
      %v4292 = vsub.f32 %v3264, %v4036
      %v4293 = vsub.f32 %v3265, %v4037
      %v4294 = vsub.f32 %v3266, %v4038
      %v4295 = vsub.f32 %v3267, %v4039
      %v4296 = vsub.f32 %v3268, %v4040
      %v4297 = vsub.f32 %v3269, %v4041
      %v4298 = vsub.f32 %v3270, %v4042
      %v4299 = vsub.f32 %v3271, %v4043
      %v4300 = vsub.f32 %v3272, %v4044
      %v4301 = vsub.f32 %v3273, %v4045
      %v4302 = vsub.f32 %v3274, %v4046
      %v4303 = vsub.f32 %v3275, %v4047
      %v4304 = vsub.f32 %v3276, %v4048
      %v4305 = vsub.f32 %v3277, %v4049
      %v4306 = vsub.f32 %v3278, %v4050
      %v4307 = vsub.f32 %v3279, %v4051
      %v4308 = vsub.f32 %v3280, %v4052
      %v4309 = vsub.f32 %v3281, %v4053
      %v4310 = vsub.f32 %v3282, %v4054
      %v4311 = vsub.f32 %v3283, %v4055
      %v4312 = vsub.f32 %v3284, %v4056
      %v4313 = vsub.f32 %v3285, %v4057
      %v4314 = vsub.f32 %v3286, %v4058
      %v4315 = vsub.f32 %v3287, %v4059
      %v4316 = vsub.f32 %v3288, %v4060
      %v4317 = vsub.f32 %v3289, %v4061
      %v4318 = vsub.f32 %v3290, %v4062
      %v4319 = vsub.f32 %v3291, %v4063
      %v4320 = vsub.f32 %v3292, %v4064
      %v4321 = vsub.f32 %v3293, %v4065
      %v4322 = vsub.f32 %v3294, %v4066
      %v4323 = vsub.f32 %v3295, %v4067
      %v4324 = vsub.f32 %v3296, %v4068
      %v4325 = vsub.f32 %v3297, %v4069
      %v4326 = vsub.f32 %v3298, %v4070
      %v4327 = vsub.f32 %v3299, %v4071
      %v4328 = vsub.f32 %v3300, %v4072
      %v4329 = vsub.f32 %v3301, %v4073
      %v4330 = vsub.f32 %v3302, %v4074
      %v4331 = vsub.f32 %v3303, %v4075
      %v4332 = vsub.f32 %v3304, %v4076
      %v4333 = vsub.f32 %v3305, %v4077
      %v4334 = vsub.f32 %v3306, %v4078
      %v4335 = vsub.f32 %v3307, %v4079
      %v4336 = vsub.f32 %v3308, %v4080
      %v4337 = vsub.f32 %v3309, %v4081
      %v4338 = vsub.f32 %v3310, %v4082
      %v4339 = vsub.f32 %v3311, %v4083
      %v4340 = vsub.f32 %v3312, %v4084
      %v4341 = vsub.f32 %v3313, %v4085
      %v4342 = vsub.f32 %v3314, %v4086
      %v4343 = vsub.f32 %v3315, %v4087
      %v4344 = vsub.f32 %v3316, %v4088
      %v4345 = vsub.f32 %v3317, %v4089
      %v4346 = vsub.f32 %v3318, %v4090
      %v4347 = vsub.f32 %v3319, %v4091
      %v4348 = vsub.f32 %v3320, %v4092
      %v4349 = vsub.f32 %v3321, %v4093
      %v4350 = vsub.f32 %v3322, %v4094
      %v4351 = vsub.f32 %v3323, %v4095
      %v4352 = vsub.f32 %v3324, %v4096
      %v4353 = vsub.f32 %v3325, %v4097
      %v4354 = vsub.f32 %v3326, %v4098
      %v4355 = vsub.f32 %v3327, %v4099
      %v4356 = vsub.f32 %v3328, %v4100
      %v4357 = vsub.f32 %v3329, %v4101
      %v4358 = vsub.f32 %v3330, %v4102
      %v4359 = vsub.f32 %v3331, %v4103
      %v4360 = vsub.f32 %v3332, %v4104
      %v4361 = vsub.f32 %v3333, %v4105
      %v4362 = vsub.f32 %v3334, %v4106
      %v4363 = vsub.f32 %v3335, %v4107
      %v4364 = vsub.f32 %v3336, %v4108
      %v4365 = vsub.f32 %v3337, %v4109
      %v4366 = vsub.f32 %v3338, %v4110
      %v4367 = vsub.f32 %v3339, %v4111
      %v4368 = vsub.f32 %v3340, %v4112
      %v4369 = vsub.f32 %v3341, %v4113
      %v4370 = vsub.f32 %v3342, %v4114
      %v4371 = vsub.f32 %v3343, %v4115
      %v4372 = vsub.f32 %v3344, %v4116
      %v4373 = vsub.f32 %v3345, %v4117
      %v4374 = vsub.f32 %v3346, %v4118
      %v4375 = vsub.f32 %v3347, %v4119
      %v4376 = vsub.f32 %v3348, %v4120
      %v4377 = vsub.f32 %v3349, %v4121
      %v4378 = vsub.f32 %v3350, %v4122
      %v4379 = vsub.f32 %v3351, %v4123
      %v4380 = vsub.f32 %v3352, %v4124
      %v4381 = vsub.f32 %v3353, %v4125
      %v4382 = vsub.f32 %v3354, %v4126
      %v4383 = vsub.f32 %v3355, %v4127
      %v4384 = vsub.f32 %v3356, %v4128
      %v4385 = vsub.f32 %v3357, %v4129
      %v4386 = vsub.f32 %v3358, %v4130
      %v4387 = vsub.f32 %v3359, %v4131
      %v4388 = vsub.f32 %v3360, %v4132
      %v4389 = vsub.f32 %v3361, %v4133
      %v4390 = vsub.f32 %v3362, %v4134
      %v4391 = vsub.f32 %v3363, %v4135
      %v4392 = vsub.f32 %v3364, %v4136
      %v4393 = vsub.f32 %v3365, %v4137
      %v4394 = vsub.f32 %v3366, %v4138
      %v4395 = vsub.f32 %v3367, %v4139
      %v4396 = vsub.f32 %v3368, %v4140
      %v4397 = vsub.f32 %v3369, %v4141
      %v4398 = vsub.f32 %v3370, %v4142
      %v4399 = vsub.f32 %v3371, %v4143
      %v4400 = vsub.f32 %v3372, %v4144
      %v4401 = vsub.f32 %v3373, %v4145
      %v4402 = vsub.f32 %v3374, %v4146
      %v4403 = vsub.f32 %v3375, %v4147
      %v4404 = vsub.f32 %v3376, %v4148
      %v4405 = vsub.f32 %v3377, %v4149
      %v4406 = vsub.f32 %v3378, %v4150
      %v4407 = vsub.f32 %v3379, %v4151
      %v4408 = vsub.f32 %v3380, %v4152
      %v4409 = vsub.f32 %v3381, %v4153
      %v4410 = vsub.f32 %v3382, %v4154
      %v4411 = vsub.f32 %v3383, %v4155
      %v4412 = vsub.f32 %v3384, %v4156
      %v4413 = vsub.f32 %v3385, %v4157
      %v4414 = vsub.f32 %v3386, %v4158
      %v4415 = vsub.f32 %v3387, %v4159
      %v4416 = vsub.f32 %v3388, %v4160
      %v4417 = vsub.f32 %v3389, %v4161
      %v4418 = vsub.f32 %v3390, %v4162
      %v4419 = vsub.f32 %v3391, %v4163
      %v4420 = vsub.f32 %v3392, %v4164
      %v4421 = vsub.f32 %v3393, %v4165
      %v4422 = vsub.f32 %v3394, %v4166
      %v4423 = vsub.f32 %v3395, %v4167
      %v4424 = vsub.f32 %v3396, %v4168
      %v4425 = vsub.f32 %v3397, %v4169
      %v4426 = vsub.f32 %v3398, %v4170
      %v4427 = vsub.f32 %v3399, %v4171
      %v4428 = vsub.f32 %v3400, %v4172
      %v4429 = vsub.f32 %v3401, %v4173
      %v4430 = vsub.f32 %v3402, %v4174
      %v4431 = vsub.f32 %v3403, %v4175
      %v4432 = vsub.f32 %v3404, %v4176
      %v4433 = vsub.f32 %v3405, %v4177
      %v4434 = vsub.f32 %v3406, %v4178
      %v4435 = vsub.f32 %v3407, %v4179
      %v4436 = vsub.f32 %v3408, %v4180
      %v4437 = vsub.f32 %v3409, %v4181
      %v4438 = vsub.f32 %v3410, %v4182
      %v4439 = vsub.f32 %v3411, %v4183
      %4440 = vmatprep.subr.mxu0 %v4245
      %4441 = vmatpush1.msra.mxu0 %v4244
      %4442 = vmatprep.subr.mxu0 %v4241
      %4443 = vmatpush1.msra.mxu0 %v4240
      %4444 = vmatprep.subr.mxu0 %v4237
      %4445 = vmatpush1.msra.mxu0 %v4236
      %4446 = vmatprep.subr.mxu0 %v4233
      %4447 = vmatpush1.msra.mxu0 %v4232
      %4448 = vmatprep.subr.mxu0 %v4229
      %4449 = vmatpush1.msra.mxu0 %v4228
      %4450 = vmatprep.subr.mxu0 %v4225
      %4451 = vmatpush1.msra.mxu0 %v4224
      %4452 = vmatprep.subr.mxu0 %v4221
      %4453 = vmatpush1.msra.mxu0 %v4220
      %4454 = vmatprep.subr.mxu0 %v4217
      %4455 = vmatpush1.msra.mxu0 %v4216
      %4456 = vmatprep.subr.mxu0 %v4213
      %4457 = vmatpush1.msra.mxu0 %v4212
      %4458 = vmatprep.subr.mxu0 %v4209
      %4459 = vmatpush1.msra.mxu0 %v4208
      %4460 = vmatprep.subr.mxu0 %v4205
      %4461 = vmatpush1.msra.mxu0 %v4204
      %4462 = vmatprep.subr.mxu0 %v4201
      %4463 = vmatpush1.msra.mxu0 %v4200
      %4464 = vmatprep.subr.mxu0 %v4197
      %4465 = vmatpush1.msra.mxu0 %v4196
      %4466 = vmatprep.subr.mxu0 %v4193
      %4467 = vmatpush1.msra.mxu0 %v4192
      %4468 = vmatprep.subr.mxu0 %v4189
      %4469 = vmatpush1.msra.mxu0 %v4188
      %4470 = vmatprep.subr.mxu0 %v4185
      %4471 = vmatpush1.msra.mxu0 %v4184
      %4472 = vmatprep.subr.mxu0 %v4309
      %4473 = vmatpush2.msra.mxu0 %v4308
      %4474 = vmatprep.subr.mxu0 %v4305
      %4475 = vmatpush2.msra.mxu0 %v4304
      %4476 = vmatprep.subr.mxu0 %v4301
      %4477 = vmatpush2.msra.mxu0 %v4300
      %4478 = vmatprep.subr.mxu0 %v4297
      %4479 = vmatpush2.msra.mxu0 %v4296
      %4480 = vmatprep.subr.mxu0 %v4293
      %4481 = vmatpush2.msra.mxu0 %v4292
      %4482 = vmatprep.subr.mxu0 %v4289
      %4483 = vmatpush2.msra.mxu0 %v4288
      %4484 = vmatprep.subr.mxu0 %v4285
      %4485 = vmatpush2.msra.mxu0 %v4284
      %4486 = vmatprep.subr.mxu0 %v4281
      %4487 = vmatpush2.msra.mxu0 %v4280
      %4488 = vmatprep.subr.mxu0 %v4277
      %4489 = vmatpush2.msra.mxu0 %v4276
      %4490 = vmatprep.subr.mxu0 %v4273
      %4491 = vmatpush2.msra.mxu0 %v4272
      %4492 = vmatprep.subr.mxu0 %v4269
      %4493 = vmatpush2.msra.mxu0 %v4268
      %4494 = vmatprep.subr.mxu0 %v4265
      %4495 = vmatpush2.msra.mxu0 %v4264
      %4496 = vmatprep.subr.mxu0 %v4261
      %4497 = vmatpush2.msra.mxu0 %v4260
      %4498 = vmatprep.subr.mxu0 %v4257
      %4499 = vmatpush2.msra.mxu0 %v4256
      %4500 = vmatprep.subr.mxu0 %v4253
      %4501 = vmatpush2.msra.mxu0 %v4252
      %4502 = vmatprep.subr.mxu0 %v4249
      %4503 = vmatpush2.msra.mxu0 %v4248
      %4504 = vmatprep.mubr.f32.mxu0 %v702
      %4505 = vmatmul.mubr.f32.gmra.mxu0 %v698
      %v4506 = vpop.f32.mrf.mxu0
      %v4507 = vadd.f32 0.0, %v4506
      %v4508 = vpop.f32.mrf.mxu0
      %v4509 = vadd.f32 0.0, %v4508
      %4510 = vdwg.mxu0
      %4511 = vmatprep.subr.mxu0 %v4373
      %4512 = vmatpush1.msra.mxu0 %v4372
      %4513 = vmatprep.subr.mxu0 %v4369
      %4514 = vmatpush1.msra.mxu0 %v4368
      %4515 = vmatprep.subr.mxu0 %v4365
      %4516 = vmatpush1.msra.mxu0 %v4364
      %4517 = vmatprep.subr.mxu0 %v4361
      %4518 = vmatpush1.msra.mxu0 %v4360
      %4519 = vmatprep.subr.mxu0 %v4357
      %4520 = vmatpush1.msra.mxu0 %v4356
      %4521 = vmatprep.subr.mxu0 %v4353
      %4522 = vmatpush1.msra.mxu0 %v4352
      %4523 = vmatprep.subr.mxu0 %v4349
      %4524 = vmatpush1.msra.mxu0 %v4348
      %4525 = vmatprep.subr.mxu0 %v4345
      %4526 = vmatpush1.msra.mxu0 %v4344
      %4527 = vmatprep.subr.mxu0 %v4341
      %4528 = vmatpush1.msra.mxu0 %v4340
      %4529 = vmatprep.subr.mxu0 %v4337
      %4530 = vmatpush1.msra.mxu0 %v4336
      %4531 = vmatprep.subr.mxu0 %v4333
      %4532 = vmatpush1.msra.mxu0 %v4332
      %4533 = vmatprep.subr.mxu0 %v4329
      %4534 = vmatpush1.msra.mxu0 %v4328
      %4535 = vmatprep.subr.mxu0 %v4325
      %4536 = vmatpush1.msra.mxu0 %v4324
      %4537 = vmatprep.subr.mxu0 %v4321
      %4538 = vmatpush1.msra.mxu0 %v4320
      %4539 = vmatprep.subr.mxu0 %v4317
      %4540 = vmatpush1.msra.mxu0 %v4316
      %4541 = vmatprep.subr.mxu0 %v4313
      %4542 = vmatpush1.msra.mxu0 %v4312
      %4543 = vmatprep.subr.mxu0 %v4437
      %4544 = vmatpush2.msra.mxu0 %v4436
      %4545 = vmatprep.subr.mxu0 %v4433
      %4546 = vmatpush2.msra.mxu0 %v4432
      %4547 = vmatprep.subr.mxu0 %v4429
      %4548 = vmatpush2.msra.mxu0 %v4428
      %4549 = vmatprep.subr.mxu0 %v4425
      %4550 = vmatpush2.msra.mxu0 %v4424
      %4551 = vmatprep.subr.mxu0 %v4421
      %4552 = vmatpush2.msra.mxu0 %v4420
      %4553 = vmatprep.subr.mxu0 %v4417
      %4554 = vmatpush2.msra.mxu0 %v4416
      %4555 = vmatprep.subr.mxu0 %v4413
      %4556 = vmatpush2.msra.mxu0 %v4412
      %4557 = vmatprep.subr.mxu0 %v4409
      %4558 = vmatpush2.msra.mxu0 %v4408
      %4559 = vmatprep.subr.mxu0 %v4405
      %4560 = vmatpush2.msra.mxu0 %v4404
      %4561 = vmatprep.subr.mxu0 %v4401
      %4562 = vmatpush2.msra.mxu0 %v4400
      %4563 = vmatprep.subr.mxu0 %v4397
      %4564 = vmatpush2.msra.mxu0 %v4396
      %4565 = vmatprep.subr.mxu0 %v4393
      %4566 = vmatpush2.msra.mxu0 %v4392
      %4567 = vmatprep.subr.mxu0 %v4389
      %4568 = vmatpush2.msra.mxu0 %v4388
      %4569 = vmatprep.subr.mxu0 %v4385
      %4570 = vmatpush2.msra.mxu0 %v4384
      %4571 = vmatprep.subr.mxu0 %v4381
      %4572 = vmatpush2.msra.mxu0 %v4380
      %4573 = vmatprep.subr.mxu0 %v4377
      %4574 = vmatpush2.msra.mxu0 %v4376
      %4575 = vmatprep.mubr.f32.mxu0 %v710
      %4576 = vmatmul.mubr.f32.gmra.mxu0 %v706
      %v4577 = vpop.f32.mrf.mxu0
      %v4578 = vadd.f32 %v4507, %v4577
      %v4579 = vpop.f32.mrf.mxu0
      %v4580 = vadd.f32 %v4509, %v4579
      %4581 = vdwg.mxu0
      %4582 = vmatprep.subr.mxu0 %v4247
      %4583 = vmatpush1.msra.mxu0 %v4246
      %4584 = vmatprep.subr.mxu0 %v4243
      %4585 = vmatpush1.msra.mxu0 %v4242
      %4586 = vmatprep.subr.mxu0 %v4239
      %4587 = vmatpush1.msra.mxu0 %v4238
      %4588 = vmatprep.subr.mxu0 %v4235
      %4589 = vmatpush1.msra.mxu0 %v4234
      %4590 = vmatprep.subr.mxu0 %v4231
      %4591 = vmatpush1.msra.mxu0 %v4230
      %4592 = vmatprep.subr.mxu0 %v4227
      %4593 = vmatpush1.msra.mxu0 %v4226
      %4594 = vmatprep.subr.mxu0 %v4223
      %4595 = vmatpush1.msra.mxu0 %v4222
      %4596 = vmatprep.subr.mxu0 %v4219
      %4597 = vmatpush1.msra.mxu0 %v4218
      %4598 = vmatprep.subr.mxu0 %v4215
      %4599 = vmatpush1.msra.mxu0 %v4214
      %4600 = vmatprep.subr.mxu0 %v4211
      %4601 = vmatpush1.msra.mxu0 %v4210
      %4602 = vmatprep.subr.mxu0 %v4207
      %4603 = vmatpush1.msra.mxu0 %v4206
      %4604 = vmatprep.subr.mxu0 %v4203
      %4605 = vmatpush1.msra.mxu0 %v4202
      %4606 = vmatprep.subr.mxu0 %v4199
      %4607 = vmatpush1.msra.mxu0 %v4198
      %4608 = vmatprep.subr.mxu0 %v4195
      %4609 = vmatpush1.msra.mxu0 %v4194
      %4610 = vmatprep.subr.mxu0 %v4191
      %4611 = vmatpush1.msra.mxu0 %v4190
      %4612 = vmatprep.subr.mxu0 %v4187
      %4613 = vmatpush1.msra.mxu0 %v4186
      %4614 = vmatprep.subr.mxu0 %v4311
      %4615 = vmatpush2.msra.mxu0 %v4310
      %4616 = vmatprep.subr.mxu0 %v4307
      %4617 = vmatpush2.msra.mxu0 %v4306
      %4618 = vmatprep.subr.mxu0 %v4303
      %4619 = vmatpush2.msra.mxu0 %v4302
      %4620 = vmatprep.subr.mxu0 %v4299
      %4621 = vmatpush2.msra.mxu0 %v4298
      %4622 = vmatprep.subr.mxu0 %v4295
      %4623 = vmatpush2.msra.mxu0 %v4294
      %4624 = vmatprep.subr.mxu0 %v4291
      %4625 = vmatpush2.msra.mxu0 %v4290
      %4626 = vmatprep.subr.mxu0 %v4287
      %4627 = vmatpush2.msra.mxu0 %v4286
      %4628 = vmatprep.subr.mxu0 %v4283
      %4629 = vmatpush2.msra.mxu0 %v4282
      %4630 = vmatprep.subr.mxu0 %v4279
      %4631 = vmatpush2.msra.mxu0 %v4278
      %4632 = vmatprep.subr.mxu0 %v4275
      %4633 = vmatpush2.msra.mxu0 %v4274
      %4634 = vmatprep.subr.mxu0 %v4271
      %4635 = vmatpush2.msra.mxu0 %v4270
      %4636 = vmatprep.subr.mxu0 %v4267
      %4637 = vmatpush2.msra.mxu0 %v4266
      %4638 = vmatprep.subr.mxu0 %v4263
      %4639 = vmatpush2.msra.mxu0 %v4262
      %4640 = vmatprep.subr.mxu0 %v4259
      %4641 = vmatpush2.msra.mxu0 %v4258
      %4642 = vmatprep.subr.mxu0 %v4255
      %4643 = vmatpush2.msra.mxu0 %v4254
      %4644 = vmatprep.subr.mxu0 %v4251
      %4645 = vmatpush2.msra.mxu0 %v4250
      %4646 = vmatprep.mubr.f32.mxu0 %v702
      %4647 = vmatmul.mubr.f32.gmra.mxu0 %v698
      %v4648 = vpop.f32.mrf.mxu0
      %v4649 = vadd.f32 0.0, %v4648
      %v4650 = vpop.f32.mrf.mxu0
      %v4651 = vadd.f32 0.0, %v4650
      %4652 = vdwg.mxu0
      %4653 = vmatprep.subr.mxu0 %v4375
      %4654 = vmatpush1.msra.mxu0 %v4374
      %4655 = vmatprep.subr.mxu0 %v4371
      %4656 = vmatpush1.msra.mxu0 %v4370
      %4657 = vmatprep.subr.mxu0 %v4367
      %4658 = vmatpush1.msra.mxu0 %v4366
      %4659 = vmatprep.subr.mxu0 %v4363
      %4660 = vmatpush1.msra.mxu0 %v4362
      %4661 = vmatprep.subr.mxu0 %v4359
      %4662 = vmatpush1.msra.mxu0 %v4358
      %4663 = vmatprep.subr.mxu0 %v4355
      %4664 = vmatpush1.msra.mxu0 %v4354
      %4665 = vmatprep.subr.mxu0 %v4351
      %4666 = vmatpush1.msra.mxu0 %v4350
      %4667 = vmatprep.subr.mxu0 %v4347
      %4668 = vmatpush1.msra.mxu0 %v4346
      %4669 = vmatprep.subr.mxu0 %v4343
      %4670 = vmatpush1.msra.mxu0 %v4342
      %4671 = vmatprep.subr.mxu0 %v4339
      %4672 = vmatpush1.msra.mxu0 %v4338
      %4673 = vmatprep.subr.mxu0 %v4335
      %4674 = vmatpush1.msra.mxu0 %v4334
      %4675 = vmatprep.subr.mxu0 %v4331
      %4676 = vmatpush1.msra.mxu0 %v4330
      %4677 = vmatprep.subr.mxu0 %v4327
      %4678 = vmatpush1.msra.mxu0 %v4326
      %4679 = vmatprep.subr.mxu0 %v4323
      %4680 = vmatpush1.msra.mxu0 %v4322
      %4681 = vmatprep.subr.mxu0 %v4319
      %4682 = vmatpush1.msra.mxu0 %v4318
      %4683 = vmatprep.subr.mxu0 %v4315
      %4684 = vmatpush1.msra.mxu0 %v4314
      %4685 = vmatprep.subr.mxu0 %v4439
      %4686 = vmatpush2.msra.mxu0 %v4438
      %4687 = vmatprep.subr.mxu0 %v4435
      %4688 = vmatpush2.msra.mxu0 %v4434
      %4689 = vmatprep.subr.mxu0 %v4431
      %4690 = vmatpush2.msra.mxu0 %v4430
      %4691 = vmatprep.subr.mxu0 %v4427
      %4692 = vmatpush2.msra.mxu0 %v4426
      %4693 = vmatprep.subr.mxu0 %v4423
      %4694 = vmatpush2.msra.mxu0 %v4422
      %4695 = vmatprep.subr.mxu0 %v4419
      %4696 = vmatpush2.msra.mxu0 %v4418
      %4697 = vmatprep.subr.mxu0 %v4415
      %4698 = vmatpush2.msra.mxu0 %v4414
      %4699 = vmatprep.subr.mxu0 %v4411
      %4700 = vmatpush2.msra.mxu0 %v4410
      %4701 = vmatprep.subr.mxu0 %v4407
      %4702 = vmatpush2.msra.mxu0 %v4406
      %4703 = vmatprep.subr.mxu0 %v4403
      %4704 = vmatpush2.msra.mxu0 %v4402
      %4705 = vmatprep.subr.mxu0 %v4399
      %4706 = vmatpush2.msra.mxu0 %v4398
      %4707 = vmatprep.subr.mxu0 %v4395
      %4708 = vmatpush2.msra.mxu0 %v4394
      %4709 = vmatprep.subr.mxu0 %v4391
      %4710 = vmatpush2.msra.mxu0 %v4390
      %4711 = vmatprep.subr.mxu0 %v4387
      %4712 = vmatpush2.msra.mxu0 %v4386
      %4713 = vmatprep.subr.mxu0 %v4383
      %4714 = vmatpush2.msra.mxu0 %v4382
      %4715 = vmatprep.subr.mxu0 %v4379
      %4716 = vmatpush2.msra.mxu0 %v4378
      %4717 = vmatprep.mubr.f32.mxu0 %v710
      %4718 = vmatmul.mubr.f32.gmra.mxu0 %v706
      %v4719 = vpop.f32.mrf.mxu0
      %v4720 = vadd.f32 %v4649, %v4719
      %v4721 = vpop.f32.mrf.mxu0
      %v4722 = vadd.f32 %v4651, %v4721
      %4723 = vdwg.mxu0
      %vm4724 = vcmp.le.f32.partialorder %v2319, %v2640
      %vm4725 = vcmp.le.f32.partialorder %v2319, %v2641
      %vm4726 = vcmp.le.f32.partialorder %v2319, %v2642
      %vm4727 = vcmp.le.f32.partialorder %v2319, %v2643
      %vm4728 = vcmp.le.f32.partialorder %v2324, %v2640
      %vm4729 = vcmp.le.f32.partialorder %v2324, %v2641
      %vm4730 = vcmp.le.f32.partialorder %v2324, %v2642
      %vm4731 = vcmp.le.f32.partialorder %v2324, %v2643
      %vm4732 = vcmp.le.f32.partialorder %v2329, %v2640
      %vm4733 = vcmp.le.f32.partialorder %v2329, %v2641
      %vm4734 = vcmp.le.f32.partialorder %v2329, %v2642
      %vm4735 = vcmp.le.f32.partialorder %v2329, %v2643
      %vm4736 = vcmp.le.f32.partialorder %v2334, %v2640
      %vm4737 = vcmp.le.f32.partialorder %v2334, %v2641
      %vm4738 = vcmp.le.f32.partialorder %v2334, %v2642
      %vm4739 = vcmp.le.f32.partialorder %v2334, %v2643
      %vm4740 = vcmp.le.f32.partialorder %v2339, %v2640
      %vm4741 = vcmp.le.f32.partialorder %v2339, %v2641
      %vm4742 = vcmp.le.f32.partialorder %v2339, %v2642
      %vm4743 = vcmp.le.f32.partialorder %v2339, %v2643
      %vm4744 = vcmp.le.f32.partialorder %v2344, %v2640
      %vm4745 = vcmp.le.f32.partialorder %v2344, %v2641
      %vm4746 = vcmp.le.f32.partialorder %v2344, %v2642
      %vm4747 = vcmp.le.f32.partialorder %v2344, %v2643
      %vm4748 = vcmp.le.f32.partialorder %v2349, %v2640
      %vm4749 = vcmp.le.f32.partialorder %v2349, %v2641
      %vm4750 = vcmp.le.f32.partialorder %v2349, %v2642
      %vm4751 = vcmp.le.f32.partialorder %v2349, %v2643
      %vm4752 = vcmp.le.f32.partialorder %v2354, %v2640
      %vm4753 = vcmp.le.f32.partialorder %v2354, %v2641
      %vm4754 = vcmp.le.f32.partialorder %v2354, %v2642
      %vm4755 = vcmp.le.f32.partialorder %v2354, %v2643
      %vm4756 = vcmp.le.f32.partialorder %v2359, %v2640
      %vm4757 = vcmp.le.f32.partialorder %v2359, %v2641
      %vm4758 = vcmp.le.f32.partialorder %v2359, %v2642
      %vm4759 = vcmp.le.f32.partialorder %v2359, %v2643
      %vm4760 = vcmp.le.f32.partialorder %v2364, %v2640
      %vm4761 = vcmp.le.f32.partialorder %v2364, %v2641
      %vm4762 = vcmp.le.f32.partialorder %v2364, %v2642
      %vm4763 = vcmp.le.f32.partialorder %v2364, %v2643
      %vm4764 = vcmp.le.f32.partialorder %v2369, %v2640
      %vm4765 = vcmp.le.f32.partialorder %v2369, %v2641
      %vm4766 = vcmp.le.f32.partialorder %v2369, %v2642
      %vm4767 = vcmp.le.f32.partialorder %v2369, %v2643
      %vm4768 = vcmp.le.f32.partialorder %v2374, %v2640
      %vm4769 = vcmp.le.f32.partialorder %v2374, %v2641
      %vm4770 = vcmp.le.f32.partialorder %v2374, %v2642
      %vm4771 = vcmp.le.f32.partialorder %v2374, %v2643
      %vm4772 = vcmp.le.f32.partialorder %v2379, %v2640
      %vm4773 = vcmp.le.f32.partialorder %v2379, %v2641
      %vm4774 = vcmp.le.f32.partialorder %v2379, %v2642
      %vm4775 = vcmp.le.f32.partialorder %v2379, %v2643
      %vm4776 = vcmp.le.f32.partialorder %v2384, %v2640
      %vm4777 = vcmp.le.f32.partialorder %v2384, %v2641
      %vm4778 = vcmp.le.f32.partialorder %v2384, %v2642
      %vm4779 = vcmp.le.f32.partialorder %v2384, %v2643
      %vm4780 = vcmp.le.f32.partialorder %v2389, %v2640
      %vm4781 = vcmp.le.f32.partialorder %v2389, %v2641
      %vm4782 = vcmp.le.f32.partialorder %v2389, %v2642
      %vm4783 = vcmp.le.f32.partialorder %v2389, %v2643
      %vm4784 = vcmp.le.f32.partialorder %v2394, %v2640
      %vm4785 = vcmp.le.f32.partialorder %v2394, %v2641
      %vm4786 = vcmp.le.f32.partialorder %v2394, %v2642
      %vm4787 = vcmp.le.f32.partialorder %v2394, %v2643
      %vm4788 = vcmp.le.f32.partialorder %v2399, %v2640
      %vm4789 = vcmp.le.f32.partialorder %v2399, %v2641
      %vm4790 = vcmp.le.f32.partialorder %v2399, %v2642
      %vm4791 = vcmp.le.f32.partialorder %v2399, %v2643
      %vm4792 = vcmp.le.f32.partialorder %v2404, %v2640
      %vm4793 = vcmp.le.f32.partialorder %v2404, %v2641
      %vm4794 = vcmp.le.f32.partialorder %v2404, %v2642
      %vm4795 = vcmp.le.f32.partialorder %v2404, %v2643
      %vm4796 = vcmp.le.f32.partialorder %v2409, %v2640
      %vm4797 = vcmp.le.f32.partialorder %v2409, %v2641
      %vm4798 = vcmp.le.f32.partialorder %v2409, %v2642
      %vm4799 = vcmp.le.f32.partialorder %v2409, %v2643
      %vm4800 = vcmp.le.f32.partialorder %v2414, %v2640
      %vm4801 = vcmp.le.f32.partialorder %v2414, %v2641
      %vm4802 = vcmp.le.f32.partialorder %v2414, %v2642
      %vm4803 = vcmp.le.f32.partialorder %v2414, %v2643
      %vm4804 = vcmp.le.f32.partialorder %v2419, %v2640
      %vm4805 = vcmp.le.f32.partialorder %v2419, %v2641
      %vm4806 = vcmp.le.f32.partialorder %v2419, %v2642
      %vm4807 = vcmp.le.f32.partialorder %v2419, %v2643
      %vm4808 = vcmp.le.f32.partialorder %v2424, %v2640
      %vm4809 = vcmp.le.f32.partialorder %v2424, %v2641
      %vm4810 = vcmp.le.f32.partialorder %v2424, %v2642
      %vm4811 = vcmp.le.f32.partialorder %v2424, %v2643
      %vm4812 = vcmp.le.f32.partialorder %v2429, %v2640
      %vm4813 = vcmp.le.f32.partialorder %v2429, %v2641
      %vm4814 = vcmp.le.f32.partialorder %v2429, %v2642
      %vm4815 = vcmp.le.f32.partialorder %v2429, %v2643
      %vm4816 = vcmp.le.f32.partialorder %v2434, %v2640
      %vm4817 = vcmp.le.f32.partialorder %v2434, %v2641
      %vm4818 = vcmp.le.f32.partialorder %v2434, %v2642
      %vm4819 = vcmp.le.f32.partialorder %v2434, %v2643
      %vm4820 = vcmp.le.f32.partialorder %v2439, %v2640
      %vm4821 = vcmp.le.f32.partialorder %v2439, %v2641
      %vm4822 = vcmp.le.f32.partialorder %v2439, %v2642
      %vm4823 = vcmp.le.f32.partialorder %v2439, %v2643
      %vm4824 = vcmp.le.f32.partialorder %v2444, %v2640
      %vm4825 = vcmp.le.f32.partialorder %v2444, %v2641
      %vm4826 = vcmp.le.f32.partialorder %v2444, %v2642
      %vm4827 = vcmp.le.f32.partialorder %v2444, %v2643
      %vm4828 = vcmp.le.f32.partialorder %v2449, %v2640
      %vm4829 = vcmp.le.f32.partialorder %v2449, %v2641
      %vm4830 = vcmp.le.f32.partialorder %v2449, %v2642
      %vm4831 = vcmp.le.f32.partialorder %v2449, %v2643
      %vm4832 = vcmp.le.f32.partialorder %v2454, %v2640
      %vm4833 = vcmp.le.f32.partialorder %v2454, %v2641
      %vm4834 = vcmp.le.f32.partialorder %v2454, %v2642
      %vm4835 = vcmp.le.f32.partialorder %v2454, %v2643
      %vm4836 = vcmp.le.f32.partialorder %v2459, %v2640
      %vm4837 = vcmp.le.f32.partialorder %v2459, %v2641
      %vm4838 = vcmp.le.f32.partialorder %v2459, %v2642
      %vm4839 = vcmp.le.f32.partialorder %v2459, %v2643
      %vm4840 = vcmp.le.f32.partialorder %v2464, %v2640
      %vm4841 = vcmp.le.f32.partialorder %v2464, %v2641
      %vm4842 = vcmp.le.f32.partialorder %v2464, %v2642
      %vm4843 = vcmp.le.f32.partialorder %v2464, %v2643
      %vm4844 = vcmp.le.f32.partialorder %v2469, %v2640
      %vm4845 = vcmp.le.f32.partialorder %v2469, %v2641
      %vm4846 = vcmp.le.f32.partialorder %v2469, %v2642
      %vm4847 = vcmp.le.f32.partialorder %v2469, %v2643
      %vm4848 = vcmp.le.f32.partialorder %v2474, %v2640
      %vm4849 = vcmp.le.f32.partialorder %v2474, %v2641
      %vm4850 = vcmp.le.f32.partialorder %v2474, %v2642
      %vm4851 = vcmp.le.f32.partialorder %v2474, %v2643
      %vm4852 = vcmp.le.f32.partialorder %v2479, %v2640
      %vm4853 = vcmp.le.f32.partialorder %v2479, %v2641
      %vm4854 = vcmp.le.f32.partialorder %v2479, %v2642
      %vm4855 = vcmp.le.f32.partialorder %v2479, %v2643
      %vm4856 = vcmp.le.f32.partialorder %v2484, %v2640
      %vm4857 = vcmp.le.f32.partialorder %v2484, %v2641
      %vm4858 = vcmp.le.f32.partialorder %v2484, %v2642
      %vm4859 = vcmp.le.f32.partialorder %v2484, %v2643
      %vm4860 = vcmp.le.f32.partialorder %v2489, %v2640
      %vm4861 = vcmp.le.f32.partialorder %v2489, %v2641
      %vm4862 = vcmp.le.f32.partialorder %v2489, %v2642
      %vm4863 = vcmp.le.f32.partialorder %v2489, %v2643
      %vm4864 = vcmp.le.f32.partialorder %v2494, %v2640
      %vm4865 = vcmp.le.f32.partialorder %v2494, %v2641
      %vm4866 = vcmp.le.f32.partialorder %v2494, %v2642
      %vm4867 = vcmp.le.f32.partialorder %v2494, %v2643
      %vm4868 = vcmp.le.f32.partialorder %v2499, %v2640
      %vm4869 = vcmp.le.f32.partialorder %v2499, %v2641
      %vm4870 = vcmp.le.f32.partialorder %v2499, %v2642
      %vm4871 = vcmp.le.f32.partialorder %v2499, %v2643
      %vm4872 = vcmp.le.f32.partialorder %v2504, %v2640
      %vm4873 = vcmp.le.f32.partialorder %v2504, %v2641
      %vm4874 = vcmp.le.f32.partialorder %v2504, %v2642
      %vm4875 = vcmp.le.f32.partialorder %v2504, %v2643
      %vm4876 = vcmp.le.f32.partialorder %v2509, %v2640
      %vm4877 = vcmp.le.f32.partialorder %v2509, %v2641
      %vm4878 = vcmp.le.f32.partialorder %v2509, %v2642
      %vm4879 = vcmp.le.f32.partialorder %v2509, %v2643
      %vm4880 = vcmp.le.f32.partialorder %v2514, %v2640
      %vm4881 = vcmp.le.f32.partialorder %v2514, %v2641
      %vm4882 = vcmp.le.f32.partialorder %v2514, %v2642
      %vm4883 = vcmp.le.f32.partialorder %v2514, %v2643
      %vm4884 = vcmp.le.f32.partialorder %v2519, %v2640
      %vm4885 = vcmp.le.f32.partialorder %v2519, %v2641
      %vm4886 = vcmp.le.f32.partialorder %v2519, %v2642
      %vm4887 = vcmp.le.f32.partialorder %v2519, %v2643
      %vm4888 = vcmp.le.f32.partialorder %v2524, %v2640
      %vm4889 = vcmp.le.f32.partialorder %v2524, %v2641
      %vm4890 = vcmp.le.f32.partialorder %v2524, %v2642
      %vm4891 = vcmp.le.f32.partialorder %v2524, %v2643
      %vm4892 = vcmp.le.f32.partialorder %v2529, %v2640
      %vm4893 = vcmp.le.f32.partialorder %v2529, %v2641
      %vm4894 = vcmp.le.f32.partialorder %v2529, %v2642
      %vm4895 = vcmp.le.f32.partialorder %v2529, %v2643
      %vm4896 = vcmp.le.f32.partialorder %v2534, %v2640
      %vm4897 = vcmp.le.f32.partialorder %v2534, %v2641
      %vm4898 = vcmp.le.f32.partialorder %v2534, %v2642
      %vm4899 = vcmp.le.f32.partialorder %v2534, %v2643
      %vm4900 = vcmp.le.f32.partialorder %v2539, %v2640
      %vm4901 = vcmp.le.f32.partialorder %v2539, %v2641
      %vm4902 = vcmp.le.f32.partialorder %v2539, %v2642
      %vm4903 = vcmp.le.f32.partialorder %v2539, %v2643
      %vm4904 = vcmp.le.f32.partialorder %v2544, %v2640
      %vm4905 = vcmp.le.f32.partialorder %v2544, %v2641
      %vm4906 = vcmp.le.f32.partialorder %v2544, %v2642
      %vm4907 = vcmp.le.f32.partialorder %v2544, %v2643
      %vm4908 = vcmp.le.f32.partialorder %v2549, %v2640
      %vm4909 = vcmp.le.f32.partialorder %v2549, %v2641
      %vm4910 = vcmp.le.f32.partialorder %v2549, %v2642
      %vm4911 = vcmp.le.f32.partialorder %v2549, %v2643
      %vm4912 = vcmp.le.f32.partialorder %v2554, %v2640
      %vm4913 = vcmp.le.f32.partialorder %v2554, %v2641
      %vm4914 = vcmp.le.f32.partialorder %v2554, %v2642
      %vm4915 = vcmp.le.f32.partialorder %v2554, %v2643
      %vm4916 = vcmp.le.f32.partialorder %v2559, %v2640
      %vm4917 = vcmp.le.f32.partialorder %v2559, %v2641
      %vm4918 = vcmp.le.f32.partialorder %v2559, %v2642
      %vm4919 = vcmp.le.f32.partialorder %v2559, %v2643
      %vm4920 = vcmp.le.f32.partialorder %v2564, %v2640
      %vm4921 = vcmp.le.f32.partialorder %v2564, %v2641
      %vm4922 = vcmp.le.f32.partialorder %v2564, %v2642
      %vm4923 = vcmp.le.f32.partialorder %v2564, %v2643
      %vm4924 = vcmp.le.f32.partialorder %v2569, %v2640
      %vm4925 = vcmp.le.f32.partialorder %v2569, %v2641
      %vm4926 = vcmp.le.f32.partialorder %v2569, %v2642
      %vm4927 = vcmp.le.f32.partialorder %v2569, %v2643
      %vm4928 = vcmp.le.f32.partialorder %v2574, %v2640
      %vm4929 = vcmp.le.f32.partialorder %v2574, %v2641
      %vm4930 = vcmp.le.f32.partialorder %v2574, %v2642
      %vm4931 = vcmp.le.f32.partialorder %v2574, %v2643
      %vm4932 = vcmp.le.f32.partialorder %v2579, %v2640
      %vm4933 = vcmp.le.f32.partialorder %v2579, %v2641
      %vm4934 = vcmp.le.f32.partialorder %v2579, %v2642
      %vm4935 = vcmp.le.f32.partialorder %v2579, %v2643
      %vm4936 = vcmp.le.f32.partialorder %v2584, %v2640
      %vm4937 = vcmp.le.f32.partialorder %v2584, %v2641
      %vm4938 = vcmp.le.f32.partialorder %v2584, %v2642
      %vm4939 = vcmp.le.f32.partialorder %v2584, %v2643
      %vm4940 = vcmp.le.f32.partialorder %v2589, %v2640
      %vm4941 = vcmp.le.f32.partialorder %v2589, %v2641
      %vm4942 = vcmp.le.f32.partialorder %v2589, %v2642
      %vm4943 = vcmp.le.f32.partialorder %v2589, %v2643
      %vm4944 = vcmp.le.f32.partialorder %v2594, %v2640
      %vm4945 = vcmp.le.f32.partialorder %v2594, %v2641
      %vm4946 = vcmp.le.f32.partialorder %v2594, %v2642
      %vm4947 = vcmp.le.f32.partialorder %v2594, %v2643
      %vm4948 = vcmp.le.f32.partialorder %v2599, %v2640
      %vm4949 = vcmp.le.f32.partialorder %v2599, %v2641
      %vm4950 = vcmp.le.f32.partialorder %v2599, %v2642
      %vm4951 = vcmp.le.f32.partialorder %v2599, %v2643
      %vm4952 = vcmp.le.f32.partialorder %v2604, %v2640
      %vm4953 = vcmp.le.f32.partialorder %v2604, %v2641
      %vm4954 = vcmp.le.f32.partialorder %v2604, %v2642
      %vm4955 = vcmp.le.f32.partialorder %v2604, %v2643
      %vm4956 = vcmp.le.f32.partialorder %v2609, %v2640
      %vm4957 = vcmp.le.f32.partialorder %v2609, %v2641
      %vm4958 = vcmp.le.f32.partialorder %v2609, %v2642
      %vm4959 = vcmp.le.f32.partialorder %v2609, %v2643
      %vm4960 = vcmp.le.f32.partialorder %v2614, %v2640
      %vm4961 = vcmp.le.f32.partialorder %v2614, %v2641
      %vm4962 = vcmp.le.f32.partialorder %v2614, %v2642
      %vm4963 = vcmp.le.f32.partialorder %v2614, %v2643
      %vm4964 = vcmp.le.f32.partialorder %v2619, %v2640
      %vm4965 = vcmp.le.f32.partialorder %v2619, %v2641
      %vm4966 = vcmp.le.f32.partialorder %v2619, %v2642
      %vm4967 = vcmp.le.f32.partialorder %v2619, %v2643
      %vm4968 = vcmp.le.f32.partialorder %v2624, %v2640
      %vm4969 = vcmp.le.f32.partialorder %v2624, %v2641
      %vm4970 = vcmp.le.f32.partialorder %v2624, %v2642
      %vm4971 = vcmp.le.f32.partialorder %v2624, %v2643
      %vm4972 = vcmp.le.f32.partialorder %v2629, %v2640
      %vm4973 = vcmp.le.f32.partialorder %v2629, %v2641
      %vm4974 = vcmp.le.f32.partialorder %v2629, %v2642
      %vm4975 = vcmp.le.f32.partialorder %v2629, %v2643
      %vm4976 = vcmp.le.f32.partialorder %v2634, %v2640
      %vm4977 = vcmp.le.f32.partialorder %v2634, %v2641
      %vm4978 = vcmp.le.f32.partialorder %v2634, %v2642
      %vm4979 = vcmp.le.f32.partialorder %v2634, %v2643
      %v4980 = vsel %vm4724, 1, 0
      %v4981 = vsel %vm4725, 1, 0
      %v4982 = vsel %vm4726, 1, 0
      %v4983 = vsel %vm4727, 1, 0
      %v4984 = vsel %vm4728, 1, 0
      %v4985 = vsel %vm4729, 1, 0
      %v4986 = vsel %vm4730, 1, 0
      %v4987 = vsel %vm4731, 1, 0
      %v4988 = vsel %vm4732, 1, 0
      %v4989 = vsel %vm4733, 1, 0
      %v4990 = vsel %vm4734, 1, 0
      %v4991 = vsel %vm4735, 1, 0
      %v4992 = vsel %vm4736, 1, 0
      %v4993 = vsel %vm4737, 1, 0
      %v4994 = vsel %vm4738, 1, 0
      %v4995 = vsel %vm4739, 1, 0
      %v4996 = vsel %vm4740, 1, 0
      %v4997 = vsel %vm4741, 1, 0
      %v4998 = vsel %vm4742, 1, 0
      %v4999 = vsel %vm4743, 1, 0
      %v5000 = vsel %vm4744, 1, 0
      %v5001 = vsel %vm4745, 1, 0
      %v5002 = vsel %vm4746, 1, 0
      %v5003 = vsel %vm4747, 1, 0
      %v5004 = vsel %vm4748, 1, 0
      %v5005 = vsel %vm4749, 1, 0
      %v5006 = vsel %vm4750, 1, 0
      %v5007 = vsel %vm4751, 1, 0
      %v5008 = vsel %vm4752, 1, 0
      %v5009 = vsel %vm4753, 1, 0
      %v5010 = vsel %vm4754, 1, 0
      %v5011 = vsel %vm4755, 1, 0
      %v5012 = vsel %vm4756, 1, 0
      %v5013 = vsel %vm4757, 1, 0
      %v5014 = vsel %vm4758, 1, 0
      %v5015 = vsel %vm4759, 1, 0
      %v5016 = vsel %vm4760, 1, 0
      %v5017 = vsel %vm4761, 1, 0
      %v5018 = vsel %vm4762, 1, 0
      %v5019 = vsel %vm4763, 1, 0
      %v5020 = vsel %vm4764, 1, 0
      %v5021 = vsel %vm4765, 1, 0
      %v5022 = vsel %vm4766, 1, 0
      %v5023 = vsel %vm4767, 1, 0
      %v5024 = vsel %vm4768, 1, 0
      %v5025 = vsel %vm4769, 1, 0
      %v5026 = vsel %vm4770, 1, 0
      %v5027 = vsel %vm4771, 1, 0
      %v5028 = vsel %vm4772, 1, 0
      %v5029 = vsel %vm4773, 1, 0
      %v5030 = vsel %vm4774, 1, 0
      %v5031 = vsel %vm4775, 1, 0
      %v5032 = vsel %vm4776, 1, 0
      %v5033 = vsel %vm4777, 1, 0
      %v5034 = vsel %vm4778, 1, 0
      %v5035 = vsel %vm4779, 1, 0
      %v5036 = vsel %vm4780, 1, 0
      %v5037 = vsel %vm4781, 1, 0
      %v5038 = vsel %vm4782, 1, 0
      %v5039 = vsel %vm4783, 1, 0
      %v5040 = vsel %vm4784, 1, 0
      %v5041 = vsel %vm4785, 1, 0
      %v5042 = vsel %vm4786, 1, 0
      %v5043 = vsel %vm4787, 1, 0
      %v5044 = vsel %vm4788, 1, 0
      %v5045 = vsel %vm4789, 1, 0
      %v5046 = vsel %vm4790, 1, 0
      %v5047 = vsel %vm4791, 1, 0
      %v5048 = vsel %vm4792, 1, 0
      %v5049 = vsel %vm4793, 1, 0
      %v5050 = vsel %vm4794, 1, 0
      %v5051 = vsel %vm4795, 1, 0
      %v5052 = vsel %vm4796, 1, 0
      %v5053 = vsel %vm4797, 1, 0
      %v5054 = vsel %vm4798, 1, 0
      %v5055 = vsel %vm4799, 1, 0
      %v5056 = vsel %vm4800, 1, 0
      %v5057 = vsel %vm4801, 1, 0
      %v5058 = vsel %vm4802, 1, 0
      %v5059 = vsel %vm4803, 1, 0
      %v5060 = vsel %vm4804, 1, 0
      %v5061 = vsel %vm4805, 1, 0
      %v5062 = vsel %vm4806, 1, 0
      %v5063 = vsel %vm4807, 1, 0
      %v5064 = vsel %vm4808, 1, 0
      %v5065 = vsel %vm4809, 1, 0
      %v5066 = vsel %vm4810, 1, 0
      %v5067 = vsel %vm4811, 1, 0
      %v5068 = vsel %vm4812, 1, 0
      %v5069 = vsel %vm4813, 1, 0
      %v5070 = vsel %vm4814, 1, 0
      %v5071 = vsel %vm4815, 1, 0
      %v5072 = vsel %vm4816, 1, 0
      %v5073 = vsel %vm4817, 1, 0
      %v5074 = vsel %vm4818, 1, 0
      %v5075 = vsel %vm4819, 1, 0
      %v5076 = vsel %vm4820, 1, 0
      %v5077 = vsel %vm4821, 1, 0
      %v5078 = vsel %vm4822, 1, 0
      %v5079 = vsel %vm4823, 1, 0
      %v5080 = vsel %vm4824, 1, 0
      %v5081 = vsel %vm4825, 1, 0
      %v5082 = vsel %vm4826, 1, 0
      %v5083 = vsel %vm4827, 1, 0
      %v5084 = vsel %vm4828, 1, 0
      %v5085 = vsel %vm4829, 1, 0
      %v5086 = vsel %vm4830, 1, 0
      %v5087 = vsel %vm4831, 1, 0
      %v5088 = vsel %vm4832, 1, 0
      %v5089 = vsel %vm4833, 1, 0
      %v5090 = vsel %vm4834, 1, 0
      %v5091 = vsel %vm4835, 1, 0
      %v5092 = vsel %vm4836, 1, 0
      %v5093 = vsel %vm4837, 1, 0
      %v5094 = vsel %vm4838, 1, 0
      %v5095 = vsel %vm4839, 1, 0
      %v5096 = vsel %vm4840, 1, 0
      %v5097 = vsel %vm4841, 1, 0
      %v5098 = vsel %vm4842, 1, 0
      %v5099 = vsel %vm4843, 1, 0
      %v5100 = vsel %vm4844, 1, 0
      %v5101 = vsel %vm4845, 1, 0
      %v5102 = vsel %vm4846, 1, 0
      %v5103 = vsel %vm4847, 1, 0
      %v5104 = vsel %vm4848, 1, 0
      %v5105 = vsel %vm4849, 1, 0
      %v5106 = vsel %vm4850, 1, 0
      %v5107 = vsel %vm4851, 1, 0
      %v5108 = vsel %vm4852, 1, 0
      %v5109 = vsel %vm4853, 1, 0
      %v5110 = vsel %vm4854, 1, 0
      %v5111 = vsel %vm4855, 1, 0
      %v5112 = vsel %vm4856, 1, 0
      %v5113 = vsel %vm4857, 1, 0
      %v5114 = vsel %vm4858, 1, 0
      %v5115 = vsel %vm4859, 1, 0
      %v5116 = vsel %vm4860, 1, 0
      %v5117 = vsel %vm4861, 1, 0
      %v5118 = vsel %vm4862, 1, 0
      %v5119 = vsel %vm4863, 1, 0
      %v5120 = vsel %vm4864, 1, 0
      %v5121 = vsel %vm4865, 1, 0
      %v5122 = vsel %vm4866, 1, 0
      %v5123 = vsel %vm4867, 1, 0
      %v5124 = vsel %vm4868, 1, 0
      %v5125 = vsel %vm4869, 1, 0
      %v5126 = vsel %vm4870, 1, 0
      %v5127 = vsel %vm4871, 1, 0
      %v5128 = vsel %vm4872, 1, 0
      %v5129 = vsel %vm4873, 1, 0
      %v5130 = vsel %vm4874, 1, 0
      %v5131 = vsel %vm4875, 1, 0
      %v5132 = vsel %vm4876, 1, 0
      %v5133 = vsel %vm4877, 1, 0
      %v5134 = vsel %vm4878, 1, 0
      %v5135 = vsel %vm4879, 1, 0
      %v5136 = vsel %vm4880, 1, 0
      %v5137 = vsel %vm4881, 1, 0
      %v5138 = vsel %vm4882, 1, 0
      %v5139 = vsel %vm4883, 1, 0
      %v5140 = vsel %vm4884, 1, 0
      %v5141 = vsel %vm4885, 1, 0
      %v5142 = vsel %vm4886, 1, 0
      %v5143 = vsel %vm4887, 1, 0
      %v5144 = vsel %vm4888, 1, 0
      %v5145 = vsel %vm4889, 1, 0
      %v5146 = vsel %vm4890, 1, 0
      %v5147 = vsel %vm4891, 1, 0
      %v5148 = vsel %vm4892, 1, 0
      %v5149 = vsel %vm4893, 1, 0
      %v5150 = vsel %vm4894, 1, 0
      %v5151 = vsel %vm4895, 1, 0
      %v5152 = vsel %vm4896, 1, 0
      %v5153 = vsel %vm4897, 1, 0
      %v5154 = vsel %vm4898, 1, 0
      %v5155 = vsel %vm4899, 1, 0
      %v5156 = vsel %vm4900, 1, 0
      %v5157 = vsel %vm4901, 1, 0
      %v5158 = vsel %vm4902, 1, 0
      %v5159 = vsel %vm4903, 1, 0
      %v5160 = vsel %vm4904, 1, 0
      %v5161 = vsel %vm4905, 1, 0
      %v5162 = vsel %vm4906, 1, 0
      %v5163 = vsel %vm4907, 1, 0
      %v5164 = vsel %vm4908, 1, 0
      %v5165 = vsel %vm4909, 1, 0
      %v5166 = vsel %vm4910, 1, 0
      %v5167 = vsel %vm4911, 1, 0
      %v5168 = vsel %vm4912, 1, 0
      %v5169 = vsel %vm4913, 1, 0
      %v5170 = vsel %vm4914, 1, 0
      %v5171 = vsel %vm4915, 1, 0
      %v5172 = vsel %vm4916, 1, 0
      %v5173 = vsel %vm4917, 1, 0
      %v5174 = vsel %vm4918, 1, 0
      %v5175 = vsel %vm4919, 1, 0
      %v5176 = vsel %vm4920, 1, 0
      %v5177 = vsel %vm4921, 1, 0
      %v5178 = vsel %vm4922, 1, 0
      %v5179 = vsel %vm4923, 1, 0
      %v5180 = vsel %vm4924, 1, 0
      %v5181 = vsel %vm4925, 1, 0
      %v5182 = vsel %vm4926, 1, 0
      %v5183 = vsel %vm4927, 1, 0
      %v5184 = vsel %vm4928, 1, 0
      %v5185 = vsel %vm4929, 1, 0
      %v5186 = vsel %vm4930, 1, 0
      %v5187 = vsel %vm4931, 1, 0
      %v5188 = vsel %vm4932, 1, 0
      %v5189 = vsel %vm4933, 1, 0
      %v5190 = vsel %vm4934, 1, 0
      %v5191 = vsel %vm4935, 1, 0
      %v5192 = vsel %vm4936, 1, 0
      %v5193 = vsel %vm4937, 1, 0
      %v5194 = vsel %vm4938, 1, 0
      %v5195 = vsel %vm4939, 1, 0
      %v5196 = vsel %vm4940, 1, 0
      %v5197 = vsel %vm4941, 1, 0
      %v5198 = vsel %vm4942, 1, 0
      %v5199 = vsel %vm4943, 1, 0
      %v5200 = vsel %vm4944, 1, 0
      %v5201 = vsel %vm4945, 1, 0
      %v5202 = vsel %vm4946, 1, 0
      %v5203 = vsel %vm4947, 1, 0
      %v5204 = vsel %vm4948, 1, 0
      %v5205 = vsel %vm4949, 1, 0
      %v5206 = vsel %vm4950, 1, 0
      %v5207 = vsel %vm4951, 1, 0
      %v5208 = vsel %vm4952, 1, 0
      %v5209 = vsel %vm4953, 1, 0
      %v5210 = vsel %vm4954, 1, 0
      %v5211 = vsel %vm4955, 1, 0
      %v5212 = vsel %vm4956, 1, 0
      %v5213 = vsel %vm4957, 1, 0
      %v5214 = vsel %vm4958, 1, 0
      %v5215 = vsel %vm4959, 1, 0
      %v5216 = vsel %vm4960, 1, 0
      %v5217 = vsel %vm4961, 1, 0
      %v5218 = vsel %vm4962, 1, 0
      %v5219 = vsel %vm4963, 1, 0
      %v5220 = vsel %vm4964, 1, 0
      %v5221 = vsel %vm4965, 1, 0
      %v5222 = vsel %vm4966, 1, 0
      %v5223 = vsel %vm4967, 1, 0
      %v5224 = vsel %vm4968, 1, 0
      %v5225 = vsel %vm4969, 1, 0
      %v5226 = vsel %vm4970, 1, 0
      %v5227 = vsel %vm4971, 1, 0
      %v5228 = vsel %vm4972, 1, 0
      %v5229 = vsel %vm4973, 1, 0
      %v5230 = vsel %vm4974, 1, 0
      %v5231 = vsel %vm4975, 1, 0
      %v5232 = vsel %vm4976, 1, 0
      %v5233 = vsel %vm4977, 1, 0
      %v5234 = vsel %vm4978, 1, 0
      %v5235 = vsel %vm4979, 1, 0
      %v5236 = vcvt.s32.f32 %v4980
      %v5237 = vcvt.s32.f32 %v4981
      %v5238 = vcvt.s32.f32 %v4982
      %v5239 = vcvt.s32.f32 %v4983
      %v5240 = vcvt.s32.f32 %v4984
      %v5241 = vcvt.s32.f32 %v4985
      %v5242 = vcvt.s32.f32 %v4986
      %v5243 = vcvt.s32.f32 %v4987
      %v5244 = vcvt.s32.f32 %v4988
      %v5245 = vcvt.s32.f32 %v4989
      %v5246 = vcvt.s32.f32 %v4990
      %v5247 = vcvt.s32.f32 %v4991
      %v5248 = vcvt.s32.f32 %v4992
      %v5249 = vcvt.s32.f32 %v4993
      %v5250 = vcvt.s32.f32 %v4994
      %v5251 = vcvt.s32.f32 %v4995
      %v5252 = vcvt.s32.f32 %v4996
      %v5253 = vcvt.s32.f32 %v4997
      %v5254 = vcvt.s32.f32 %v4998
      %v5255 = vcvt.s32.f32 %v4999
      %v5256 = vcvt.s32.f32 %v5000
      %v5257 = vcvt.s32.f32 %v5001
      %v5258 = vcvt.s32.f32 %v5002
      %v5259 = vcvt.s32.f32 %v5003
      %v5260 = vcvt.s32.f32 %v5004
      %v5261 = vcvt.s32.f32 %v5005
      %v5262 = vcvt.s32.f32 %v5006
      %v5263 = vcvt.s32.f32 %v5007
      %v5264 = vcvt.s32.f32 %v5008
      %v5265 = vcvt.s32.f32 %v5009
      %v5266 = vcvt.s32.f32 %v5010
      %v5267 = vcvt.s32.f32 %v5011
      %v5268 = vcvt.s32.f32 %v5012
      %v5269 = vcvt.s32.f32 %v5013
      %v5270 = vcvt.s32.f32 %v5014
      %v5271 = vcvt.s32.f32 %v5015
      %v5272 = vcvt.s32.f32 %v5016
      %v5273 = vcvt.s32.f32 %v5017
      %v5274 = vcvt.s32.f32 %v5018
      %v5275 = vcvt.s32.f32 %v5019
      %v5276 = vcvt.s32.f32 %v5020
      %v5277 = vcvt.s32.f32 %v5021
      %v5278 = vcvt.s32.f32 %v5022
      %v5279 = vcvt.s32.f32 %v5023
      %v5280 = vcvt.s32.f32 %v5024
      %v5281 = vcvt.s32.f32 %v5025
      %v5282 = vcvt.s32.f32 %v5026
      %v5283 = vcvt.s32.f32 %v5027
      %v5284 = vcvt.s32.f32 %v5028
      %v5285 = vcvt.s32.f32 %v5029
      %v5286 = vcvt.s32.f32 %v5030
      %v5287 = vcvt.s32.f32 %v5031
      %v5288 = vcvt.s32.f32 %v5032
      %v5289 = vcvt.s32.f32 %v5033
      %v5290 = vcvt.s32.f32 %v5034
      %v5291 = vcvt.s32.f32 %v5035
      %v5292 = vcvt.s32.f32 %v5036
      %v5293 = vcvt.s32.f32 %v5037
      %v5294 = vcvt.s32.f32 %v5038
      %v5295 = vcvt.s32.f32 %v5039
      %v5296 = vcvt.s32.f32 %v5040
      %v5297 = vcvt.s32.f32 %v5041
      %v5298 = vcvt.s32.f32 %v5042
      %v5299 = vcvt.s32.f32 %v5043
      %v5300 = vcvt.s32.f32 %v5044
      %v5301 = vcvt.s32.f32 %v5045
      %v5302 = vcvt.s32.f32 %v5046
      %v5303 = vcvt.s32.f32 %v5047
      %v5304 = vcvt.s32.f32 %v5048
      %v5305 = vcvt.s32.f32 %v5049
      %v5306 = vcvt.s32.f32 %v5050
      %v5307 = vcvt.s32.f32 %v5051
      %v5308 = vcvt.s32.f32 %v5052
      %v5309 = vcvt.s32.f32 %v5053
      %v5310 = vcvt.s32.f32 %v5054
      %v5311 = vcvt.s32.f32 %v5055
      %v5312 = vcvt.s32.f32 %v5056
      %v5313 = vcvt.s32.f32 %v5057
      %v5314 = vcvt.s32.f32 %v5058
      %v5315 = vcvt.s32.f32 %v5059
      %v5316 = vcvt.s32.f32 %v5060
      %v5317 = vcvt.s32.f32 %v5061
      %v5318 = vcvt.s32.f32 %v5062
      %v5319 = vcvt.s32.f32 %v5063
      %v5320 = vcvt.s32.f32 %v5064
      %v5321 = vcvt.s32.f32 %v5065
      %v5322 = vcvt.s32.f32 %v5066
      %v5323 = vcvt.s32.f32 %v5067
      %v5324 = vcvt.s32.f32 %v5068
      %v5325 = vcvt.s32.f32 %v5069
      %v5326 = vcvt.s32.f32 %v5070
      %v5327 = vcvt.s32.f32 %v5071
      %v5328 = vcvt.s32.f32 %v5072
      %v5329 = vcvt.s32.f32 %v5073
      %v5330 = vcvt.s32.f32 %v5074
      %v5331 = vcvt.s32.f32 %v5075
      %v5332 = vcvt.s32.f32 %v5076
      %v5333 = vcvt.s32.f32 %v5077
      %v5334 = vcvt.s32.f32 %v5078
      %v5335 = vcvt.s32.f32 %v5079
      %v5336 = vcvt.s32.f32 %v5080
      %v5337 = vcvt.s32.f32 %v5081
      %v5338 = vcvt.s32.f32 %v5082
      %v5339 = vcvt.s32.f32 %v5083
      %v5340 = vcvt.s32.f32 %v5084
      %v5341 = vcvt.s32.f32 %v5085
      %v5342 = vcvt.s32.f32 %v5086
      %v5343 = vcvt.s32.f32 %v5087
      %v5344 = vcvt.s32.f32 %v5088
      %v5345 = vcvt.s32.f32 %v5089
      %v5346 = vcvt.s32.f32 %v5090
      %v5347 = vcvt.s32.f32 %v5091
      %v5348 = vcvt.s32.f32 %v5092
      %v5349 = vcvt.s32.f32 %v5093
      %v5350 = vcvt.s32.f32 %v5094
      %v5351 = vcvt.s32.f32 %v5095
      %v5352 = vcvt.s32.f32 %v5096
      %v5353 = vcvt.s32.f32 %v5097
      %v5354 = vcvt.s32.f32 %v5098
      %v5355 = vcvt.s32.f32 %v5099
      %v5356 = vcvt.s32.f32 %v5100
      %v5357 = vcvt.s32.f32 %v5101
      %v5358 = vcvt.s32.f32 %v5102
      %v5359 = vcvt.s32.f32 %v5103
      %v5360 = vcvt.s32.f32 %v5104
      %v5361 = vcvt.s32.f32 %v5105
      %v5362 = vcvt.s32.f32 %v5106
      %v5363 = vcvt.s32.f32 %v5107
      %v5364 = vcvt.s32.f32 %v5108
      %v5365 = vcvt.s32.f32 %v5109
      %v5366 = vcvt.s32.f32 %v5110
      %v5367 = vcvt.s32.f32 %v5111
      %v5368 = vcvt.s32.f32 %v5112
      %v5369 = vcvt.s32.f32 %v5113
      %v5370 = vcvt.s32.f32 %v5114
      %v5371 = vcvt.s32.f32 %v5115
      %v5372 = vcvt.s32.f32 %v5116
      %v5373 = vcvt.s32.f32 %v5117
      %v5374 = vcvt.s32.f32 %v5118
      %v5375 = vcvt.s32.f32 %v5119
      %v5376 = vcvt.s32.f32 %v5120
      %v5377 = vcvt.s32.f32 %v5121
      %v5378 = vcvt.s32.f32 %v5122
      %v5379 = vcvt.s32.f32 %v5123
      %v5380 = vcvt.s32.f32 %v5124
      %v5381 = vcvt.s32.f32 %v5125
      %v5382 = vcvt.s32.f32 %v5126
      %v5383 = vcvt.s32.f32 %v5127
      %v5384 = vcvt.s32.f32 %v5128
      %v5385 = vcvt.s32.f32 %v5129
      %v5386 = vcvt.s32.f32 %v5130
      %v5387 = vcvt.s32.f32 %v5131
      %v5388 = vcvt.s32.f32 %v5132
      %v5389 = vcvt.s32.f32 %v5133
      %v5390 = vcvt.s32.f32 %v5134
      %v5391 = vcvt.s32.f32 %v5135
      %v5392 = vcvt.s32.f32 %v5136
      %v5393 = vcvt.s32.f32 %v5137
      %v5394 = vcvt.s32.f32 %v5138
      %v5395 = vcvt.s32.f32 %v5139
      %v5396 = vcvt.s32.f32 %v5140
      %v5397 = vcvt.s32.f32 %v5141
      %v5398 = vcvt.s32.f32 %v5142
      %v5399 = vcvt.s32.f32 %v5143
      %v5400 = vcvt.s32.f32 %v5144
      %v5401 = vcvt.s32.f32 %v5145
      %v5402 = vcvt.s32.f32 %v5146
      %v5403 = vcvt.s32.f32 %v5147
      %v5404 = vcvt.s32.f32 %v5148
      %v5405 = vcvt.s32.f32 %v5149
      %v5406 = vcvt.s32.f32 %v5150
      %v5407 = vcvt.s32.f32 %v5151
      %v5408 = vcvt.s32.f32 %v5152
      %v5409 = vcvt.s32.f32 %v5153
      %v5410 = vcvt.s32.f32 %v5154
      %v5411 = vcvt.s32.f32 %v5155
      %v5412 = vcvt.s32.f32 %v5156
      %v5413 = vcvt.s32.f32 %v5157
      %v5414 = vcvt.s32.f32 %v5158
      %v5415 = vcvt.s32.f32 %v5159
      %v5416 = vcvt.s32.f32 %v5160
      %v5417 = vcvt.s32.f32 %v5161
      %v5418 = vcvt.s32.f32 %v5162
      %v5419 = vcvt.s32.f32 %v5163
      %v5420 = vcvt.s32.f32 %v5164
      %v5421 = vcvt.s32.f32 %v5165
      %v5422 = vcvt.s32.f32 %v5166
      %v5423 = vcvt.s32.f32 %v5167
      %v5424 = vcvt.s32.f32 %v5168
      %v5425 = vcvt.s32.f32 %v5169
      %v5426 = vcvt.s32.f32 %v5170
      %v5427 = vcvt.s32.f32 %v5171
      %v5428 = vcvt.s32.f32 %v5172
      %v5429 = vcvt.s32.f32 %v5173
      %v5430 = vcvt.s32.f32 %v5174
      %v5431 = vcvt.s32.f32 %v5175
      %v5432 = vcvt.s32.f32 %v5176
      %v5433 = vcvt.s32.f32 %v5177
      %v5434 = vcvt.s32.f32 %v5178
      %v5435 = vcvt.s32.f32 %v5179
      %v5436 = vcvt.s32.f32 %v5180
      %v5437 = vcvt.s32.f32 %v5181
      %v5438 = vcvt.s32.f32 %v5182
      %v5439 = vcvt.s32.f32 %v5183
      %v5440 = vcvt.s32.f32 %v5184
      %v5441 = vcvt.s32.f32 %v5185
      %v5442 = vcvt.s32.f32 %v5186
      %v5443 = vcvt.s32.f32 %v5187
      %v5444 = vcvt.s32.f32 %v5188
      %v5445 = vcvt.s32.f32 %v5189
      %v5446 = vcvt.s32.f32 %v5190
      %v5447 = vcvt.s32.f32 %v5191
      %v5448 = vcvt.s32.f32 %v5192
      %v5449 = vcvt.s32.f32 %v5193
      %v5450 = vcvt.s32.f32 %v5194
      %v5451 = vcvt.s32.f32 %v5195
      %v5452 = vcvt.s32.f32 %v5196
      %v5453 = vcvt.s32.f32 %v5197
      %v5454 = vcvt.s32.f32 %v5198
      %v5455 = vcvt.s32.f32 %v5199
      %v5456 = vcvt.s32.f32 %v5200
      %v5457 = vcvt.s32.f32 %v5201
      %v5458 = vcvt.s32.f32 %v5202
      %v5459 = vcvt.s32.f32 %v5203
      %v5460 = vcvt.s32.f32 %v5204
      %v5461 = vcvt.s32.f32 %v5205
      %v5462 = vcvt.s32.f32 %v5206
      %v5463 = vcvt.s32.f32 %v5207
      %v5464 = vcvt.s32.f32 %v5208
      %v5465 = vcvt.s32.f32 %v5209
      %v5466 = vcvt.s32.f32 %v5210
      %v5467 = vcvt.s32.f32 %v5211
      %v5468 = vcvt.s32.f32 %v5212
      %v5469 = vcvt.s32.f32 %v5213
      %v5470 = vcvt.s32.f32 %v5214
      %v5471 = vcvt.s32.f32 %v5215
      %v5472 = vcvt.s32.f32 %v5216
      %v5473 = vcvt.s32.f32 %v5217
      %v5474 = vcvt.s32.f32 %v5218
      %v5475 = vcvt.s32.f32 %v5219
      %v5476 = vcvt.s32.f32 %v5220
      %v5477 = vcvt.s32.f32 %v5221
      %v5478 = vcvt.s32.f32 %v5222
      %v5479 = vcvt.s32.f32 %v5223
      %v5480 = vcvt.s32.f32 %v5224
      %v5481 = vcvt.s32.f32 %v5225
      %v5482 = vcvt.s32.f32 %v5226
      %v5483 = vcvt.s32.f32 %v5227
      %v5484 = vcvt.s32.f32 %v5228
      %v5485 = vcvt.s32.f32 %v5229
      %v5486 = vcvt.s32.f32 %v5230
      %v5487 = vcvt.s32.f32 %v5231
      %v5488 = vcvt.s32.f32 %v5232
      %v5489 = vcvt.s32.f32 %v5233
      %v5490 = vcvt.s32.f32 %v5234
      %v5491 = vcvt.s32.f32 %v5235
      %v5492 = vpack.c.bf16 %v5240, %v5236
      %v5493 = vpack.c.bf16 %v5241, %v5237
      %v5494 = vpack.c.bf16 %v5242, %v5238
      %v5495 = vpack.c.bf16 %v5243, %v5239
      %v5496 = vpack.c.bf16 %v5248, %v5244
      %v5497 = vpack.c.bf16 %v5249, %v5245
      %v5498 = vpack.c.bf16 %v5250, %v5246
      %v5499 = vpack.c.bf16 %v5251, %v5247
      %v5500 = vpack.c.bf16 %v5256, %v5252
      %v5501 = vpack.c.bf16 %v5257, %v5253
      %v5502 = vpack.c.bf16 %v5258, %v5254
      %v5503 = vpack.c.bf16 %v5259, %v5255
      %v5504 = vpack.c.bf16 %v5264, %v5260
      %v5505 = vpack.c.bf16 %v5265, %v5261
      %v5506 = vpack.c.bf16 %v5266, %v5262
      %v5507 = vpack.c.bf16 %v5267, %v5263
      %v5508 = vpack.c.bf16 %v5272, %v5268
      %v5509 = vpack.c.bf16 %v5273, %v5269
      %v5510 = vpack.c.bf16 %v5274, %v5270
      %v5511 = vpack.c.bf16 %v5275, %v5271
      %v5512 = vpack.c.bf16 %v5280, %v5276
      %v5513 = vpack.c.bf16 %v5281, %v5277
      %v5514 = vpack.c.bf16 %v5282, %v5278
      %v5515 = vpack.c.bf16 %v5283, %v5279
      %v5516 = vpack.c.bf16 %v5288, %v5284
      %v5517 = vpack.c.bf16 %v5289, %v5285
      %v5518 = vpack.c.bf16 %v5290, %v5286
      %v5519 = vpack.c.bf16 %v5291, %v5287
      %v5520 = vpack.c.bf16 %v5296, %v5292
      %v5521 = vpack.c.bf16 %v5297, %v5293
      %v5522 = vpack.c.bf16 %v5298, %v5294
      %v5523 = vpack.c.bf16 %v5299, %v5295
      %v5524 = vpack.c.bf16 %v5304, %v5300
      %v5525 = vpack.c.bf16 %v5305, %v5301
      %v5526 = vpack.c.bf16 %v5306, %v5302
      %v5527 = vpack.c.bf16 %v5307, %v5303
      %v5528 = vpack.c.bf16 %v5312, %v5308
      %v5529 = vpack.c.bf16 %v5313, %v5309
      %v5530 = vpack.c.bf16 %v5314, %v5310
      %v5531 = vpack.c.bf16 %v5315, %v5311
      %v5532 = vpack.c.bf16 %v5320, %v5316
      %v5533 = vpack.c.bf16 %v5321, %v5317
      %v5534 = vpack.c.bf16 %v5322, %v5318
      %v5535 = vpack.c.bf16 %v5323, %v5319
      %v5536 = vpack.c.bf16 %v5328, %v5324
      %v5537 = vpack.c.bf16 %v5329, %v5325
      %v5538 = vpack.c.bf16 %v5330, %v5326
      %v5539 = vpack.c.bf16 %v5331, %v5327
      %v5540 = vpack.c.bf16 %v5336, %v5332
      %v5541 = vpack.c.bf16 %v5337, %v5333
      %v5542 = vpack.c.bf16 %v5338, %v5334
      %v5543 = vpack.c.bf16 %v5339, %v5335
      %v5544 = vpack.c.bf16 %v5344, %v5340
      %v5545 = vpack.c.bf16 %v5345, %v5341
      %v5546 = vpack.c.bf16 %v5346, %v5342
      %v5547 = vpack.c.bf16 %v5347, %v5343
      %v5548 = vpack.c.bf16 %v5352, %v5348
      %v5549 = vpack.c.bf16 %v5353, %v5349
      %v5550 = vpack.c.bf16 %v5354, %v5350
      %v5551 = vpack.c.bf16 %v5355, %v5351
      %v5552 = vpack.c.bf16 %v5360, %v5356
      %v5553 = vpack.c.bf16 %v5361, %v5357
      %v5554 = vpack.c.bf16 %v5362, %v5358
      %v5555 = vpack.c.bf16 %v5363, %v5359
      %v5556 = vpack.c.bf16 %v5368, %v5364
      %v5557 = vpack.c.bf16 %v5369, %v5365
      %v5558 = vpack.c.bf16 %v5370, %v5366
      %v5559 = vpack.c.bf16 %v5371, %v5367
      %v5560 = vpack.c.bf16 %v5376, %v5372
      %v5561 = vpack.c.bf16 %v5377, %v5373
      %v5562 = vpack.c.bf16 %v5378, %v5374
      %v5563 = vpack.c.bf16 %v5379, %v5375
      %v5564 = vpack.c.bf16 %v5384, %v5380
      %v5565 = vpack.c.bf16 %v5385, %v5381
      %v5566 = vpack.c.bf16 %v5386, %v5382
      %v5567 = vpack.c.bf16 %v5387, %v5383
      %v5568 = vpack.c.bf16 %v5392, %v5388
      %v5569 = vpack.c.bf16 %v5393, %v5389
      %v5570 = vpack.c.bf16 %v5394, %v5390
      %v5571 = vpack.c.bf16 %v5395, %v5391
      %v5572 = vpack.c.bf16 %v5400, %v5396
      %v5573 = vpack.c.bf16 %v5401, %v5397
      %v5574 = vpack.c.bf16 %v5402, %v5398
      %v5575 = vpack.c.bf16 %v5403, %v5399
      %v5576 = vpack.c.bf16 %v5408, %v5404
      %v5577 = vpack.c.bf16 %v5409, %v5405
      %v5578 = vpack.c.bf16 %v5410, %v5406
      %v5579 = vpack.c.bf16 %v5411, %v5407
      %v5580 = vpack.c.bf16 %v5416, %v5412
      %v5581 = vpack.c.bf16 %v5417, %v5413
      %v5582 = vpack.c.bf16 %v5418, %v5414
      %v5583 = vpack.c.bf16 %v5419, %v5415
      %v5584 = vpack.c.bf16 %v5424, %v5420
      %v5585 = vpack.c.bf16 %v5425, %v5421
      %v5586 = vpack.c.bf16 %v5426, %v5422
      %v5587 = vpack.c.bf16 %v5427, %v5423
      %v5588 = vpack.c.bf16 %v5432, %v5428
      %v5589 = vpack.c.bf16 %v5433, %v5429
      %v5590 = vpack.c.bf16 %v5434, %v5430
      %v5591 = vpack.c.bf16 %v5435, %v5431
      %v5592 = vpack.c.bf16 %v5440, %v5436
      %v5593 = vpack.c.bf16 %v5441, %v5437
      %v5594 = vpack.c.bf16 %v5442, %v5438
      %v5595 = vpack.c.bf16 %v5443, %v5439
      %v5596 = vpack.c.bf16 %v5448, %v5444
      %v5597 = vpack.c.bf16 %v5449, %v5445
      %v5598 = vpack.c.bf16 %v5450, %v5446
      %v5599 = vpack.c.bf16 %v5451, %v5447
      %v5600 = vpack.c.bf16 %v5456, %v5452
      %v5601 = vpack.c.bf16 %v5457, %v5453
      %v5602 = vpack.c.bf16 %v5458, %v5454
      %v5603 = vpack.c.bf16 %v5459, %v5455
      %v5604 = vpack.c.bf16 %v5464, %v5460
      %v5605 = vpack.c.bf16 %v5465, %v5461
      %v5606 = vpack.c.bf16 %v5466, %v5462
      %v5607 = vpack.c.bf16 %v5467, %v5463
      %v5608 = vpack.c.bf16 %v5472, %v5468
      %v5609 = vpack.c.bf16 %v5473, %v5469
      %v5610 = vpack.c.bf16 %v5474, %v5470
      %v5611 = vpack.c.bf16 %v5475, %v5471
      %v5612 = vpack.c.bf16 %v5480, %v5476
      %v5613 = vpack.c.bf16 %v5481, %v5477
      %v5614 = vpack.c.bf16 %v5482, %v5478
      %v5615 = vpack.c.bf16 %v5483, %v5479
      %v5616 = vpack.c.bf16 %v5488, %v5484
      %v5617 = vpack.c.bf16 %v5489, %v5485
      %v5618 = vpack.c.bf16 %v5490, %v5486
      %v5619 = vpack.c.bf16 %v5491, %v5487
      %v5621 = vlaneseq
      %v5622 = vshrl.u32 %v5621, 7
      %v5623 = vsub.s32 0, %v5622
      %v5624 = vrot.slane %v307, %v5623
      %v5625 = vlaneseq
      %v5626 = vshrl.u32 %v5625, 7
      %v5627 = vsub.s32 1, %v5626
      %v5628 = vrot.slane %v307, %v5627
      %v5629 = vlaneseq
      %v5630 = vshrl.u32 %v5629, 7
      %v5631 = vsub.s32 2, %v5630
      %v5632 = vrot.slane %v307, %v5631
      %v5633 = vlaneseq
      %v5634 = vshrl.u32 %v5633, 7
      %v5635 = vsub.s32 3, %v5634
      %v5636 = vrot.slane %v307, %v5635
      %v5641 = vpack.c.bf16 %v5624, %v5624
      %v5642 = vpack.c.bf16 %v5628, %v5628
      %v5643 = vpack.c.bf16 %v5632, %v5632
      %v5644 = vpack.c.bf16 %v5636, %v5636
      %5645 = vmatprep.subr.bf16.mxu0 %v5521
      %5646 = vmatpush1.bf16.msra.mxu0 %v5520
      %5647 = vmatprep.subr.bf16.mxu0 %v5517
      %5648 = vmatpush1.bf16.msra.mxu0 %v5516
      %5649 = vmatprep.subr.bf16.mxu0 %v5513
      %5650 = vmatpush1.bf16.msra.mxu0 %v5512
      %5651 = vmatprep.subr.bf16.mxu0 %v5509
      %5652 = vmatpush1.bf16.msra.mxu0 %v5508
      %5653 = vmatprep.subr.bf16.mxu0 %v5505
      %5654 = vmatpush1.bf16.msra.mxu0 %v5504
      %5655 = vmatprep.subr.bf16.mxu0 %v5501
      %5656 = vmatpush1.bf16.msra.mxu0 %v5500
      %5657 = vmatprep.subr.bf16.mxu0 %v5497
      %5658 = vmatpush1.bf16.msra.mxu0 %v5496
      %5659 = vmatprep.subr.bf16.mxu0 %v5493
      %5660 = vmatpush1.bf16.msra.mxu0 %v5492
      %5661 = vmatprep.subr.bf16.mxu0 %v5553
      %5662 = vmatpush2.bf16.msra.mxu0 %v5552
      %5663 = vmatprep.subr.bf16.mxu0 %v5549
      %5664 = vmatpush2.bf16.msra.mxu0 %v5548
      %5665 = vmatprep.subr.bf16.mxu0 %v5545
      %5666 = vmatpush2.bf16.msra.mxu0 %v5544
      %5667 = vmatprep.subr.bf16.mxu0 %v5541
      %5668 = vmatpush2.bf16.msra.mxu0 %v5540
      %5669 = vmatprep.subr.bf16.mxu0 %v5537
      %5670 = vmatpush2.bf16.msra.mxu0 %v5536
      %5671 = vmatprep.subr.bf16.mxu0 %v5533
      %5672 = vmatpush2.bf16.msra.mxu0 %v5532
      %5673 = vmatprep.subr.bf16.mxu0 %v5529
      %5674 = vmatpush2.bf16.msra.mxu0 %v5528
      %5675 = vmatprep.subr.bf16.mxu0 %v5525
      %5676 = vmatpush2.bf16.msra.mxu0 %v5524
      %5677 = vmatprep.mubr.bf16.mxu0 %v5642
      %5678 = vmatmul.mubr.bf16.gmra.mxu0 %v5641
      %v5679 = vpop.f32.mrf.mxu0
      %v5680 = vadd.f32 0.0, %v5679
      %v5681 = vpop.f32.mrf.mxu0
      %v5682 = vadd.f32 0.0, %v5681
      %v5683 = vpop.f32.mrf.mxu0
      %v5684 = vpop.f32.mrf.mxu0
      %5685 = vdwg.mxu0
      %5686 = vmatprep.subr.bf16.mxu0 %v5585
      %5687 = vmatpush1.bf16.msra.mxu0 %v5584
      %5688 = vmatprep.subr.bf16.mxu0 %v5581
      %5689 = vmatpush1.bf16.msra.mxu0 %v5580
      %5690 = vmatprep.subr.bf16.mxu0 %v5577
      %5691 = vmatpush1.bf16.msra.mxu0 %v5576
      %5692 = vmatprep.subr.bf16.mxu0 %v5573
      %5693 = vmatpush1.bf16.msra.mxu0 %v5572
      %5694 = vmatprep.subr.bf16.mxu0 %v5569
      %5695 = vmatpush1.bf16.msra.mxu0 %v5568
      %5696 = vmatprep.subr.bf16.mxu0 %v5565
      %5697 = vmatpush1.bf16.msra.mxu0 %v5564
      %5698 = vmatprep.subr.bf16.mxu0 %v5561
      %5699 = vmatpush1.bf16.msra.mxu0 %v5560
      %5700 = vmatprep.subr.bf16.mxu0 %v5557
      %5701 = vmatpush1.bf16.msra.mxu0 %v5556
      %5702 = vmatprep.subr.bf16.mxu0 %v5617
      %5703 = vmatpush2.bf16.msra.mxu0 %v5616
      %5704 = vmatprep.subr.bf16.mxu0 %v5613
      %5705 = vmatpush2.bf16.msra.mxu0 %v5612
      %5706 = vmatprep.subr.bf16.mxu0 %v5609
      %5707 = vmatpush2.bf16.msra.mxu0 %v5608
      %5708 = vmatprep.subr.bf16.mxu0 %v5605
      %5709 = vmatpush2.bf16.msra.mxu0 %v5604
      %5710 = vmatprep.subr.bf16.mxu0 %v5601
      %5711 = vmatpush2.bf16.msra.mxu0 %v5600
      %5712 = vmatprep.subr.bf16.mxu0 %v5597
      %5713 = vmatpush2.bf16.msra.mxu0 %v5596
      %5714 = vmatprep.subr.bf16.mxu0 %v5593
      %5715 = vmatpush2.bf16.msra.mxu0 %v5592
      %5716 = vmatprep.subr.bf16.mxu0 %v5589
      %5717 = vmatpush2.bf16.msra.mxu0 %v5588
      %5718 = vmatprep.mubr.bf16.mxu0 %v5644
      %5719 = vmatmul.mubr.bf16.gmra.mxu0 %v5643
      %v5720 = vpop.f32.mrf.mxu0
      %v5721 = vadd.f32 %v5680, %v5720
      %v5722 = vpop.f32.mrf.mxu0
      %v5723 = vadd.f32 %v5682, %v5722
      %v5724 = vpop.f32.mrf.mxu0
      %v5725 = vpop.f32.mrf.mxu0
      %5726 = vdwg.mxu0
      %5727 = vmatprep.subr.bf16.mxu0 %v5523
      %5728 = vmatpush1.bf16.msra.mxu0 %v5522
      %5729 = vmatprep.subr.bf16.mxu0 %v5519
      %5730 = vmatpush1.bf16.msra.mxu0 %v5518
      %5731 = vmatprep.subr.bf16.mxu0 %v5515
      %5732 = vmatpush1.bf16.msra.mxu0 %v5514
      %5733 = vmatprep.subr.bf16.mxu0 %v5511
      %5734 = vmatpush1.bf16.msra.mxu0 %v5510
      %5735 = vmatprep.subr.bf16.mxu0 %v5507
      %5736 = vmatpush1.bf16.msra.mxu0 %v5506
      %5737 = vmatprep.subr.bf16.mxu0 %v5503
      %5738 = vmatpush1.bf16.msra.mxu0 %v5502
      %5739 = vmatprep.subr.bf16.mxu0 %v5499
      %5740 = vmatpush1.bf16.msra.mxu0 %v5498
      %5741 = vmatprep.subr.bf16.mxu0 %v5495
      %5742 = vmatpush1.bf16.msra.mxu0 %v5494
      %5743 = vmatprep.subr.bf16.mxu0 %v5555
      %5744 = vmatpush2.bf16.msra.mxu0 %v5554
      %5745 = vmatprep.subr.bf16.mxu0 %v5551
      %5746 = vmatpush2.bf16.msra.mxu0 %v5550
      %5747 = vmatprep.subr.bf16.mxu0 %v5547
      %5748 = vmatpush2.bf16.msra.mxu0 %v5546
      %5749 = vmatprep.subr.bf16.mxu0 %v5543
      %5750 = vmatpush2.bf16.msra.mxu0 %v5542
      %5751 = vmatprep.subr.bf16.mxu0 %v5539
      %5752 = vmatpush2.bf16.msra.mxu0 %v5538
      %5753 = vmatprep.subr.bf16.mxu0 %v5535
      %5754 = vmatpush2.bf16.msra.mxu0 %v5534
      %5755 = vmatprep.subr.bf16.mxu0 %v5531
      %5756 = vmatpush2.bf16.msra.mxu0 %v5530
      %5757 = vmatprep.subr.bf16.mxu0 %v5527
      %5758 = vmatpush2.bf16.msra.mxu0 %v5526
      %5759 = vmatprep.mubr.bf16.mxu0 %v5642
      %5760 = vmatmul.mubr.bf16.gmra.mxu0 %v5641
      %v5761 = vpop.f32.mrf.mxu0
      %v5762 = vadd.f32 0.0, %v5761
      %v5763 = vpop.f32.mrf.mxu0
      %v5764 = vadd.f32 0.0, %v5763
      %v5765 = vpop.f32.mrf.mxu0
      %v5766 = vpop.f32.mrf.mxu0
      %5767 = vdwg.mxu0
      %5768 = vmatprep.subr.bf16.mxu0 %v5587
      %5769 = vmatpush1.bf16.msra.mxu0 %v5586
      %5770 = vmatprep.subr.bf16.mxu0 %v5583
      %5771 = vmatpush1.bf16.msra.mxu0 %v5582
      %5772 = vmatprep.subr.bf16.mxu0 %v5579
      %5773 = vmatpush1.bf16.msra.mxu0 %v5578
      %5774 = vmatprep.subr.bf16.mxu0 %v5575
      %5775 = vmatpush1.bf16.msra.mxu0 %v5574
      %5776 = vmatprep.subr.bf16.mxu0 %v5571
      %5777 = vmatpush1.bf16.msra.mxu0 %v5570
      %5778 = vmatprep.subr.bf16.mxu0 %v5567
      %5779 = vmatpush1.bf16.msra.mxu0 %v5566
      %5780 = vmatprep.subr.bf16.mxu0 %v5563
      %5781 = vmatpush1.bf16.msra.mxu0 %v5562
      %5782 = vmatprep.subr.bf16.mxu0 %v5559
      %5783 = vmatpush1.bf16.msra.mxu0 %v5558
      %5784 = vmatprep.subr.bf16.mxu0 %v5619
      %5785 = vmatpush2.bf16.msra.mxu0 %v5618
      %5786 = vmatprep.subr.bf16.mxu0 %v5615
      %5787 = vmatpush2.bf16.msra.mxu0 %v5614
      %5788 = vmatprep.subr.bf16.mxu0 %v5611
      %5789 = vmatpush2.bf16.msra.mxu0 %v5610
      %5790 = vmatprep.subr.bf16.mxu0 %v5607
      %5791 = vmatpush2.bf16.msra.mxu0 %v5606
      %5792 = vmatprep.subr.bf16.mxu0 %v5603
      %5793 = vmatpush2.bf16.msra.mxu0 %v5602
      %5794 = vmatprep.subr.bf16.mxu0 %v5599
      %5795 = vmatpush2.bf16.msra.mxu0 %v5598
      %5796 = vmatprep.subr.bf16.mxu0 %v5595
      %5797 = vmatpush2.bf16.msra.mxu0 %v5594
      %5798 = vmatprep.subr.bf16.mxu0 %v5591
      %5799 = vmatpush2.bf16.msra.mxu0 %v5590
      %5800 = vmatprep.mubr.bf16.mxu0 %v5644
      %5801 = vmatmul.mubr.bf16.gmra.mxu0 %v5643
      %v5802 = vpop.f32.mrf.mxu0
      %v5803 = vadd.f32 %v5762, %v5802
      %v5804 = vpop.f32.mrf.mxu0
      %v5805 = vadd.f32 %v5764, %v5804
      %v5806 = vpop.f32.mrf.mxu0
      %v5807 = vpop.f32.mrf.mxu0
      %5808 = vdwg.mxu0
      %v5809 = vsub.f32 %v3412, %v5721
      %v5810 = vsub.f32 %v3413, %v5723
      %v5811 = vsub.f32 %v3414, %v5803
      %v5812 = vsub.f32 %v3415, %v5805
      %vm5813 = vcmask 1040384
      %v5814 = vsel %vm5813, %v5624, 0.0
      %v5815 = vsel %vm5813, %v5628, 0.0
      %v5816 = vadd.f32 %v5814, %v5815
      %v5817 = vsel %vm5813, %v5632, 0.0
      %v5818 = vadd.f32 %v5816, %v5817
      %v5819 = vsel %vm5813, %v5636, 0.0
      %v5820 = vadd.f32 %v5818, %v5819
      %5821 = vadd.xlane.f32.xlu0 %v5820
      %v5822 = vpop.xlane.xlu0 %5821
      %v5823 = vrot.slane %v5822, 4
      %v5824 = vadd.f32 %v5822, %v5823
      %v5825 = vrot.slane %v5824, 2
      %v5826 = vadd.f32 %v5824, %v5825
      %v5827 = vrot.slane %v5826, 1
      %v5828 = vadd.f32 %v5826, %v5827
      %s5829 = vtos %v5828
      %v5830 = vstv %s5829
      %v5831 = vsub.f32 %v5830, %v5721
      %v5832 = vsub.f32 %v5830, %v5723
      %v5833 = vsub.f32 %v5830, %v5803
      %v5834 = vsub.f32 %v5830, %v5805
      %v5835 = vadd.f32 %v5830, %v5809
      %v5836 = vadd.f32 %v5830, %v5810
      %v5837 = vadd.f32 %v5830, %v5811
      %v5838 = vadd.f32 %v5830, %v5812
      %v5839 = vrcp.pop %v5835
      %v5840 = vmul.f32 %v5831, %v5839
      %v5841 = vrcp.pop %v5836
      %v5842 = vmul.f32 %v5832, %v5841
      %v5843 = vrcp.pop %v5837
      %v5844 = vmul.f32 %v5833, %v5843
      %v5845 = vrcp.pop %v5838
      %v5846 = vmul.f32 %v5834, %v5845
      %v5847 = vsub.f32 1.0, %v5840
      %v5848 = vsub.f32 1.0, %v5842
      %v5849 = vsub.f32 1.0, %v5844
      %v5850 = vsub.f32 1.0, %v5846
      %v5851 = vmul.f32 %v4578, %v5847
      %v5852 = vmul.f32 %v4580, %v5848
      %v5853 = vmul.f32 %v4720, %v5849
      %v5854 = vmul.f32 %v4722, %v5850
      %v5855 = vsel %vm5813, %v5851, 0.0
      %v5856 = vsel %vm5813, %v5852, 0.0
      %v5857 = vadd.f32 %v5855, %v5856
      %v5858 = vsel %vm5813, %v5853, 0.0
      %v5859 = vadd.f32 %v5857, %v5858
      %v5860 = vsel %vm5813, %v5854, 0.0
      %v5861 = vadd.f32 %v5859, %v5860
      %5862 = vadd.xlane.f32.xlu0 %v5861
      %v5863 = vpop.xlane.xlu0 %5862
      %v5864 = vrot.slane %v5863, 4
      %v5865 = vadd.f32 %v5863, %v5864
      %v5866 = vrot.slane %v5865, 2
      %v5867 = vadd.f32 %v5865, %v5866
      %v5868 = vrot.slane %v5867, 1
      %v5869 = vadd.f32 %v5867, %v5868
      %s5870 = vtos %v5869
      %v5871 = vstv %s5870
      %5872 = vst [vmem:[%s237] sm:$0x1] %v5871
      %p5873 = scmp.lt.s32.totalorder %s16, 3
      %s5874 = scalar_select %p5873, %s16, 3
      %s5875 = scalar_lea.vmem %s5, %s5874
      // Predicated region
      $region41: #{lovasz_softmax.1} parent=39 // pred_check
        %p5876 = pneg %p149
      $region42: #{lovasz_softmax.1} parent=39 // pred_check_branch
        %5878 = sbr.rel (%p5876) target = $region44
      $region43: #{lovasz_softmax.1} parent=39 // pred_region
        _
      $region44: #{lovasz_softmax.1} parent=39 // pred_fallthru
        _
    $region40: #{lovasz_softmax.1} parent=5 // pred_fallthru
      _
    %p5879 = scmp.le.s32.totalorder 2, %s11
    // Predicated region
    $region45: #{lovasz_softmax.1} parent=5 // pred_check
      %p5880 = pneg %p5879
    $region46: #{lovasz_softmax.1} parent=5 // pred_check_branch
      %5882 = sbr.rel (%p5880) target = $region48
    $region47: #{lovasz_softmax.1} parent=5 // pred_region
      %s5883 = ssub.s32 %s11, 2
      // Predicated region
      $region49: #{lovasz_softmax.1} parent=47 // pred_check
        %p5884 = pneg %p155
      $region50: #{lovasz_softmax.1} parent=47 // pred_check_branch
        %5886 = sbr.rel (%p5884) target = $region52
      $region51: #{lovasz_softmax.1} parent=47 // pred_region
        %p5887 = scmp.lt.s32.totalorder %s17, 3
        %s5888 = scalar_select %p5887, %s17, 3
        %s5889 = scalar_lea.vmem %s5, %s5888
      $region52: #{lovasz_softmax.1} parent=47 // pred_fallthru
        _
    $region48: #{lovasz_softmax.1} parent=5 // pred_fallthru
      _
  $region6: #{lovasz_softmax.1} parent=0 // loop_footer
    %s15 = sadd.s32 1, %s11
  $region7: #{lovasz_softmax.1} parent=0 // loop_footer_branch
    %10 = sbr.rel target = $region3
  $region8: #{lovasz_softmax.1} parent=0 // loop_exit
    _

</llo_original>
